<compile_context>
chip_gen: v5e
topology: v5e:2x2
jax: 0.10.0
libtpu: 0.0.40
codegen_flags: <defaults>
</compile_context>

<pallas_src>
import functools

import jax
import jax.numpy as jnp
from jax import lax
from jax.experimental import pallas as pl
from jax.experimental.pallas import tpu as pltpu

EPS = 1e-5  # PyTorch BatchNorm default


# ----------------------------------------------------------------------------
# Fused Pallas kernel
# ----------------------------------------------------------------------------
def _fused_kernel(x_ref,
                  a_p1_ref, b_p1_ref,
                  a_p2_ref, b_p2_ref,
                  a_p_ref, asum_p_ref, b_p_ref,
                  a_c1_ref, b_c1_ref,
                  a_c2_ref, b_c2_ref,
                  o_ref,
                  *, H, W, C, CM):
    f32 = jnp.float32
    WC = W * C

    # Constant H-shift operators encoding the 1-row zero halo of a 3x3 conv:
    #   (d_dn @ y)[h] = y[h-1] (0 at h=0),  (d_up @ y)[h] = y[h+1] (0 at h=H-1)
    hi = lax.broadcasted_iota(jnp.int32, (H, H), 0)
    hk = lax.broadcasted_iota(jnp.int32, (H, H), 1)
    d_dn = (hk == hi - 1).astype(f32)
    d_up = (hk == hi + 1).astype(f32)

    def dot(a, b):
        return jnp.dot(a, b, preferred_element_type=f32)

    def h_cat(xin):
        # [x[h-1] | x[h] | x[h+1]] along lanes (zero H halo) -> (H, 3*lanes).
        return jnp.concatenate([dot(d_dn, xin), xin, dot(d_up, xin)], axis=1)

    x = x_ref[...].astype(f32)                                   # (H, WC)
    xcat = h_cat(x)                                              # (H, 3*WC), shared by p1/p2

    # ---- p1 / p2 branches: Conv3x3(dim->128) + folded BN + ReLU ----
    # K-concatenated taps -> a single MXU matmul per branch.
    p1 = jnp.maximum(dot(xcat, a_p1_ref[...]) + b_p1_ref[...], 0.0)   # (H, W*128)
    p2 = jnp.maximum(dot(xcat, a_p2_ref[...]) + b_p2_ref[...], 0.0)   # (H, W*128)

    # ---- corner pools ----
    # BottomPool(TopPool(p1)) == per-(w, c) max over H.
    col = jnp.max(p1, axis=0, keepdims=True)                     # (1, W*128)
    # RightPool(LeftPool(p2)) == per-(h, c) max over W.  W lives in aligned
    # 128-lane groups of the flattened axis; log-depth tree reduction.
    rowm, n, carry = p2, W, None
    while n > 1:
        if n % 2:
            tail = rowm[:, (n - 1) * CM:n * CM]
            carry = tail if carry is None else jnp.maximum(carry, tail)
            n -= 1
        half = n // 2
        rowm = jnp.maximum(rowm[:, :half * CM], rowm[:, half * CM:n * CM])
        n = half
    if carry is not None:
        rowm = jnp.maximum(rowm, carry)                          # (H, 128)

    # ---- p_conv1: Conv3x3(128->dim) + BN (no ReLU) on pool1 + pool2 ----
    # pool_sum is never materialized: the conv is linear, so the H-constant
    # column term uses the banded taps and the W-constant row term uses the
    # W-summed taps.  The 3 taps are N-concatenated: tap di lives in lanes
    # [di*WC, (di+1)*WC) of pbcat.
    pbcat = dot(col, a_p_ref[...]) + dot(rowm, asum_p_ref[...])  # (H, 3*WC)
    pb = (pbcat[:, WC:2 * WC]
          + dot(d_dn, pbcat[:, :WC])
          + dot(d_up, pbcat[:, 2 * WC:])
          + b_p_ref[...])                                        # (H, WC)

    # ---- conv1: Conv1x1(dim->dim) + BN (block-diagonal in the flat layout) --
    c1 = dot(x, a_c1_ref[...]) + b_c1_ref[...]                   # (H, WC)

    # ---- relu1, then conv2: Conv3x3(dim->dim) + BN + ReLU ----
    r = jnp.maximum(pb + c1, 0.0)                                # (H, WC)
    out = jnp.maximum(dot(h_cat(r), a_c2_ref[...]) + b_c2_ref[...], 0.0)

    o_ref[...] = out.astype(o_ref.dtype)


# ----------------------------------------------------------------------------
# Wrapper
# ----------------------------------------------------------------------------
def pool_cross_forward(x_nchw, prep):
    """x: (B, dim, H, W) NCHW in / NCHW out.  prep: prepared (folded) weights."""
    B, C, H, W = x_nchw.shape
    CM = 128  # hard-coded intermediate width of the module
    WC, WCM = W * C, W * CM

    # layout plumbing only: NCHW -> lane-flattened (B, H, W*C)
    x_flat = jnp.transpose(x_nchw, (0, 2, 3, 1)).reshape(B, H, WC)

    kernel = functools.partial(_fused_kernel, H=H, W=W, C=C, CM=CM)
    out_flat = pl.pallas_call(
        kernel,
        out_shape=jax.ShapeDtypeStruct((B, H, WC), x_nchw.dtype),
        grid=(B,),
        in_specs=[
            pl.BlockSpec((pl.Squeezed(), H, WC), lambda b: (b, 0, 0)),   # x
            pl.BlockSpec((3 * WC, WCM), lambda b: (0, 0)),               # A_p1 (K-concat taps)
            pl.BlockSpec((1, WCM), lambda b: (0, 0)),                    # b_p1
            pl.BlockSpec((3 * WC, WCM), lambda b: (0, 0)),               # A_p2
            pl.BlockSpec((1, WCM), lambda b: (0, 0)),                    # b_p2
            pl.BlockSpec((WCM, 3 * WC), lambda b: (0, 0)),               # A_p (N-concat taps)
            pl.BlockSpec((CM, 3 * WC), lambda b: (0, 0)),                # Asum_p
            pl.BlockSpec((1, WC), lambda b: (0, 0)),                     # b_p
            pl.BlockSpec((WC, WC), lambda b: (0, 0)),                    # A_c1
            pl.BlockSpec((1, WC), lambda b: (0, 0)),                     # b_c1
            pl.BlockSpec((3 * WC, WC), lambda b: (0, 0)),                # A_c2
            pl.BlockSpec((1, WC), lambda b: (0, 0)),                     # b_c2
        ],
        out_specs=pl.BlockSpec((pl.Squeezed(), H, WC), lambda b: (b, 0, 0)),
        compiler_params=pltpu.CompilerParams(
            dimension_semantics=("parallel",)),
    )(x_flat, prep["A_p1"], prep["b_p1"], prep["A_p2"], prep["b_p2"],
      prep["A_p"], prep["Asum_p"], prep["b_p"],
      prep["A_c1"], prep["b_c1"], prep["A_c2"], prep["b_c2"])

    out = out_flat.reshape(B, H, W, C)
    return jnp.transpose(out, (0, 3, 1, 2))


# ----------------------------------------------------------------------------
# Parameter preparation (BN folding + W-banded weight construction)
# ----------------------------------------------------------------------------
def _fold_bn(p):
    scale = p["gamma"] * lax.rsqrt(p["var"] + EPS)
    shift = p["beta"] - p["mean"] * scale
    return scale, shift


def _band_3x3(w_hwio, scale, W):
    """(3,3,Cin,Cout) HWIO kernel -> per-H-tap W-banded matrices.

    A[di] has shape (W*Cin, W*Cout) with A[di][wp*Cin+c, w*Cout+o] =
    K[di, wp-w+1, c, o] when |wp-w| <= 1 (zero W halo baked in).
    asum[di] = sum over wp of the Cin-blocks (used for W-constant inputs).
    """
    kh, kw, cin, cout = w_hwio.shape
    kf = w_hwio * scale[None, None, None, :]               # fold BN scale
    dj = jnp.arange(kw)[:, None, None]
    wp = jnp.arange(W)[None, :, None]
    wo = jnp.arange(W)[None, None, :]
    band = (wp == wo + dj - (kw // 2)).astype(kf.dtype)     # (kw, W, W)
    a5 = jnp.einsum("djco,jpw->dpcwo", kf, band)            # (kh, W, cin, W, cout)
    a = a5.reshape(kh, W * cin, W * cout)
    asum = a5.sum(axis=1).reshape(kh, cin, W * cout)
    return a, asum


def prepare_params(raw, W):
    prep = {}
    # 3x3 convs on a spatial input: K-concatenate the H taps -> single matmul.
    for src, dst in [("p1_conv1", "p1"), ("p2_conv1", "p2"), ("conv2", "c2")]:
        scale, shift = _fold_bn(raw[src])
        a, _ = _band_3x3(raw[src]["w"], scale, W)            # (3, W*cin, W*cout)
        kh, wcin, wcout = a.shape
        prep["A_" + dst] = a.reshape(kh * wcin, wcout)       # [A0; A1; A2]
        cout = raw[src]["w"].shape[-1]
        prep["b_" + dst] = jnp.tile(shift, W).reshape(1, W * cout)

    # p_conv1 (on the never-materialized pool sum): N-concatenate the taps.
    scale, shift = _fold_bn(raw["p_conv1"])
    a, asum = _band_3x3(raw["p_conv1"]["w"], scale, W)       # (3, W*128, W*dim), (3, 128, W*dim)
    prep["A_p"] = jnp.concatenate([a[0], a[1], a[2]], axis=1)        # (W*128, 3*W*dim)
    prep["Asum_p"] = jnp.concatenate([asum[0], asum[1], asum[2]], axis=1)  # (128, 3*W*dim)
    cout = raw["p_conv1"]["w"].shape[-1]
    prep["b_p"] = jnp.tile(shift, W).reshape(1, W * cout)

    # conv1 (1x1): block-diagonal matrix in the flattened layout
    scale, shift = _fold_bn(raw["conv1"])
    wc = raw["conv1"]["w"][0, 0] * scale[None, :]            # (dim, dim)
    eye = jnp.eye(W, dtype=wc.dtype)
    cin, cout = wc.shape
    prep["A_c1"] = jnp.einsum("co,pw->pcwo", wc, eye).reshape(W * cin, W * cout)
    prep["b_c1"] = jnp.tile(shift, W).reshape(1, W * cout)
    return prep


# ----------------------------------------------------------------------------
# Deterministic synthetic parameters (inference-mode BN stats)
# ----------------------------------------------------------------------------
def _conv_bn_params(key, ksize, cin, cout):
    k1, k2, k3, k4, k5 = jax.random.split(key, 5)
    fan_in = ksize * ksize * cin
    return {
        "w": jax.random.normal(k1, (ksize, ksize, cin, cout), jnp.float32)
             / jnp.sqrt(fan_in),
        "gamma": 1.0 + 0.1 * jax.random.normal(k2, (cout,), jnp.float32),
        "beta": 0.1 * jax.random.normal(k3, (cout,), jnp.float32),
        "mean": 0.1 * jax.random.normal(k4, (cout,), jnp.float32),
        "var": jax.random.uniform(k5, (cout,), jnp.float32,
                                  minval=0.5, maxval=1.5),
    }


def init_raw_params(key, dim, mid=128):
    k1, k2, k3, k4, k5 = jax.random.split(key, 5)
    return {
        "p1_conv1": _conv_bn_params(k1, 3, dim, mid),
        "p2_conv1": _conv_bn_params(k2, 3, dim, mid),
        "p_conv1": _conv_bn_params(k3, 3, mid, dim),
        "conv1": _conv_bn_params(k4, 1, dim, dim),
        "conv2": _conv_bn_params(k5, 3, dim, dim),
    }


# ----------------------------------------------------------------------------
# Pure-JAX reference (real convs, real directional cummax corner pools)
# ----------------------------------------------------------------------------
def _bn(x, p):
    scale = p["gamma"] * lax.rsqrt(p["var"] + EPS)
    shift = p["beta"] - p["mean"] * scale
    return x * scale + shift


def _conv(x, w):
    return lax.conv_general_dilated(
        x, w, (1, 1), "SAME", dimension_numbers=("NHWC", "HWIO", "NHWC"))


def reference_forward(x_nchw, raw):
    x = jnp.transpose(x_nchw, (0, 2, 3, 1))
    p1 = jax.nn.relu(_bn(_conv(x, raw["p1_conv1"]["w"]), raw["p1_conv1"]))
    pool1 = lax.cummax(lax.cummax(p1, axis=1, reverse=True), axis=1)  # Bottom(Top(.))
    p2 = jax.nn.relu(_bn(_conv(x, raw["p2_conv1"]["w"]), raw["p2_conv1"]))
    pool2 = lax.cummax(lax.cummax(p2, axis=2, reverse=True), axis=2)  # Right(Left(.))
    pb = _bn(_conv(pool1 + pool2, raw["p_conv1"]["w"]), raw["p_conv1"])
    c1 = _bn(_conv(x, raw["conv1"]["w"]), raw["conv1"])
    r = jax.nn.relu(pb + c1)
    out = jax.nn.relu(_bn(_conv(r, raw["conv2"]["w"]), raw["conv2"]))
    return jnp.transpose(out, (0, 3, 1, 2))


# ----------------------------------------------------------------------------
if __name__ == "__main__":
    B, DIM, H, W = 2, 4, 16, 16
    kx, kp = jax.random.split(jax.random.PRNGKey(0))
    x = jax.random.normal(kx, (B, DIM, H, W), jnp.float32)   # NCHW like PyTorch
    raw = init_raw_params(kp, DIM)
    prep = prepare_params(raw, W)

    fwd = jax.jit(pool_cross_forward)
    out = jax.block_until_ready(fwd(x, prep))
    assert out.shape == (B, DIM, H, W), out.shape

    ref = reference_forward(x, raw)
    err = float(jnp.max(jnp.abs(out - ref)))
    if not bool(jnp.allclose(out, ref, atol=1e-3, rtol=1e-3)):
        raise AssertionError(f"mismatch vs reference, max abs err = {err}")

    print("KERNEL_OK")
</pallas_src>

<mosaic_0001>
module attributes {stable_mosaic.version = 11 : i64} {
  func.func @_fused_kernel(%arg0: i32, %arg1: memref<1x16x64xf32, #tpu.memory_space<vmem>>, %arg2: memref<192x2048xf32, #tpu.memory_space<vmem>>, %arg3: memref<1x2048xf32, #tpu.memory_space<vmem>>, %arg4: memref<192x2048xf32, #tpu.memory_space<vmem>>, %arg5: memref<1x2048xf32, #tpu.memory_space<vmem>>, %arg6: memref<2048x192xf32, #tpu.memory_space<vmem>>, %arg7: memref<128x192xf32, #tpu.memory_space<vmem>>, %arg8: memref<1x64xf32, #tpu.memory_space<vmem>>, %arg9: memref<64x64xf32, #tpu.memory_space<vmem>>, %arg10: memref<1x64xf32, #tpu.memory_space<vmem>>, %arg11: memref<192x64xf32, #tpu.memory_space<vmem>>, %arg12: memref<1x64xf32, #tpu.memory_space<vmem>>, %arg13: memref<1x16x64xf32, #tpu.memory_space<vmem>>) attributes {dimension_semantics = [#tpu.dimension_semantics<parallel>], iteration_bounds = array<i64: 2>, scalar_prefetch = 0 : i64, scratch_operands = 0 : i64, tpu.core_type = #tpu.core_type<tc>, window_params = [{transform_indices = @transform_0, window_bounds = array<i64: 1, 16, 64>}, {pipeline_mode = #tpu.pipeline_mode<synchronous>, transform_indices = @transform_1, window_bounds = array<i64: 192, 2048>}, {pipeline_mode = #tpu.pipeline_mode<synchronous>, transform_indices = @transform_2, window_bounds = array<i64: 1, 2048>}, {pipeline_mode = #tpu.pipeline_mode<synchronous>, transform_indices = @transform_3, window_bounds = array<i64: 192, 2048>}, {pipeline_mode = #tpu.pipeline_mode<synchronous>, transform_indices = @transform_4, window_bounds = array<i64: 1, 2048>}, {pipeline_mode = #tpu.pipeline_mode<synchronous>, transform_indices = @transform_5, window_bounds = array<i64: 2048, 192>}, {pipeline_mode = #tpu.pipeline_mode<synchronous>, transform_indices = @transform_6, window_bounds = array<i64: 128, 192>}, {pipeline_mode = #tpu.pipeline_mode<synchronous>, transform_indices = @transform_7, window_bounds = array<i64: 1, 64>}, {pipeline_mode = #tpu.pipeline_mode<synchronous>, transform_indices = @transform_8, window_bounds = array<i64: 64, 64>}, {pipeline_mode = #tpu.pipeline_mode<synchronous>, transform_indices = @transform_9, window_bounds = array<i64: 1, 64>}, {pipeline_mode = #tpu.pipeline_mode<synchronous>, transform_indices = @transform_10, window_bounds = array<i64: 192, 64>}, {pipeline_mode = #tpu.pipeline_mode<synchronous>, transform_indices = @transform_11, window_bounds = array<i64: 1, 64>}, {transform_indices = @transform_12, window_bounds = array<i64: 1, 16, 64>}]} {
    %0 = tpu.iota {dimensions = array<i32: 0>} : vector<16x16xi32>
    %1 = tpu.iota {dimensions = array<i32: 1>} : vector<16x16xi32>
    %c1_i32 = arith.constant 1 : i32
    %2 = vector.broadcast %c1_i32 : i32 to vector<16x16xi32>
    %3 = arith.subi %0, %2 : vector<16x16xi32>
    %4 = arith.cmpi eq, %1, %3 : vector<16x16xi32>
    %5 = arith.extui %4 : vector<16x16xi1> to vector<16x16xi32>
    %6 = arith.sitofp %5 : vector<16x16xi32> to vector<16x16xf32>
    %c1_i32_0 = arith.constant 1 : i32
    %7 = vector.broadcast %c1_i32_0 : i32 to vector<16x16xi32>
    %8 = arith.addi %0, %7 : vector<16x16xi32>
    %9 = arith.cmpi eq, %1, %8 : vector<16x16xi32>
    %10 = arith.extui %9 : vector<16x16xi1> to vector<16x16xi32>
    %11 = arith.sitofp %10 : vector<16x16xi32> to vector<16x16xf32>
    %c0 = arith.constant 0 : index
    %c0_1 = arith.constant 0 : index
    %c0_2 = arith.constant 0 : index
    %12 = vector.load %arg1[%c0, %c0_1, %c0_2] : memref<1x16x64xf32, #tpu.memory_space<vmem>>, vector<1x16x64xf32>
    %13 = vector.shape_cast %12 : vector<1x16x64xf32> to vector<16x64xf32>
    %cst = arith.constant dense<0.000000e+00> : vector<16x64xf32>
    %14 = tpu.matmul %6, %13, %cst {dimension_numbers = #tpu.dot_dimension_numbers<[1], [0], [0], [1], [0, 0, 1, 1], [], []>} : vector<16x16xf32>, vector<16x64xf32>, vector<16x64xf32> -> vector<16x64xf32>
    %cst_3 = arith.constant dense<0.000000e+00> : vector<16x64xf32>
    %15 = tpu.matmul %11, %13, %cst_3 {dimension_numbers = #tpu.dot_dimension_numbers<[1], [0], [0], [1], [0, 0, 1, 1], [], []>} : vector<16x16xf32>, vector<16x64xf32>, vector<16x64xf32> -> vector<16x64xf32>
    %16 = tpu.concatenate %14, %13, %15 in 1 : vector<16x64xf32>, vector<16x64xf32>, vector<16x64xf32> -> vector<16x192xf32>
    %c0_4 = arith.constant 0 : index
    %c0_5 = arith.constant 0 : index
    %17 = vector.load %arg2[%c0_4, %c0_5] : memref<192x2048xf32, #tpu.memory_space<vmem>>, vector<192x2048xf32>
    %cst_6 = arith.constant dense<0.000000e+00> : vector<16x2048xf32>
    %18 = tpu.matmul %16, %17, %cst_6 {dimension_numbers = #tpu.dot_dimension_numbers<[1], [0], [0], [1], [0, 0, 1, 1], [], []>} : vector<16x192xf32>, vector<192x2048xf32>, vector<16x2048xf32> -> vector<16x2048xf32>
    %c0_7 = arith.constant 0 : index
    %c0_8 = arith.constant 0 : index
    %19 = vector.load %arg3[%c0_7, %c0_8] : memref<1x2048xf32, #tpu.memory_space<vmem>>, vector<1x2048xf32>
    %20 = vector.broadcast %19 : vector<1x2048xf32> to vector<16x2048xf32>
    %21 = arith.addf %18, %20 : vector<16x2048xf32>
    %cst_9 = arith.constant 0.000000e+00 : f32
    %22 = vector.broadcast %cst_9 : f32 to vector<16x2048xf32>
    %23 = arith.maximumf %21, %22 : vector<16x2048xf32>
    %c0_10 = arith.constant 0 : index
    %c0_11 = arith.constant 0 : index
    %24 = vector.load %arg4[%c0_10, %c0_11] : memref<192x2048xf32, #tpu.memory_space<vmem>>, vector<192x2048xf32>
    %cst_12 = arith.constant dense<0.000000e+00> : vector<16x2048xf32>
    %25 = tpu.matmul %16, %24, %cst_12 {dimension_numbers = #tpu.dot_dimension_numbers<[1], [0], [0], [1], [0, 0, 1, 1], [], []>} : vector<16x192xf32>, vector<192x2048xf32>, vector<16x2048xf32> -> vector<16x2048xf32>
    %c0_13 = arith.constant 0 : index
    %c0_14 = arith.constant 0 : index
    %26 = vector.load %arg5[%c0_13, %c0_14] : memref<1x2048xf32, #tpu.memory_space<vmem>>, vector<1x2048xf32>
    %27 = vector.broadcast %26 : vector<1x2048xf32> to vector<16x2048xf32>
    %28 = arith.addf %25, %27 : vector<16x2048xf32>
    %cst_15 = arith.constant 0.000000e+00 : f32
    %29 = vector.broadcast %cst_15 : f32 to vector<16x2048xf32>
    %30 = arith.maximumf %28, %29 : vector<16x2048xf32>
    %cst_16 = arith.constant dense<0xFF800000> : vector<2048xf32>
    %31 = vector.multi_reduction <maximumf>, %23, %cst_16 [0] : vector<16x2048xf32> to vector<2048xf32>
    %32 = vector.shape_cast %31 : vector<2048xf32> to vector<1x2048xf32>
    %33 = vector.extract_strided_slice %30 {offsets = [0, 0], sizes = [16, 1024], strides = [1, 1]} : vector<16x2048xf32> to vector<16x1024xf32>
    %34 = vector.extract_strided_slice %30 {offsets = [0, 1024], sizes = [16, 1024], strides = [1, 1]} : vector<16x2048xf32> to vector<16x1024xf32>
    %35 = arith.maximumf %33, %34 : vector<16x1024xf32>
    %36 = vector.extract_strided_slice %35 {offsets = [0, 0], sizes = [16, 512], strides = [1, 1]} : vector<16x1024xf32> to vector<16x512xf32>
    %37 = vector.extract_strided_slice %35 {offsets = [0, 512], sizes = [16, 512], strides = [1, 1]} : vector<16x1024xf32> to vector<16x512xf32>
    %38 = arith.maximumf %36, %37 : vector<16x512xf32>
    %39 = vector.extract_strided_slice %38 {offsets = [0, 0], sizes = [16, 256], strides = [1, 1]} : vector<16x512xf32> to vector<16x256xf32>
    %40 = vector.extract_strided_slice %38 {offsets = [0, 256], sizes = [16, 256], strides = [1, 1]} : vector<16x512xf32> to vector<16x256xf32>
    %41 = arith.maximumf %39, %40 : vector<16x256xf32>
    %42 = vector.extract_strided_slice %41 {offsets = [0, 0], sizes = [16, 128], strides = [1, 1]} : vector<16x256xf32> to vector<16x128xf32>
    %43 = vector.extract_strided_slice %41 {offsets = [0, 128], sizes = [16, 128], strides = [1, 1]} : vector<16x256xf32> to vector<16x128xf32>
    %44 = arith.maximumf %42, %43 : vector<16x128xf32>
    %c0_17 = arith.constant 0 : index
    %c0_18 = arith.constant 0 : index
    %45 = vector.load %arg6[%c0_17, %c0_18] : memref<2048x192xf32, #tpu.memory_space<vmem>>, vector<2048x192xf32>
    %cst_19 = arith.constant dense<0.000000e+00> : vector<1x192xf32>
    %46 = tpu.matmul %32, %45, %cst_19 {dimension_numbers = #tpu.dot_dimension_numbers<[1], [0], [0], [1], [0, 0, 1, 1], [], []>} : vector<1x2048xf32>, vector<2048x192xf32>, vector<1x192xf32> -> vector<1x192xf32>
    %c0_20 = arith.constant 0 : index
    %c0_21 = arith.constant 0 : index
    %47 = vector.load %arg7[%c0_20, %c0_21] : memref<128x192xf32, #tpu.memory_space<vmem>>, vector<128x192xf32>
    %cst_22 = arith.constant dense<0.000000e+00> : vector<16x192xf32>
    %48 = tpu.matmul %44, %47, %cst_22 {dimension_numbers = #tpu.dot_dimension_numbers<[1], [0], [0], [1], [0, 0, 1, 1], [], []>} : vector<16x128xf32>, vector<128x192xf32>, vector<16x192xf32> -> vector<16x192xf32>
    %49 = vector.broadcast %46 : vector<1x192xf32> to vector<16x192xf32>
    %50 = arith.addf %49, %48 : vector<16x192xf32>
    %51 = vector.extract_strided_slice %50 {offsets = [0, 64], sizes = [16, 64], strides = [1, 1]} : vector<16x192xf32> to vector<16x64xf32>
    %52 = vector.extract_strided_slice %50 {offsets = [0, 0], sizes = [16, 64], strides = [1, 1]} : vector<16x192xf32> to vector<16x64xf32>
    %cst_23 = arith.constant dense<0.000000e+00> : vector<16x64xf32>
    %53 = tpu.matmul %6, %52, %cst_23 {dimension_numbers = #tpu.dot_dimension_numbers<[1], [0], [0], [1], [0, 0, 1, 1], [], []>} : vector<16x16xf32>, vector<16x64xf32>, vector<16x64xf32> -> vector<16x64xf32>
    %54 = arith.addf %51, %53 : vector<16x64xf32>
    %55 = vector.extract_strided_slice %50 {offsets = [0, 128], sizes = [16, 64], strides = [1, 1]} : vector<16x192xf32> to vector<16x64xf32>
    %cst_24 = arith.constant dense<0.000000e+00> : vector<16x64xf32>
    %56 = tpu.matmul %11, %55, %cst_24 {dimension_numbers = #tpu.dot_dimension_numbers<[1], [0], [0], [1], [0, 0, 1, 1], [], []>} : vector<16x16xf32>, vector<16x64xf32>, vector<16x64xf32> -> vector<16x64xf32>
    %57 = arith.addf %54, %56 : vector<16x64xf32>
    %c0_25 = arith.constant 0 : index
    %c0_26 = arith.constant 0 : index
    %58 = vector.load %arg8[%c0_25, %c0_26] : memref<1x64xf32, #tpu.memory_space<vmem>>, vector<1x64xf32>
    %59 = vector.broadcast %58 : vector<1x64xf32> to vector<16x64xf32>
    %60 = arith.addf %57, %59 : vector<16x64xf32>
    %c0_27 = arith.constant 0 : index
    %c0_28 = arith.constant 0 : index
    %61 = vector.load %arg9[%c0_27, %c0_28] : memref<64x64xf32, #tpu.memory_space<vmem>>, vector<64x64xf32>
    %cst_29 = arith.constant dense<0.000000e+00> : vector<16x64xf32>
    %62 = tpu.matmul %13, %61, %cst_29 {dimension_numbers = #tpu.dot_dimension_numbers<[1], [0], [0], [1], [0, 0, 1, 1], [], []>} : vector<16x64xf32>, vector<64x64xf32>, vector<16x64xf32> -> vector<16x64xf32>
    %c0_30 = arith.constant 0 : index
    %c0_31 = arith.constant 0 : index
    %63 = vector.load %arg10[%c0_30, %c0_31] : memref<1x64xf32, #tpu.memory_space<vmem>>, vector<1x64xf32>
    %64 = vector.broadcast %63 : vector<1x64xf32> to vector<16x64xf32>
    %65 = arith.addf %62, %64 : vector<16x64xf32>
    %66 = arith.addf %60, %65 : vector<16x64xf32>
    %cst_32 = arith.constant 0.000000e+00 : f32
    %67 = vector.broadcast %cst_32 : f32 to vector<16x64xf32>
    %68 = arith.maximumf %66, %67 : vector<16x64xf32>
    %cst_33 = arith.constant dense<0.000000e+00> : vector<16x64xf32>
    %69 = tpu.matmul %6, %68, %cst_33 {dimension_numbers = #tpu.dot_dimension_numbers<[1], [0], [0], [1], [0, 0, 1, 1], [], []>} : vector<16x16xf32>, vector<16x64xf32>, vector<16x64xf32> -> vector<16x64xf32>
    %cst_34 = arith.constant dense<0.000000e+00> : vector<16x64xf32>
    %70 = tpu.matmul %11, %68, %cst_34 {dimension_numbers = #tpu.dot_dimension_numbers<[1], [0], [0], [1], [0, 0, 1, 1], [], []>} : vector<16x16xf32>, vector<16x64xf32>, vector<16x64xf32> -> vector<16x64xf32>
    %71 = tpu.concatenate %69, %68, %70 in 1 : vector<16x64xf32>, vector<16x64xf32>, vector<16x64xf32> -> vector<16x192xf32>
    %c0_35 = arith.constant 0 : index
    %c0_36 = arith.constant 0 : index
    %72 = vector.load %arg11[%c0_35, %c0_36] : memref<192x64xf32, #tpu.memory_space<vmem>>, vector<192x64xf32>
    %cst_37 = arith.constant dense<0.000000e+00> : vector<16x64xf32>
    %73 = tpu.matmul %71, %72, %cst_37 {dimension_numbers = #tpu.dot_dimension_numbers<[1], [0], [0], [1], [0, 0, 1, 1], [], []>} : vector<16x192xf32>, vector<192x64xf32>, vector<16x64xf32> -> vector<16x64xf32>
    %c0_38 = arith.constant 0 : index
    %c0_39 = arith.constant 0 : index
    %74 = vector.load %arg12[%c0_38, %c0_39] : memref<1x64xf32, #tpu.memory_space<vmem>>, vector<1x64xf32>
    %75 = vector.broadcast %74 : vector<1x64xf32> to vector<16x64xf32>
    %76 = arith.addf %73, %75 : vector<16x64xf32>
    %cst_40 = arith.constant 0.000000e+00 : f32
    %77 = vector.broadcast %cst_40 : f32 to vector<16x64xf32>
    %78 = arith.maximumf %76, %77 : vector<16x64xf32>
    %c0_41 = arith.constant 0 : index
    %c0_42 = arith.constant 0 : index
    %c0_43 = arith.constant 0 : index
    %79 = vector.load %arg13[%c0_41, %c0_42, %c0_43] : memref<1x16x64xf32, #tpu.memory_space<vmem>>, vector<1x16x64xf32>
    %80 = vector.shape_cast %79 : vector<1x16x64xf32> to vector<16x64xf32>
    %81 = vector.shape_cast %78 : vector<16x64xf32> to vector<1x16x64xf32>
    tpu.vector_store %arg13[%c0_41, %c0_42, %c0_43], %81 {strides = array<i32>} : memref<1x16x64xf32, #tpu.memory_space<vmem>>, vector<1x16x64xf32>,
    return
  }
  func.func @transform_0(%arg0: i32) -> (i32, i32, i32) {
    %c0_i32 = arith.constant 0 : i32
    %c0_i32_0 = arith.constant 0 : i32
    %c0_i32_1 = arith.constant 0 : i32
    return %arg0, %c0_i32, %c0_i32_0 : i32, i32, i32
  }
  func.func @transform_1(%arg0: i32) -> (i32, i32) {
    %c0_i32 = arith.constant 0 : i32
    %c0_i32_0 = arith.constant 0 : i32
    %c0_i32_1 = arith.constant 0 : i32
    return %c0_i32, %c0_i32_0 : i32, i32
  }
  func.func @transform_2(%arg0: i32) -> (i32, i32) {
    %c0_i32 = arith.constant 0 : i32
    %c0_i32_0 = arith.constant 0 : i32
    %c0_i32_1 = arith.constant 0 : i32
    return %c0_i32, %c0_i32_0 : i32, i32
  }
  func.func @transform_3(%arg0: i32) -> (i32, i32) {
    %c0_i32 = arith.constant 0 : i32
    %c0_i32_0 = arith.constant 0 : i32
    %c0_i32_1 = arith.constant 0 : i32
    return %c0_i32, %c0_i32_0 : i32, i32
  }
  func.func @transform_4(%arg0: i32) -> (i32, i32) {
    %c0_i32 = arith.constant 0 : i32
    %c0_i32_0 = arith.constant 0 : i32
    %c0_i32_1 = arith.constant 0 : i32
    return %c0_i32, %c0_i32_0 : i32, i32
  }
  func.func @transform_5(%arg0: i32) -> (i32, i32) {
    %c0_i32 = arith.constant 0 : i32
    %c0_i32_0 = arith.constant 0 : i32
    %c0_i32_1 = arith.constant 0 : i32
    return %c0_i32, %c0_i32_0 : i32, i32
  }
  func.func @transform_6(%arg0: i32) -> (i32, i32) {
    %c0_i32 = arith.constant 0 : i32
    %c0_i32_0 = arith.constant 0 : i32
    %c0_i32_1 = arith.constant 0 : i32
    return %c0_i32, %c0_i32_0 : i32, i32
  }
  func.func @transform_7(%arg0: i32) -> (i32, i32) {
    %c0_i32 = arith.constant 0 : i32
    %c0_i32_0 = arith.constant 0 : i32
    %c0_i32_1 = arith.constant 0 : i32
    return %c0_i32, %c0_i32_0 : i32, i32
  }
  func.func @transform_8(%arg0: i32) -> (i32, i32) {
    %c0_i32 = arith.constant 0 : i32
    %c0_i32_0 = arith.constant 0 : i32
    %c0_i32_1 = arith.constant 0 : i32
    return %c0_i32, %c0_i32_0 : i32, i32
  }
  func.func @transform_9(%arg0: i32) -> (i32, i32) {
    %c0_i32 = arith.constant 0 : i32
    %c0_i32_0 = arith.constant 0 : i32
    %c0_i32_1 = arith.constant 0 : i32
    return %c0_i32, %c0_i32_0 : i32, i32
  }
  func.func @transform_10(%arg0: i32) -> (i32, i32) {
    %c0_i32 = arith.constant 0 : i32
    %c0_i32_0 = arith.constant 0 : i32
    %c0_i32_1 = arith.constant 0 : i32
    return %c0_i32, %c0_i32_0 : i32, i32
  }
  func.func @transform_11(%arg0: i32) -> (i32, i32) {
    %c0_i32 = arith.constant 0 : i32
    %c0_i32_0 = arith.constant 0 : i32
    %c0_i32_1 = arith.constant 0 : i32
    return %c0_i32, %c0_i32_0 : i32, i32
  }
  func.func @transform_12(%arg0: i32) -> (i32, i32, i32) {
    %c0_i32 = arith.constant 0 : i32
    %c0_i32_0 = arith.constant 0 : i32
    %c0_i32_1 = arith.constant 0 : i32
    return %arg0, %c0_i32, %c0_i32_0 : i32, i32, i32
  }
}

</mosaic_0001>

<llo_original>
// kernel: pool_cross_forward.1
$region0: #{pool_cross_forward.1}
  #allocation0 [shape = 'u32[]', space=smem, size = 0x4, offset = 0x4, fixed_abs, tag = 'smem constant byte address 0x4 - core index']
  #allocation1 [shape = 'u32[72,128]{1,0:T(1,128)}', space=vmem, size = 0x9000, scoped, tag = 'internal scratch']
  %s0 = inlined_call_operand.vmem [shape: f32[2,16,64], index: 0, kind: input, shape index: {}]
  %s1 = inlined_call_operand.vmem [shape: f32[192,2048], index: 1, kind: input, shape index: {}]
  %s2 = inlined_call_operand.vmem [shape: f32[1,2048], index: 2, kind: input, shape index: {}]
  %s3 = inlined_call_operand.vmem [shape: f32[192,2048], index: 3, kind: input, shape index: {}]
  %s4 = inlined_call_operand.vmem [shape: f32[1,2048], index: 4, kind: input, shape index: {}]
  %s5 = inlined_call_operand.vmem [shape: f32[2048,192], index: 5, kind: input, shape index: {}]
  %s6 = inlined_call_operand.vmem [shape: f32[128,192], index: 6, kind: input, shape index: {}]
  %s7 = inlined_call_operand.vmem [shape: f32[1,64], index: 7, kind: input, shape index: {}]
  %s8 = inlined_call_operand.vmem [shape: f32[64,64], index: 8, kind: input, shape index: {}]
  %s9 = inlined_call_operand.vmem [shape: f32[1,64], index: 9, kind: input, shape index: {}]
  %s10 = inlined_call_operand.vmem [shape: f32[192,64], index: 10, kind: input, shape index: {}]
  %s11 = inlined_call_operand.vmem [shape: f32[1,64], index: 11, kind: input, shape index: {}]
  %s12 = inlined_call_operand.vmem [shape: f32[2,16,64], index: 12, kind: output, shape index: {}]
  %s13 = sld [smem:[#allocation0]]
  $region81: #{pool_cross_forward.1} parent=0
    _
  %s15 = ssub.s32 1, %s13
  %s16 = scalar_select 0, %s15, %s13
  loop: start=0, step=1, limit=4
  $region2: #{pool_cross_forward.1} parent=0 // loop_pre_header
    _
  $region3: #{pool_cross_forward.1} parent=0 // loop_header
    %s18 = sphi 0, %s22
    %p19 = scmp.ge.s32.totalorder %s18, 4
    %s28 = sphi 0, %s30
    %s31 = sphi 0, %s28
    %s32 = sphi 0, %s31
    %s48 = sphi 0, %s32
    %s52 = sphi 0, %s52
    %s54 = sphi 0, %s52
    %s55 = sphi 0, %s54
    %s69 = sphi 0, %s55
    %s73 = sphi 0, %s73
    %s75 = sphi 0, %s73
    %s76 = sphi 0, %s75
    %s90 = sphi 0, %s76
    %s94 = sphi 0, %s94
    %s96 = sphi 0, %s94
    %s97 = sphi 0, %s96
    %s111 = sphi 0, %s97
    %s115 = sphi 0, %s115
    %s117 = sphi 0, %s115
    %s118 = sphi 0, %s117
    %s132 = sphi 0, %s118
    %s136 = sphi 0, %s136
    %s138 = sphi 0, %s136
    %s139 = sphi 0, %s138
    %s153 = sphi 0, %s139
    %s157 = sphi 0, %s157
    %s159 = sphi 0, %s157
    %s160 = sphi 0, %s159
    %s174 = sphi 0, %s160
    %s178 = sphi 0, %s178
    %s180 = sphi 0, %s178
    %s181 = sphi 0, %s180
    %s195 = sphi 0, %s181
    %s199 = sphi 0, %s199
    %s201 = sphi 0, %s199
    %s202 = sphi 0, %s201
    %s216 = sphi 0, %s202
    %s220 = sphi 0, %s220
    %s222 = sphi 0, %s220
    %s223 = sphi 0, %s222
    %s237 = sphi 0, %s223
    %s241 = sphi 0, %s241
    %s243 = sphi 0, %s241
    %s244 = sphi 0, %s243
    %s258 = sphi 0, %s244
    %s262 = sphi 0, %s262
    %s264 = sphi 0, %s262
    %s265 = sphi 0, %s264
    %s279 = sphi 0, %s265
    %s285 = sphi 0, %s287
    %s288 = sphi 0, %s285
    %s289 = sphi 0, %s288
    %s305 = sphi 0, %s289
  $region4: #{pool_cross_forward.1} parent=0 // loop_header_branch
    %21 = sbr.rel (%p19) target = $region8
  $region5: #{pool_cross_forward.1} parent=0 // loop_body
    %s23 = ssub.s32 %s18, 1
    %s24 = ssub.s32 %s18, 2
    %s25 = sadd.s32 %s18, 1
    %s26 = ssub.s32 %s18, %s25
    %p27 = scmp.eq.s32.totalorder %s26, 0
    %s29 = sadd.s32 %s28, 1
    %s30 = scalar_select %p27, %s28, %s29
    %p33 = pneg %p27
    %p34 = scmp.eq.s32.totalorder %s18, 1
    %p35 = por %p33, %p34
    %p36 = scmp.ne.s32.totalorder %s28, %s31
    %p37 = scmp.eq.s32.totalorder %s18, 0
    %p38 = por %p36, %p37
    %p39 = scmp.ne.s32.totalorder %s28, %s31
    %p40 = scmp.eq.s32.totalorder %s23, 1
    %p41 = por %p39, %p40
    %p42 = scmp.ne.s32.totalorder %s31, %s32
    %p43 = scmp.eq.s32.totalorder %s23, 0
    %p44 = por %p42, %p43
    %p45 = scmp.ne.s32.totalorder %s31, %s32
    %p46 = scmp.eq.s32.totalorder %s24, 1
    %p47 = por %p45, %p46
    %p49 = scmp.ne.s32.totalorder %s32, %s48
    %p50 = scmp.eq.s32.totalorder %s24, 0
    %p51 = por %p49, %p50
    %s53 = sadd.s32 %s52, 1
    %p56 = scmp.eq.s32.totalorder %s18, 1
    %p57 = scmp.ne.s32.totalorder %s52, %s54
    %p58 = scmp.eq.s32.totalorder %s18, 0
    %p59 = por %p57, %p58
    %p60 = scmp.ne.s32.totalorder %s52, %s54
    %p61 = scmp.eq.s32.totalorder %s23, 1
    %p62 = por %p60, %p61
    %p63 = scmp.ne.s32.totalorder %s54, %s55
    %p64 = scmp.eq.s32.totalorder %s23, 0
    %p65 = por %p63, %p64
    %p66 = scmp.ne.s32.totalorder %s54, %s55
    %p67 = scmp.eq.s32.totalorder %s24, 1
    %p68 = por %p66, %p67
    %p70 = scmp.ne.s32.totalorder %s55, %s69
    %p71 = scmp.eq.s32.totalorder %s24, 0
    %p72 = por %p70, %p71
    %s74 = sadd.s32 %s73, 1
    %p77 = scmp.eq.s32.totalorder %s18, 1
    %p78 = scmp.ne.s32.totalorder %s73, %s75
    %p79 = scmp.eq.s32.totalorder %s18, 0
    %p80 = por %p78, %p79
    %p81 = scmp.ne.s32.totalorder %s73, %s75
    %p82 = scmp.eq.s32.totalorder %s23, 1
    %p83 = por %p81, %p82
    %p84 = scmp.ne.s32.totalorder %s75, %s76
    %p85 = scmp.eq.s32.totalorder %s23, 0
    %p86 = por %p84, %p85
    %p87 = scmp.ne.s32.totalorder %s75, %s76
    %p88 = scmp.eq.s32.totalorder %s24, 1
    %p89 = por %p87, %p88
    %p91 = scmp.ne.s32.totalorder %s76, %s90
    %p92 = scmp.eq.s32.totalorder %s24, 0
    %p93 = por %p91, %p92
    %s95 = sadd.s32 %s94, 1
    %p98 = scmp.eq.s32.totalorder %s18, 1
    %p99 = scmp.ne.s32.totalorder %s94, %s96
    %p100 = scmp.eq.s32.totalorder %s18, 0
    %p101 = por %p99, %p100
    %p102 = scmp.ne.s32.totalorder %s94, %s96
    %p103 = scmp.eq.s32.totalorder %s23, 1
    %p104 = por %p102, %p103
    %p105 = scmp.ne.s32.totalorder %s96, %s97
    %p106 = scmp.eq.s32.totalorder %s23, 0
    %p107 = por %p105, %p106
    %p108 = scmp.ne.s32.totalorder %s96, %s97
    %p109 = scmp.eq.s32.totalorder %s24, 1
    %p110 = por %p108, %p109
    %p112 = scmp.ne.s32.totalorder %s97, %s111
    %p113 = scmp.eq.s32.totalorder %s24, 0
    %p114 = por %p112, %p113
    %s116 = sadd.s32 %s115, 1
    %p119 = scmp.eq.s32.totalorder %s18, 1
    %p120 = scmp.ne.s32.totalorder %s115, %s117
    %p121 = scmp.eq.s32.totalorder %s18, 0
    %p122 = por %p120, %p121
    %p123 = scmp.ne.s32.totalorder %s115, %s117
    %p124 = scmp.eq.s32.totalorder %s23, 1
    %p125 = por %p123, %p124
    %p126 = scmp.ne.s32.totalorder %s117, %s118
    %p127 = scmp.eq.s32.totalorder %s23, 0
    %p128 = por %p126, %p127
    %p129 = scmp.ne.s32.totalorder %s117, %s118
    %p130 = scmp.eq.s32.totalorder %s24, 1
    %p131 = por %p129, %p130
    %p133 = scmp.ne.s32.totalorder %s118, %s132
    %p134 = scmp.eq.s32.totalorder %s24, 0
    %p135 = por %p133, %p134
    %s137 = sadd.s32 %s136, 1
    %p140 = scmp.eq.s32.totalorder %s18, 1
    %p141 = scmp.ne.s32.totalorder %s136, %s138
    %p142 = scmp.eq.s32.totalorder %s18, 0
    %p143 = por %p141, %p142
    %p144 = scmp.ne.s32.totalorder %s136, %s138
    %p145 = scmp.eq.s32.totalorder %s23, 1
    %p146 = por %p144, %p145
    %p147 = scmp.ne.s32.totalorder %s138, %s139
    %p148 = scmp.eq.s32.totalorder %s23, 0
    %p149 = por %p147, %p148
    %p150 = scmp.ne.s32.totalorder %s138, %s139
    %p151 = scmp.eq.s32.totalorder %s24, 1
    %p152 = por %p150, %p151
    %p154 = scmp.ne.s32.totalorder %s139, %s153
    %p155 = scmp.eq.s32.totalorder %s24, 0
    %p156 = por %p154, %p155
    %s158 = sadd.s32 %s157, 1
    %p161 = scmp.eq.s32.totalorder %s18, 1
    %p162 = scmp.ne.s32.totalorder %s157, %s159
    %p163 = scmp.eq.s32.totalorder %s18, 0
    %p164 = por %p162, %p163
    %p165 = scmp.ne.s32.totalorder %s157, %s159
    %p166 = scmp.eq.s32.totalorder %s23, 1
    %p167 = por %p165, %p166
    %p168 = scmp.ne.s32.totalorder %s159, %s160
    %p169 = scmp.eq.s32.totalorder %s23, 0
    %p170 = por %p168, %p169
    %p171 = scmp.ne.s32.totalorder %s159, %s160
    %p172 = scmp.eq.s32.totalorder %s24, 1
    %p173 = por %p171, %p172
    %p175 = scmp.ne.s32.totalorder %s160, %s174
    %p176 = scmp.eq.s32.totalorder %s24, 0
    %p177 = por %p175, %p176
    %s179 = sadd.s32 %s178, 1
    %p182 = scmp.eq.s32.totalorder %s18, 1
    %p183 = scmp.ne.s32.totalorder %s178, %s180
    %p184 = scmp.eq.s32.totalorder %s18, 0
    %p185 = por %p183, %p184
    %p186 = scmp.ne.s32.totalorder %s178, %s180
    %p187 = scmp.eq.s32.totalorder %s23, 1
    %p188 = por %p186, %p187
    %p189 = scmp.ne.s32.totalorder %s180, %s181
    %p190 = scmp.eq.s32.totalorder %s23, 0
    %p191 = por %p189, %p190
    %p192 = scmp.ne.s32.totalorder %s180, %s181
    %p193 = scmp.eq.s32.totalorder %s24, 1
    %p194 = por %p192, %p193
    %p196 = scmp.ne.s32.totalorder %s181, %s195
    %p197 = scmp.eq.s32.totalorder %s24, 0
    %p198 = por %p196, %p197
    %s200 = sadd.s32 %s199, 1
    %p203 = scmp.eq.s32.totalorder %s18, 1
    %p204 = scmp.ne.s32.totalorder %s199, %s201
    %p205 = scmp.eq.s32.totalorder %s18, 0
    %p206 = por %p204, %p205
    %p207 = scmp.ne.s32.totalorder %s199, %s201
    %p208 = scmp.eq.s32.totalorder %s23, 1
    %p209 = por %p207, %p208
    %p210 = scmp.ne.s32.totalorder %s201, %s202
    %p211 = scmp.eq.s32.totalorder %s23, 0
    %p212 = por %p210, %p211
    %p213 = scmp.ne.s32.totalorder %s201, %s202
    %p214 = scmp.eq.s32.totalorder %s24, 1
    %p215 = por %p213, %p214
    %p217 = scmp.ne.s32.totalorder %s202, %s216
    %p218 = scmp.eq.s32.totalorder %s24, 0
    %p219 = por %p217, %p218
    %s221 = sadd.s32 %s220, 1
    %p224 = scmp.eq.s32.totalorder %s18, 1
    %p225 = scmp.ne.s32.totalorder %s220, %s222
    %p226 = scmp.eq.s32.totalorder %s18, 0
    %p227 = por %p225, %p226
    %p228 = scmp.ne.s32.totalorder %s220, %s222
    %p229 = scmp.eq.s32.totalorder %s23, 1
    %p230 = por %p228, %p229
    %p231 = scmp.ne.s32.totalorder %s222, %s223
    %p232 = scmp.eq.s32.totalorder %s23, 0
    %p233 = por %p231, %p232
    %p234 = scmp.ne.s32.totalorder %s222, %s223
    %p235 = scmp.eq.s32.totalorder %s24, 1
    %p236 = por %p234, %p235
    %p238 = scmp.ne.s32.totalorder %s223, %s237
    %p239 = scmp.eq.s32.totalorder %s24, 0
    %p240 = por %p238, %p239
    %s242 = sadd.s32 %s241, 1
    %p245 = scmp.eq.s32.totalorder %s18, 1
    %p246 = scmp.ne.s32.totalorder %s241, %s243
    %p247 = scmp.eq.s32.totalorder %s18, 0
    %p248 = por %p246, %p247
    %p249 = scmp.ne.s32.totalorder %s241, %s243
    %p250 = scmp.eq.s32.totalorder %s23, 1
    %p251 = por %p249, %p250
    %p252 = scmp.ne.s32.totalorder %s243, %s244
    %p253 = scmp.eq.s32.totalorder %s23, 0
    %p254 = por %p252, %p253
    %p255 = scmp.ne.s32.totalorder %s243, %s244
    %p256 = scmp.eq.s32.totalorder %s24, 1
    %p257 = por %p255, %p256
    %p259 = scmp.ne.s32.totalorder %s244, %s258
    %p260 = scmp.eq.s32.totalorder %s24, 0
    %p261 = por %p259, %p260
    %s263 = sadd.s32 %s262, 1
    %p266 = scmp.eq.s32.totalorder %s18, 1
    %p267 = scmp.ne.s32.totalorder %s262, %s264
    %p268 = scmp.eq.s32.totalorder %s18, 0
    %p269 = por %p267, %p268
    %p270 = scmp.ne.s32.totalorder %s262, %s264
    %p271 = scmp.eq.s32.totalorder %s23, 1
    %p272 = por %p270, %p271
    %p273 = scmp.ne.s32.totalorder %s264, %s265
    %p274 = scmp.eq.s32.totalorder %s23, 0
    %p275 = por %p273, %p274
    %p276 = scmp.ne.s32.totalorder %s264, %s265
    %p277 = scmp.eq.s32.totalorder %s24, 1
    %p278 = por %p276, %p277
    %p280 = scmp.ne.s32.totalorder %s265, %s279
    %p281 = scmp.eq.s32.totalorder %s24, 0
    %p282 = por %p280, %p281
    %s283 = ssub.s32 %s18, %s25
    %p284 = scmp.eq.s32.totalorder %s283, 0
    %s286 = sadd.s32 %s285, 1
    %s287 = scalar_select %p284, %s285, %s286
    %p290 = pneg %p284
    %p291 = scmp.eq.s32.totalorder %s18, 1
    %p292 = por %p290, %p291
    %p293 = scmp.ne.s32.totalorder %s285, %s288
    %p294 = scmp.eq.s32.totalorder %s18, 0
    %p295 = por %p293, %p294
    %p296 = scmp.ne.s32.totalorder %s285, %s288
    %p297 = scmp.eq.s32.totalorder %s23, 1
    %p298 = por %p296, %p297
    %p299 = scmp.ne.s32.totalorder %s288, %s289
    %p300 = scmp.eq.s32.totalorder %s23, 0
    %p301 = por %p299, %p300
    %p302 = scmp.ne.s32.totalorder %s288, %s289
    %p303 = scmp.eq.s32.totalorder %s24, 1
    %p304 = por %p302, %p303
    %p306 = scmp.ne.s32.totalorder %s289, %s305
    %p307 = scmp.eq.s32.totalorder %s24, 0
    %p308 = por %p306, %p307
    %p309 = scmp.le.s32.totalorder 1, %s18
    %p310 = scmp.lt.s32.totalorder %s18, 3
    %p311 = pnand %p309, %p310
    %p312 = pneg %p311
    // Predicated region
    $region9: #{pool_cross_forward.1} parent=5 // pred_check
      _
    $region10: #{pool_cross_forward.1} parent=5 // pred_check_branch
      %314 = sbr.rel (%p311) target = $region12
    $region11: #{pool_cross_forward.1} parent=5 // pred_region
      %s315 = ssub.s32 %s18, 1
      // Predicated region
      $region13: #{pool_cross_forward.1} parent=11 // pred_check
        %p316 = pneg %p65
      $region14: #{pool_cross_forward.1} parent=11 // pred_check_branch
        %318 = sbr.rel (%p316) target = $region16
      $region15: #{pool_cross_forward.1} parent=11 // pred_region
        _
      $region16: #{pool_cross_forward.1} parent=11 // pred_fallthru
        _
      // Predicated region
      $region17: #{pool_cross_forward.1} parent=11 // pred_check
        %p319 = pneg %p86
      $region18: #{pool_cross_forward.1} parent=11 // pred_check_branch
        %321 = sbr.rel (%p319) target = $region20
      $region19: #{pool_cross_forward.1} parent=11 // pred_region
        _
      $region20: #{pool_cross_forward.1} parent=11 // pred_fallthru
        _
      // Predicated region
      $region21: #{pool_cross_forward.1} parent=11 // pred_check
        %p322 = pneg %p107
      $region22: #{pool_cross_forward.1} parent=11 // pred_check_branch
        %324 = sbr.rel (%p322) target = $region24
      $region23: #{pool_cross_forward.1} parent=11 // pred_region
        _
      $region24: #{pool_cross_forward.1} parent=11 // pred_fallthru
        _
      // Predicated region
      $region25: #{pool_cross_forward.1} parent=11 // pred_check
        %p325 = pneg %p128
      $region26: #{pool_cross_forward.1} parent=11 // pred_check_branch
        %327 = sbr.rel (%p325) target = $region28
      $region27: #{pool_cross_forward.1} parent=11 // pred_region
        _
      $region28: #{pool_cross_forward.1} parent=11 // pred_fallthru
        _
      // Predicated region
      $region29: #{pool_cross_forward.1} parent=11 // pred_check
        %p328 = pneg %p149
      $region30: #{pool_cross_forward.1} parent=11 // pred_check_branch
        %330 = sbr.rel (%p328) target = $region32
      $region31: #{pool_cross_forward.1} parent=11 // pred_region
        _
      $region32: #{pool_cross_forward.1} parent=11 // pred_fallthru
        _
      // Predicated region
      $region33: #{pool_cross_forward.1} parent=11 // pred_check
        %p331 = pneg %p170
      $region34: #{pool_cross_forward.1} parent=11 // pred_check_branch
        %333 = sbr.rel (%p331) target = $region36
      $region35: #{pool_cross_forward.1} parent=11 // pred_region
        _
      $region36: #{pool_cross_forward.1} parent=11 // pred_fallthru
        _
      // Predicated region
      $region37: #{pool_cross_forward.1} parent=11 // pred_check
        %p334 = pneg %p191
      $region38: #{pool_cross_forward.1} parent=11 // pred_check_branch
        %336 = sbr.rel (%p334) target = $region40
      $region39: #{pool_cross_forward.1} parent=11 // pred_region
        _
      $region40: #{pool_cross_forward.1} parent=11 // pred_fallthru
        _
      // Predicated region
      $region41: #{pool_cross_forward.1} parent=11 // pred_check
        %p337 = pneg %p212
      $region42: #{pool_cross_forward.1} parent=11 // pred_check_branch
        %339 = sbr.rel (%p337) target = $region44
      $region43: #{pool_cross_forward.1} parent=11 // pred_region
        _
      $region44: #{pool_cross_forward.1} parent=11 // pred_fallthru
        _
      // Predicated region
      $region45: #{pool_cross_forward.1} parent=11 // pred_check
        %p340 = pneg %p233
      $region46: #{pool_cross_forward.1} parent=11 // pred_check_branch
        %342 = sbr.rel (%p340) target = $region48
      $region47: #{pool_cross_forward.1} parent=11 // pred_region
        _
      $region48: #{pool_cross_forward.1} parent=11 // pred_fallthru
        _
      // Predicated region
      $region49: #{pool_cross_forward.1} parent=11 // pred_check
        %p343 = pneg %p254
      $region50: #{pool_cross_forward.1} parent=11 // pred_check_branch
        %345 = sbr.rel (%p343) target = $region52
      $region51: #{pool_cross_forward.1} parent=11 // pred_region
        _
      $region52: #{pool_cross_forward.1} parent=11 // pred_fallthru
        _
      // Predicated region
      $region53: #{pool_cross_forward.1} parent=11 // pred_check
        %p346 = pneg %p275
      $region54: #{pool_cross_forward.1} parent=11 // pred_check_branch
        %348 = sbr.rel (%p346) target = $region56
      $region55: #{pool_cross_forward.1} parent=11 // pred_region
        _
      $region56: #{pool_cross_forward.1} parent=11 // pred_fallthru
        _
    $region12: #{pool_cross_forward.1} parent=5 // pred_fallthru
      _
    %p349 = scmp.lt.s32.totalorder %s18, 2
    // Predicated region
    $region57: #{pool_cross_forward.1} parent=5 // pred_check
      %p350 = pneg %p349
    $region58: #{pool_cross_forward.1} parent=5 // pred_check_branch
      %352 = sbr.rel (%p350) target = $region60
    $region59: #{pool_cross_forward.1} parent=5 // pred_region
      // Predicated region
      $region61: #{pool_cross_forward.1} parent=59 // pred_check
        %p353 = pneg %p38
      $region62: #{pool_cross_forward.1} parent=59 // pred_check_branch
        %355 = sbr.rel (%p353) target = $region64
      $region63: #{pool_cross_forward.1} parent=59 // pred_region
        %p356 = scmp.lt.s32.totalorder %s18, 1
        %s357 = scalar_select %p356, %s18, 1
        %s358 = smul.addr %s357, 2
        %s359 = smul.addr %s358, 8
        %s360 = scalar_lea.vmem %s0, %s359
      $region64: #{pool_cross_forward.1} parent=59 // pred_fallthru
        _
    $region60: #{pool_cross_forward.1} parent=5 // pred_fallthru
      _
    %p361 = scmp.le.s32.totalorder 1, %s18
    %p362 = scmp.lt.s32.totalorder %s18, 3
    %p363 = pnand %p361, %p362
    %p364 = pneg %p363
    // Predicated region
    $region65: #{pool_cross_forward.1} parent=5 // pred_check
      _
    $region66: #{pool_cross_forward.1} parent=5 // pred_check_branch
      %366 = sbr.rel (%p363) target = $region68
    $region67: #{pool_cross_forward.1} parent=5 // pred_region
      %s367 = ssub.s32 %s18, 1
      %p368 = scmp.lt.s32.totalorder %s23, 1
      %s369 = scalar_select %p368, %s23, 1
      %s370 = smul.addr %s369, 2
      %s371 = smul.addr %s370, 8
      %s372 = scalar_lea.vmem %s0, %s371
      %p373 = pneg %p44
      %p374 = pneg %p41
      %p375 = pneg %p65
      %p376 = pneg %p62
      %p377 = pneg %p86
      %p378 = pneg %p83
      %p379 = pneg %p107
      %p380 = pneg %p104
      %p381 = pneg %p128
      %p382 = pneg %p125
      %p383 = pneg %p149
      %p384 = pneg %p146
      %p385 = pneg %p170
      %p386 = pneg %p167
      %p387 = pneg %p191
      %p388 = pneg %p188
      %p389 = pneg %p212
      %p390 = pneg %p209
      %p391 = pneg %p233
      %p392 = pneg %p230
      %p393 = pneg %p254
      %p394 = pneg %p251
      %p395 = pneg %p275
      %p396 = pneg %p272
      %p397 = pneg %p301
      %p398 = pneg %p298
      %p399 = scmp.lt.s32.totalorder %s23, 1
      %s400 = scalar_select %p399, %s23, 1
      %s401 = smul.addr %s400, 2
      %s402 = smul.addr %s401, 8
      %s403 = scalar_lea.vmem %s12, %s402
      %p404 = scmp.lt.s32.totalorder %s23, 1
      %s405 = scalar_select %p404, %s23, 1
      %s406 = smul.addr %s405, 2
      %s407 = smul.addr %s406, 8
      %s408 = scalar_lea.vmem %s0, %s407
      %p409 = scmp.lt.s32.totalorder %s23, 1
      %s410 = scalar_select %p409, %s23, 1
      %s411 = smul.addr %s410, 2
      %s412 = smul.addr %s411, 8
      %s413 = scalar_lea.vmem %s12, %s412
      %v414 = vlaneseq
      %v415 = vshrl.u32 %v414, 7
      %v416 = vadd.s32 %v415, 8
      %v417 = vlaneseq
      %v418 = vand.u32 %v417, 127
      %v419 = vsub.s32 %v415, 1
      %v420 = vsub.s32 %v416, 1
      %vm421 = vcmp.eq.s32.totalorder %v418, %v419
      %vm422 = vcmp.eq.s32.totalorder %v418, %v420
      %v423 = vsel %vm421, 1, 0
      %v424 = vsel %vm422, 1, 0
      %v425 = vcvt.s32.f32 %v423
      %v426 = vcvt.s32.f32 %v424
      %v427 = vadd.s32 %v415, 1
      %v428 = vadd.s32 %v416, 1
      %vm429 = vcmp.eq.s32.totalorder %v418, %v427
      %vm430 = vcmp.eq.s32.totalorder %v418, %v428
      %v431 = vsel %vm429, 1, 0
      %v432 = vsel %vm430, 1, 0
      %v433 = vcvt.s32.f32 %v431
      %v434 = vcvt.s32.f32 %v432
      %v435 = vld [vmem:[%s408] sm:$0xff]
      %v436 = vld [vmem:[%s408 + $0x8] sm:$0xff]
      %vm437 = vcmask 130048
      %v439 = vsel %vm437, %v425, 0
      %v442 = vsel %vm437, %v426, 0
      %444 = vmatpush.msra.mxu0 0.0
      %445 = vmatpush.msra.mxu0 0.0
      %446 = vmatpush.msra.mxu0 0.0
      %447 = vmatpush.msra.mxu0 0.0
      %448 = vmatpush.msra.mxu0 0.0
      %449 = vmatpush.msra.mxu0 0.0
      %450 = vmatpush.msra.mxu0 0.0
      %451 = vmatpush.msra.mxu0 0.0
      %452 = vmatpush.msra.mxu0 0.0
      %453 = vmatpush.msra.mxu0 0.0
      %454 = vmatpush.msra.mxu0 0.0
      %455 = vmatpush.msra.mxu0 0.0
      %456 = vmatpush.msra.mxu0 0.0
      %457 = vmatpush.msra.mxu0 0.0
      %458 = vmatpush.msra.mxu0 %v436
      %459 = vmatpush.msra.mxu0 %v435
      %460 = vmatmul.f32.gmra.mxu0 %v439
      %v461 = vpop.f32.mrf.mxu0
      %v462 = vadd.f32 0.0, %v461
      %463 = vmatmul.f32.gmra.mxu0 %v442
      %v464 = vpop.f32.mrf.mxu0
      %v465 = vadd.f32 0.0, %v464
      %466 = vdwg.mxu0
      %v468 = vsel %vm437, %v433, 0
      %v471 = vsel %vm437, %v434, 0
      %473 = vmatpush.msra.mxu0 0.0
      %474 = vmatpush.msra.mxu0 0.0
      %475 = vmatpush.msra.mxu0 0.0
      %476 = vmatpush.msra.mxu0 0.0
      %477 = vmatpush.msra.mxu0 0.0
      %478 = vmatpush.msra.mxu0 0.0
      %479 = vmatpush.msra.mxu0 0.0
      %480 = vmatpush.msra.mxu0 0.0
      %481 = vmatpush.msra.mxu0 0.0
      %482 = vmatpush.msra.mxu0 0.0
      %483 = vmatpush.msra.mxu0 0.0
      %484 = vmatpush.msra.mxu0 0.0
      %485 = vmatpush.msra.mxu0 0.0
      %486 = vmatpush.msra.mxu0 0.0
      %487 = vmatpush.msra.mxu0 %v436
      %488 = vmatpush.msra.mxu0 %v435
      %489 = vmatmul.f32.gmra.mxu0 %v468
      %v490 = vpop.f32.mrf.mxu0
      %v491 = vadd.f32 0.0, %v490
      %492 = vmatmul.f32.gmra.mxu0 %v471
      %v493 = vpop.f32.mrf.mxu0
      %v494 = vadd.f32 0.0, %v493
      %495 = vdwg.mxu0
      %498 = vrot.lane.b32.xlu0 %v435, 64
      %v499 = vpop.permute.xlu0 %498
      %500 = vrot.lane.b32.xlu0 %v436, 64
      %v501 = vpop.permute.xlu0 %500
      %vm504 = vcmask 523264
      %v505 = vsel %vm504, %v462, %v499
      %v506 = vsel %vm504, %v465, %v501
      %v507 = vld [vmem:[%s1] sm:$0xff]
      %v508 = vld [vmem:[%s1 + $0x8] sm:$0xff]
      %v509 = vld [vmem:[%s1 + $0x10] sm:$0xff]
      %v510 = vld [vmem:[%s1 + $0x18] sm:$0xff]
      %v511 = vld [vmem:[%s1 + $0x20] sm:$0xff]
      %v512 = vld [vmem:[%s1 + $0x28] sm:$0xff]
      %v513 = vld [vmem:[%s1 + $0x30] sm:$0xff]
      %v514 = vld [vmem:[%s1 + $0x38] sm:$0xff]
      %v515 = vld [vmem:[%s1 + $0x40] sm:$0xff]
      %v516 = vld [vmem:[%s1 + $0x48] sm:$0xff]
      %v517 = vld [vmem:[%s1 + $0x50] sm:$0xff]
      %v518 = vld [vmem:[%s1 + $0x58] sm:$0xff]
      %v519 = vld [vmem:[%s1 + $0x60] sm:$0xff]
      %v520 = vld [vmem:[%s1 + $0x68] sm:$0xff]
      %v521 = vld [vmem:[%s1 + $0x70] sm:$0xff]
      %v522 = vld [vmem:[%s1 + $0x78] sm:$0xff]
      %v523 = vld [vmem:[%s1 + $0x80] sm:$0xff]
      %v524 = vld [vmem:[%s1 + $0x88] sm:$0xff]
      %v525 = vld [vmem:[%s1 + $0x90] sm:$0xff]
      %v526 = vld [vmem:[%s1 + $0x98] sm:$0xff]
      %v527 = vld [vmem:[%s1 + $0xa0] sm:$0xff]
      %v528 = vld [vmem:[%s1 + $0xa8] sm:$0xff]
      %v529 = vld [vmem:[%s1 + $0xb0] sm:$0xff]
      %v530 = vld [vmem:[%s1 + $0xb8] sm:$0xff]
      %v531 = vld [vmem:[%s1 + $0xc0] sm:$0xff]
      %v532 = vld [vmem:[%s1 + $0xc8] sm:$0xff]
      %v533 = vld [vmem:[%s1 + $0xd0] sm:$0xff]
      %v534 = vld [vmem:[%s1 + $0xd8] sm:$0xff]
      %v535 = vld [vmem:[%s1 + $0xe0] sm:$0xff]
      %v536 = vld [vmem:[%s1 + $0xe8] sm:$0xff]
      %v537 = vld [vmem:[%s1 + $0xf0] sm:$0xff]
      %v538 = vld [vmem:[%s1 + $0xf8] sm:$0xff]
      %v539 = vld [vmem:[%s1 + $0x100] sm:$0xff]
      %v540 = vld [vmem:[%s1 + $0x108] sm:$0xff]
      %v541 = vld [vmem:[%s1 + $0x110] sm:$0xff]
      %v542 = vld [vmem:[%s1 + $0x118] sm:$0xff]
      %v543 = vld [vmem:[%s1 + $0x120] sm:$0xff]
      %v544 = vld [vmem:[%s1 + $0x128] sm:$0xff]
      %v545 = vld [vmem:[%s1 + $0x130] sm:$0xff]
      %v546 = vld [vmem:[%s1 + $0x138] sm:$0xff]
      %v547 = vld [vmem:[%s1 + $0x140] sm:$0xff]
      %v548 = vld [vmem:[%s1 + $0x148] sm:$0xff]
      %v549 = vld [vmem:[%s1 + $0x150] sm:$0xff]
      %v550 = vld [vmem:[%s1 + $0x158] sm:$0xff]
      %v551 = vld [vmem:[%s1 + $0x160] sm:$0xff]
      %v552 = vld [vmem:[%s1 + $0x168] sm:$0xff]
      %v553 = vld [vmem:[%s1 + $0x170] sm:$0xff]
      %v554 = vld [vmem:[%s1 + $0x178] sm:$0xff]
      %v555 = vld [vmem:[%s1 + $0x180] sm:$0xff]
      %v556 = vld [vmem:[%s1 + $0x188] sm:$0xff]
      %v557 = vld [vmem:[%s1 + $0x190] sm:$0xff]
      %v558 = vld [vmem:[%s1 + $0x198] sm:$0xff]
      %v559 = vld [vmem:[%s1 + $0x1a0] sm:$0xff]
      %v560 = vld [vmem:[%s1 + $0x1a8] sm:$0xff]
      %v561 = vld [vmem:[%s1 + $0x1b0] sm:$0xff]
      %v562 = vld [vmem:[%s1 + $0x1b8] sm:$0xff]
      %v563 = vld [vmem:[%s1 + $0x1c0] sm:$0xff]
      %v564 = vld [vmem:[%s1 + $0x1c8] sm:$0xff]
      %v565 = vld [vmem:[%s1 + $0x1d0] sm:$0xff]
      %v566 = vld [vmem:[%s1 + $0x1d8] sm:$0xff]
      %v567 = vld [vmem:[%s1 + $0x1e0] sm:$0xff]
      %v568 = vld [vmem:[%s1 + $0x1e8] sm:$0xff]
      %v569 = vld [vmem:[%s1 + $0x1f0] sm:$0xff]
      %v570 = vld [vmem:[%s1 + $0x1f8] sm:$0xff]
      %v571 = vld [vmem:[%s1 + $0x200] sm:$0xff]
      %v572 = vld [vmem:[%s1 + $0x208] sm:$0xff]
      %v573 = vld [vmem:[%s1 + $0x210] sm:$0xff]
      %v574 = vld [vmem:[%s1 + $0x218] sm:$0xff]
      %v575 = vld [vmem:[%s1 + $0x220] sm:$0xff]
      %v576 = vld [vmem:[%s1 + $0x228] sm:$0xff]
      %v577 = vld [vmem:[%s1 + $0x230] sm:$0xff]
      %v578 = vld [vmem:[%s1 + $0x238] sm:$0xff]
      %v579 = vld [vmem:[%s1 + $0x240] sm:$0xff]
      %v580 = vld [vmem:[%s1 + $0x248] sm:$0xff]
      %v581 = vld [vmem:[%s1 + $0x250] sm:$0xff]
      %v582 = vld [vmem:[%s1 + $0x258] sm:$0xff]
      %v583 = vld [vmem:[%s1 + $0x260] sm:$0xff]
      %v584 = vld [vmem:[%s1 + $0x268] sm:$0xff]
      %v585 = vld [vmem:[%s1 + $0x270] sm:$0xff]
      %v586 = vld [vmem:[%s1 + $0x278] sm:$0xff]
      %v587 = vld [vmem:[%s1 + $0x280] sm:$0xff]
      %v588 = vld [vmem:[%s1 + $0x288] sm:$0xff]
      %v589 = vld [vmem:[%s1 + $0x290] sm:$0xff]
      %v590 = vld [vmem:[%s1 + $0x298] sm:$0xff]
      %v591 = vld [vmem:[%s1 + $0x2a0] sm:$0xff]
      %v592 = vld [vmem:[%s1 + $0x2a8] sm:$0xff]
      %v593 = vld [vmem:[%s1 + $0x2b0] sm:$0xff]
      %v594 = vld [vmem:[%s1 + $0x2b8] sm:$0xff]
      %v595 = vld [vmem:[%s1 + $0x2c0] sm:$0xff]
      %v596 = vld [vmem:[%s1 + $0x2c8] sm:$0xff]
      %v597 = vld [vmem:[%s1 + $0x2d0] sm:$0xff]
      %v598 = vld [vmem:[%s1 + $0x2d8] sm:$0xff]
      %v599 = vld [vmem:[%s1 + $0x2e0] sm:$0xff]
      %v600 = vld [vmem:[%s1 + $0x2e8] sm:$0xff]
      %v601 = vld [vmem:[%s1 + $0x2f0] sm:$0xff]
      %v602 = vld [vmem:[%s1 + $0x2f8] sm:$0xff]
      %v603 = vld [vmem:[%s1 + $0x300] sm:$0xff]
      %v604 = vld [vmem:[%s1 + $0x308] sm:$0xff]
      %v605 = vld [vmem:[%s1 + $0x310] sm:$0xff]
      %v606 = vld [vmem:[%s1 + $0x318] sm:$0xff]
      %v607 = vld [vmem:[%s1 + $0x320] sm:$0xff]
      %v608 = vld [vmem:[%s1 + $0x328] sm:$0xff]
      %v609 = vld [vmem:[%s1 + $0x330] sm:$0xff]
      %v610 = vld [vmem:[%s1 + $0x338] sm:$0xff]
      %v611 = vld [vmem:[%s1 + $0x340] sm:$0xff]
      %v612 = vld [vmem:[%s1 + $0x348] sm:$0xff]
      %v613 = vld [vmem:[%s1 + $0x350] sm:$0xff]
      %v614 = vld [vmem:[%s1 + $0x358] sm:$0xff]
      %v615 = vld [vmem:[%s1 + $0x360] sm:$0xff]
      %v616 = vld [vmem:[%s1 + $0x368] sm:$0xff]
      %v617 = vld [vmem:[%s1 + $0x370] sm:$0xff]
      %v618 = vld [vmem:[%s1 + $0x378] sm:$0xff]
      %v619 = vld [vmem:[%s1 + $0x380] sm:$0xff]
      %v620 = vld [vmem:[%s1 + $0x388] sm:$0xff]
      %v621 = vld [vmem:[%s1 + $0x390] sm:$0xff]
      %v622 = vld [vmem:[%s1 + $0x398] sm:$0xff]
      %v623 = vld [vmem:[%s1 + $0x3a0] sm:$0xff]
      %v624 = vld [vmem:[%s1 + $0x3a8] sm:$0xff]
      %v625 = vld [vmem:[%s1 + $0x3b0] sm:$0xff]
      %v626 = vld [vmem:[%s1 + $0x3b8] sm:$0xff]
      %v627 = vld [vmem:[%s1 + $0x3c0] sm:$0xff]
      %v628 = vld [vmem:[%s1 + $0x3c8] sm:$0xff]
      %v629 = vld [vmem:[%s1 + $0x3d0] sm:$0xff]
      %v630 = vld [vmem:[%s1 + $0x3d8] sm:$0xff]
      %v631 = vld [vmem:[%s1 + $0x3e0] sm:$0xff]
      %v632 = vld [vmem:[%s1 + $0x3e8] sm:$0xff]
      %v633 = vld [vmem:[%s1 + $0x3f0] sm:$0xff]
      %v634 = vld [vmem:[%s1 + $0x3f8] sm:$0xff]
      %v635 = vld [vmem:[%s1 + $0x400] sm:$0xff]
      %v636 = vld [vmem:[%s1 + $0x408] sm:$0xff]
      %v637 = vld [vmem:[%s1 + $0x410] sm:$0xff]
      %v638 = vld [vmem:[%s1 + $0x418] sm:$0xff]
      %v639 = vld [vmem:[%s1 + $0x420] sm:$0xff]
      %v640 = vld [vmem:[%s1 + $0x428] sm:$0xff]
      %v641 = vld [vmem:[%s1 + $0x430] sm:$0xff]
      %v642 = vld [vmem:[%s1 + $0x438] sm:$0xff]
      %v643 = vld [vmem:[%s1 + $0x440] sm:$0xff]
      %v644 = vld [vmem:[%s1 + $0x448] sm:$0xff]
      %v645 = vld [vmem:[%s1 + $0x450] sm:$0xff]
      %v646 = vld [vmem:[%s1 + $0x458] sm:$0xff]
      %v647 = vld [vmem:[%s1 + $0x460] sm:$0xff]
      %v648 = vld [vmem:[%s1 + $0x468] sm:$0xff]
      %v649 = vld [vmem:[%s1 + $0x470] sm:$0xff]
      %v650 = vld [vmem:[%s1 + $0x478] sm:$0xff]
      %v651 = vld [vmem:[%s1 + $0x480] sm:$0xff]
      %v652 = vld [vmem:[%s1 + $0x488] sm:$0xff]
      %v653 = vld [vmem:[%s1 + $0x490] sm:$0xff]
      %v654 = vld [vmem:[%s1 + $0x498] sm:$0xff]
      %v655 = vld [vmem:[%s1 + $0x4a0] sm:$0xff]
      %v656 = vld [vmem:[%s1 + $0x4a8] sm:$0xff]
      %v657 = vld [vmem:[%s1 + $0x4b0] sm:$0xff]
      %v658 = vld [vmem:[%s1 + $0x4b8] sm:$0xff]
      %v659 = vld [vmem:[%s1 + $0x4c0] sm:$0xff]
      %v660 = vld [vmem:[%s1 + $0x4c8] sm:$0xff]
      %v661 = vld [vmem:[%s1 + $0x4d0] sm:$0xff]
      %v662 = vld [vmem:[%s1 + $0x4d8] sm:$0xff]
      %v663 = vld [vmem:[%s1 + $0x4e0] sm:$0xff]
      %v664 = vld [vmem:[%s1 + $0x4e8] sm:$0xff]
      %v665 = vld [vmem:[%s1 + $0x4f0] sm:$0xff]
      %v666 = vld [vmem:[%s1 + $0x4f8] sm:$0xff]
      %v667 = vld [vmem:[%s1 + $0x500] sm:$0xff]
      %v668 = vld [vmem:[%s1 + $0x508] sm:$0xff]
      %v669 = vld [vmem:[%s1 + $0x510] sm:$0xff]
      %v670 = vld [vmem:[%s1 + $0x518] sm:$0xff]
      %v671 = vld [vmem:[%s1 + $0x520] sm:$0xff]
      %v672 = vld [vmem:[%s1 + $0x528] sm:$0xff]
      %v673 = vld [vmem:[%s1 + $0x530] sm:$0xff]
      %v674 = vld [vmem:[%s1 + $0x538] sm:$0xff]
      %v675 = vld [vmem:[%s1 + $0x540] sm:$0xff]
      %v676 = vld [vmem:[%s1 + $0x548] sm:$0xff]
      %v677 = vld [vmem:[%s1 + $0x550] sm:$0xff]
      %v678 = vld [vmem:[%s1 + $0x558] sm:$0xff]
      %v679 = vld [vmem:[%s1 + $0x560] sm:$0xff]
      %v680 = vld [vmem:[%s1 + $0x568] sm:$0xff]
      %v681 = vld [vmem:[%s1 + $0x570] sm:$0xff]
      %v682 = vld [vmem:[%s1 + $0x578] sm:$0xff]
      %v683 = vld [vmem:[%s1 + $0x580] sm:$0xff]
      %v684 = vld [vmem:[%s1 + $0x588] sm:$0xff]
      %v685 = vld [vmem:[%s1 + $0x590] sm:$0xff]
      %v686 = vld [vmem:[%s1 + $0x598] sm:$0xff]
      %v687 = vld [vmem:[%s1 + $0x5a0] sm:$0xff]
      %v688 = vld [vmem:[%s1 + $0x5a8] sm:$0xff]
      %v689 = vld [vmem:[%s1 + $0x5b0] sm:$0xff]
      %v690 = vld [vmem:[%s1 + $0x5b8] sm:$0xff]
      %v691 = vld [vmem:[%s1 + $0x5c0] sm:$0xff]
      %v692 = vld [vmem:[%s1 + $0x5c8] sm:$0xff]
      %v693 = vld [vmem:[%s1 + $0x5d0] sm:$0xff]
      %v694 = vld [vmem:[%s1 + $0x5d8] sm:$0xff]
      %v695 = vld [vmem:[%s1 + $0x5e0] sm:$0xff]
      %v696 = vld [vmem:[%s1 + $0x5e8] sm:$0xff]
      %v697 = vld [vmem:[%s1 + $0x5f0] sm:$0xff]
      %v698 = vld [vmem:[%s1 + $0x5f8] sm:$0xff]
      %v699 = vld [vmem:[%s1 + $0x600] sm:$0xff]
      %v700 = vld [vmem:[%s1 + $0x608] sm:$0xff]
      %v701 = vld [vmem:[%s1 + $0x610] sm:$0xff]
      %v702 = vld [vmem:[%s1 + $0x618] sm:$0xff]
      %v703 = vld [vmem:[%s1 + $0x620] sm:$0xff]
      %v704 = vld [vmem:[%s1 + $0x628] sm:$0xff]
      %v705 = vld [vmem:[%s1 + $0x630] sm:$0xff]
      %v706 = vld [vmem:[%s1 + $0x638] sm:$0xff]
      %v707 = vld [vmem:[%s1 + $0x640] sm:$0xff]
      %v708 = vld [vmem:[%s1 + $0x648] sm:$0xff]
      %v709 = vld [vmem:[%s1 + $0x650] sm:$0xff]
      %v710 = vld [vmem:[%s1 + $0x658] sm:$0xff]
      %v711 = vld [vmem:[%s1 + $0x660] sm:$0xff]
      %v712 = vld [vmem:[%s1 + $0x668] sm:$0xff]
      %v713 = vld [vmem:[%s1 + $0x670] sm:$0xff]
      %v714 = vld [vmem:[%s1 + $0x678] sm:$0xff]
      %v715 = vld [vmem:[%s1 + $0x680] sm:$0xff]
      %v716 = vld [vmem:[%s1 + $0x688] sm:$0xff]
      %v717 = vld [vmem:[%s1 + $0x690] sm:$0xff]
      %v718 = vld [vmem:[%s1 + $0x698] sm:$0xff]
      %v719 = vld [vmem:[%s1 + $0x6a0] sm:$0xff]
      %v720 = vld [vmem:[%s1 + $0x6a8] sm:$0xff]
      %v721 = vld [vmem:[%s1 + $0x6b0] sm:$0xff]
      %v722 = vld [vmem:[%s1 + $0x6b8] sm:$0xff]
      %v723 = vld [vmem:[%s1 + $0x6c0] sm:$0xff]
      %v724 = vld [vmem:[%s1 + $0x6c8] sm:$0xff]
      %v725 = vld [vmem:[%s1 + $0x6d0] sm:$0xff]
      %v726 = vld [vmem:[%s1 + $0x6d8] sm:$0xff]
      %v727 = vld [vmem:[%s1 + $0x6e0] sm:$0xff]
      %v728 = vld [vmem:[%s1 + $0x6e8] sm:$0xff]
      %v729 = vld [vmem:[%s1 + $0x6f0] sm:$0xff]
      %v730 = vld [vmem:[%s1 + $0x6f8] sm:$0xff]
      %v731 = vld [vmem:[%s1 + $0x700] sm:$0xff]
      %v732 = vld [vmem:[%s1 + $0x708] sm:$0xff]
      %v733 = vld [vmem:[%s1 + $0x710] sm:$0xff]
      %v734 = vld [vmem:[%s1 + $0x718] sm:$0xff]
      %v735 = vld [vmem:[%s1 + $0x720] sm:$0xff]
      %v736 = vld [vmem:[%s1 + $0x728] sm:$0xff]
      %v737 = vld [vmem:[%s1 + $0x730] sm:$0xff]
      %v738 = vld [vmem:[%s1 + $0x738] sm:$0xff]
      %v739 = vld [vmem:[%s1 + $0x740] sm:$0xff]
      %v740 = vld [vmem:[%s1 + $0x748] sm:$0xff]
      %v741 = vld [vmem:[%s1 + $0x750] sm:$0xff]
      %v742 = vld [vmem:[%s1 + $0x758] sm:$0xff]
      %v743 = vld [vmem:[%s1 + $0x760] sm:$0xff]
      %v744 = vld [vmem:[%s1 + $0x768] sm:$0xff]
      %v745 = vld [vmem:[%s1 + $0x770] sm:$0xff]
      %v746 = vld [vmem:[%s1 + $0x778] sm:$0xff]
      %v747 = vld [vmem:[%s1 + $0x780] sm:$0xff]
      %v748 = vld [vmem:[%s1 + $0x788] sm:$0xff]
      %v749 = vld [vmem:[%s1 + $0x790] sm:$0xff]
      %v750 = vld [vmem:[%s1 + $0x798] sm:$0xff]
      %v751 = vld [vmem:[%s1 + $0x7a0] sm:$0xff]
      %v752 = vld [vmem:[%s1 + $0x7a8] sm:$0xff]
      %v753 = vld [vmem:[%s1 + $0x7b0] sm:$0xff]
      %v754 = vld [vmem:[%s1 + $0x7b8] sm:$0xff]
      %v755 = vld [vmem:[%s1 + $0x7c0] sm:$0xff]
      %v756 = vld [vmem:[%s1 + $0x7c8] sm:$0xff]
      %v757 = vld [vmem:[%s1 + $0x7d0] sm:$0xff]
      %v758 = vld [vmem:[%s1 + $0x7d8] sm:$0xff]
      %v759 = vld [vmem:[%s1 + $0x7e0] sm:$0xff]
      %v760 = vld [vmem:[%s1 + $0x7e8] sm:$0xff]
      %v761 = vld [vmem:[%s1 + $0x7f0] sm:$0xff]
      %v762 = vld [vmem:[%s1 + $0x7f8] sm:$0xff]
      %v763 = vld [vmem:[%s1 + $0x800] sm:$0xff]
      %v764 = vld [vmem:[%s1 + $0x808] sm:$0xff]
      %v765 = vld [vmem:[%s1 + $0x810] sm:$0xff]
      %v766 = vld [vmem:[%s1 + $0x818] sm:$0xff]
      %v767 = vld [vmem:[%s1 + $0x820] sm:$0xff]
      %v768 = vld [vmem:[%s1 + $0x828] sm:$0xff]
      %v769 = vld [vmem:[%s1 + $0x830] sm:$0xff]
      %v770 = vld [vmem:[%s1 + $0x838] sm:$0xff]
      %v771 = vld [vmem:[%s1 + $0x840] sm:$0xff]
      %v772 = vld [vmem:[%s1 + $0x848] sm:$0xff]
      %v773 = vld [vmem:[%s1 + $0x850] sm:$0xff]
      %v774 = vld [vmem:[%s1 + $0x858] sm:$0xff]
      %v775 = vld [vmem:[%s1 + $0x860] sm:$0xff]
      %v776 = vld [vmem:[%s1 + $0x868] sm:$0xff]
      %v777 = vld [vmem:[%s1 + $0x870] sm:$0xff]
      %v778 = vld [vmem:[%s1 + $0x878] sm:$0xff]
      %v779 = vld [vmem:[%s1 + $0x880] sm:$0xff]
      %v780 = vld [vmem:[%s1 + $0x888] sm:$0xff]
      %v781 = vld [vmem:[%s1 + $0x890] sm:$0xff]
      %v782 = vld [vmem:[%s1 + $0x898] sm:$0xff]
      %v783 = vld [vmem:[%s1 + $0x8a0] sm:$0xff]
      %v784 = vld [vmem:[%s1 + $0x8a8] sm:$0xff]
      %v785 = vld [vmem:[%s1 + $0x8b0] sm:$0xff]
      %v786 = vld [vmem:[%s1 + $0x8b8] sm:$0xff]
      %v787 = vld [vmem:[%s1 + $0x8c0] sm:$0xff]
      %v788 = vld [vmem:[%s1 + $0x8c8] sm:$0xff]
      %v789 = vld [vmem:[%s1 + $0x8d0] sm:$0xff]
      %v790 = vld [vmem:[%s1 + $0x8d8] sm:$0xff]
      %v791 = vld [vmem:[%s1 + $0x8e0] sm:$0xff]
      %v792 = vld [vmem:[%s1 + $0x8e8] sm:$0xff]
      %v793 = vld [vmem:[%s1 + $0x8f0] sm:$0xff]
      %v794 = vld [vmem:[%s1 + $0x8f8] sm:$0xff]
      %v795 = vld [vmem:[%s1 + $0x900] sm:$0xff]
      %v796 = vld [vmem:[%s1 + $0x908] sm:$0xff]
      %v797 = vld [vmem:[%s1 + $0x910] sm:$0xff]
      %v798 = vld [vmem:[%s1 + $0x918] sm:$0xff]
      %v799 = vld [vmem:[%s1 + $0x920] sm:$0xff]
      %v800 = vld [vmem:[%s1 + $0x928] sm:$0xff]
      %v801 = vld [vmem:[%s1 + $0x930] sm:$0xff]
      %v802 = vld [vmem:[%s1 + $0x938] sm:$0xff]
      %v803 = vld [vmem:[%s1 + $0x940] sm:$0xff]
      %v804 = vld [vmem:[%s1 + $0x948] sm:$0xff]
      %v805 = vld [vmem:[%s1 + $0x950] sm:$0xff]
      %v806 = vld [vmem:[%s1 + $0x958] sm:$0xff]
      %v807 = vld [vmem:[%s1 + $0x960] sm:$0xff]
      %v808 = vld [vmem:[%s1 + $0x968] sm:$0xff]
      %v809 = vld [vmem:[%s1 + $0x970] sm:$0xff]
      %v810 = vld [vmem:[%s1 + $0x978] sm:$0xff]
      %v811 = vld [vmem:[%s1 + $0x980] sm:$0xff]
      %v812 = vld [vmem:[%s1 + $0x988] sm:$0xff]
      %v813 = vld [vmem:[%s1 + $0x990] sm:$0xff]
      %v814 = vld [vmem:[%s1 + $0x998] sm:$0xff]
      %v815 = vld [vmem:[%s1 + $0x9a0] sm:$0xff]
      %v816 = vld [vmem:[%s1 + $0x9a8] sm:$0xff]
      %v817 = vld [vmem:[%s1 + $0x9b0] sm:$0xff]
      %v818 = vld [vmem:[%s1 + $0x9b8] sm:$0xff]
      %v819 = vld [vmem:[%s1 + $0x9c0] sm:$0xff]
      %v820 = vld [vmem:[%s1 + $0x9c8] sm:$0xff]
      %v821 = vld [vmem:[%s1 + $0x9d0] sm:$0xff]
      %v822 = vld [vmem:[%s1 + $0x9d8] sm:$0xff]
      %v823 = vld [vmem:[%s1 + $0x9e0] sm:$0xff]
      %v824 = vld [vmem:[%s1 + $0x9e8] sm:$0xff]
      %v825 = vld [vmem:[%s1 + $0x9f0] sm:$0xff]
      %v826 = vld [vmem:[%s1 + $0x9f8] sm:$0xff]
      %v827 = vld [vmem:[%s1 + $0xa00] sm:$0xff]
      %v828 = vld [vmem:[%s1 + $0xa08] sm:$0xff]
      %v829 = vld [vmem:[%s1 + $0xa10] sm:$0xff]
      %v830 = vld [vmem:[%s1 + $0xa18] sm:$0xff]
      %v831 = vld [vmem:[%s1 + $0xa20] sm:$0xff]
      %v832 = vld [vmem:[%s1 + $0xa28] sm:$0xff]
      %v833 = vld [vmem:[%s1 + $0xa30] sm:$0xff]
      %v834 = vld [vmem:[%s1 + $0xa38] sm:$0xff]
      %v835 = vld [vmem:[%s1 + $0xa40] sm:$0xff]
      %v836 = vld [vmem:[%s1 + $0xa48] sm:$0xff]
      %v837 = vld [vmem:[%s1 + $0xa50] sm:$0xff]
      %v838 = vld [vmem:[%s1 + $0xa58] sm:$0xff]
      %v839 = vld [vmem:[%s1 + $0xa60] sm:$0xff]
      %v840 = vld [vmem:[%s1 + $0xa68] sm:$0xff]
      %v841 = vld [vmem:[%s1 + $0xa70] sm:$0xff]
      %v842 = vld [vmem:[%s1 + $0xa78] sm:$0xff]
      %v843 = vld [vmem:[%s1 + $0xa80] sm:$0xff]
      %v844 = vld [vmem:[%s1 + $0xa88] sm:$0xff]
      %v845 = vld [vmem:[%s1 + $0xa90] sm:$0xff]
      %v846 = vld [vmem:[%s1 + $0xa98] sm:$0xff]
      %v847 = vld [vmem:[%s1 + $0xaa0] sm:$0xff]
      %v848 = vld [vmem:[%s1 + $0xaa8] sm:$0xff]
      %v849 = vld [vmem:[%s1 + $0xab0] sm:$0xff]
      %v850 = vld [vmem:[%s1 + $0xab8] sm:$0xff]
      %v851 = vld [vmem:[%s1 + $0xac0] sm:$0xff]
      %v852 = vld [vmem:[%s1 + $0xac8] sm:$0xff]
      %v853 = vld [vmem:[%s1 + $0xad0] sm:$0xff]
      %v854 = vld [vmem:[%s1 + $0xad8] sm:$0xff]
      %v855 = vld [vmem:[%s1 + $0xae0] sm:$0xff]
      %v856 = vld [vmem:[%s1 + $0xae8] sm:$0xff]
      %v857 = vld [vmem:[%s1 + $0xaf0] sm:$0xff]
      %v858 = vld [vmem:[%s1 + $0xaf8] sm:$0xff]
      %v859 = vld [vmem:[%s1 + $0xb00] sm:$0xff]
      %v860 = vld [vmem:[%s1 + $0xb08] sm:$0xff]
      %v861 = vld [vmem:[%s1 + $0xb10] sm:$0xff]
      %v862 = vld [vmem:[%s1 + $0xb18] sm:$0xff]
      %v863 = vld [vmem:[%s1 + $0xb20] sm:$0xff]
      %v864 = vld [vmem:[%s1 + $0xb28] sm:$0xff]
      %v865 = vld [vmem:[%s1 + $0xb30] sm:$0xff]
      %v866 = vld [vmem:[%s1 + $0xb38] sm:$0xff]
      %v867 = vld [vmem:[%s1 + $0xb40] sm:$0xff]
      %v868 = vld [vmem:[%s1 + $0xb48] sm:$0xff]
      %v869 = vld [vmem:[%s1 + $0xb50] sm:$0xff]
      %v870 = vld [vmem:[%s1 + $0xb58] sm:$0xff]
      %v871 = vld [vmem:[%s1 + $0xb60] sm:$0xff]
      %v872 = vld [vmem:[%s1 + $0xb68] sm:$0xff]
      %v873 = vld [vmem:[%s1 + $0xb70] sm:$0xff]
      %v874 = vld [vmem:[%s1 + $0xb78] sm:$0xff]
      %v875 = vld [vmem:[%s1 + $0xb80] sm:$0xff]
      %v876 = vld [vmem:[%s1 + $0xb88] sm:$0xff]
      %v877 = vld [vmem:[%s1 + $0xb90] sm:$0xff]
      %v878 = vld [vmem:[%s1 + $0xb98] sm:$0xff]
      %v879 = vld [vmem:[%s1 + $0xba0] sm:$0xff]
      %v880 = vld [vmem:[%s1 + $0xba8] sm:$0xff]
      %v881 = vld [vmem:[%s1 + $0xbb0] sm:$0xff]
      %v882 = vld [vmem:[%s1 + $0xbb8] sm:$0xff]
      %v883 = vld [vmem:[%s1 + $0xbc0] sm:$0xff]
      %v884 = vld [vmem:[%s1 + $0xbc8] sm:$0xff]
      %v885 = vld [vmem:[%s1 + $0xbd0] sm:$0xff]
      %v886 = vld [vmem:[%s1 + $0xbd8] sm:$0xff]
      %v887 = vld [vmem:[%s1 + $0xbe0] sm:$0xff]
      %v888 = vld [vmem:[%s1 + $0xbe8] sm:$0xff]
      %v889 = vld [vmem:[%s1 + $0xbf0] sm:$0xff]
      %v890 = vld [vmem:[%s1 + $0xbf8] sm:$0xff]
      %v891 = vld [vmem:[%s2] sm:$0xff]
      %v892 = vld [vmem:[%s2 + $0x8] sm:$0xff]
      %v895 = vperm.slane %v891, 0
      %v896 = vperm.slane %v891, 1
      %v897 = vperm.slane %v891, 2
      %v898 = vperm.slane %v891, 3
      %v899 = vperm.slane %v891, 4
      %v900 = vperm.slane %v891, 5
      %v901 = vperm.slane %v891, 6
      %v902 = vperm.slane %v891, 7
      %v903 = vperm.slane %v892, 0
      %v904 = vperm.slane %v892, 1
      %v905 = vperm.slane %v892, 2
      %v906 = vperm.slane %v892, 3
      %v907 = vperm.slane %v892, 4
      %v908 = vperm.slane %v892, 5
      %v909 = vperm.slane %v892, 6
      %v910 = vperm.slane %v892, 7
      %v928 = vsel %vm504, %v491, 0
      %v931 = vsel %vm504, %v494, 0
      %933 = vmatpush.msra.mxu0 %v747
      %934 = vmatpush.msra.mxu0 %v731
      %935 = vmatpush.msra.mxu0 %v715
      %936 = vmatpush.msra.mxu0 %v699
      %937 = vmatpush.msra.mxu0 %v683
      %938 = vmatpush.msra.mxu0 %v667
      %939 = vmatpush.msra.mxu0 %v651
      %940 = vmatpush.msra.mxu0 %v635
      %941 = vmatpush.msra.mxu0 %v619
      %942 = vmatpush.msra.mxu0 %v603
      %943 = vmatpush.msra.mxu0 %v587
      %944 = vmatpush.msra.mxu0 %v571
      %945 = vmatpush.msra.mxu0 %v555
      %946 = vmatpush.msra.mxu0 %v539
      %947 = vmatpush.msra.mxu0 %v523
      %948 = vmatpush.msra.mxu0 %v507
      %949 = vmatmul.f32.gmra.mxu0 %v505
      %v950 = vpop.f32.mrf.mxu0
      %v951 = vadd.f32 %v895, %v950
      %952 = vmatmul.f32.gmra.mxu0 %v506
      %v953 = vpop.f32.mrf.mxu0
      %v954 = vadd.f32 %v895, %v953
      %955 = vdwg.mxu0
      %956 = vmatpush.msra.mxu0 0.0
      %957 = vmatpush.msra.mxu0 0.0
      %958 = vmatpush.msra.mxu0 0.0
      %959 = vmatpush.msra.mxu0 0.0
      %960 = vmatpush.msra.mxu0 0.0
      %961 = vmatpush.msra.mxu0 0.0
      %962 = vmatpush.msra.mxu0 0.0
      %963 = vmatpush.msra.mxu0 0.0
      %964 = vmatpush.msra.mxu0 %v875
      %965 = vmatpush.msra.mxu0 %v859
      %966 = vmatpush.msra.mxu0 %v843
      %967 = vmatpush.msra.mxu0 %v827
      %968 = vmatpush.msra.mxu0 %v811
      %969 = vmatpush.msra.mxu0 %v795
      %970 = vmatpush.msra.mxu0 %v779
      %971 = vmatpush.msra.mxu0 %v763
      %972 = vmatmul.f32.gmra.mxu0 %v928
      %v973 = vpop.f32.mrf.mxu0
      %v974 = vadd.f32 %v951, %v973
      %975 = vmatmul.f32.gmra.mxu0 %v931
      %v976 = vpop.f32.mrf.mxu0
      %v977 = vadd.f32 %v954, %v976
      %978 = vdwg.mxu0
      %979 = vmatpush.msra.mxu0 %v748
      %980 = vmatpush.msra.mxu0 %v732
      %981 = vmatpush.msra.mxu0 %v716
      %982 = vmatpush.msra.mxu0 %v700
      %983 = vmatpush.msra.mxu0 %v684
      %984 = vmatpush.msra.mxu0 %v668
      %985 = vmatpush.msra.mxu0 %v652
      %986 = vmatpush.msra.mxu0 %v636
      %987 = vmatpush.msra.mxu0 %v620
      %988 = vmatpush.msra.mxu0 %v604
      %989 = vmatpush.msra.mxu0 %v588
      %990 = vmatpush.msra.mxu0 %v572
      %991 = vmatpush.msra.mxu0 %v556
      %992 = vmatpush.msra.mxu0 %v540
      %993 = vmatpush.msra.mxu0 %v524
      %994 = vmatpush.msra.mxu0 %v508
      %995 = vmatmul.f32.gmra.mxu0 %v505
      %v996 = vpop.f32.mrf.mxu0
      %v997 = vadd.f32 %v896, %v996
      %998 = vmatmul.f32.gmra.mxu0 %v506
      %v999 = vpop.f32.mrf.mxu0
      %v1000 = vadd.f32 %v896, %v999
      %1001 = vdwg.mxu0
      %1002 = vmatpush.msra.mxu0 0.0
      %1003 = vmatpush.msra.mxu0 0.0
      %1004 = vmatpush.msra.mxu0 0.0
      %1005 = vmatpush.msra.mxu0 0.0
      %1006 = vmatpush.msra.mxu0 0.0
      %1007 = vmatpush.msra.mxu0 0.0
      %1008 = vmatpush.msra.mxu0 0.0
      %1009 = vmatpush.msra.mxu0 0.0
      %1010 = vmatpush.msra.mxu0 %v876
      %1011 = vmatpush.msra.mxu0 %v860
      %1012 = vmatpush.msra.mxu0 %v844
      %1013 = vmatpush.msra.mxu0 %v828
      %1014 = vmatpush.msra.mxu0 %v812
      %1015 = vmatpush.msra.mxu0 %v796
      %1016 = vmatpush.msra.mxu0 %v780
      %1017 = vmatpush.msra.mxu0 %v764
      %1018 = vmatmul.f32.gmra.mxu0 %v928
      %v1019 = vpop.f32.mrf.mxu0
      %v1020 = vadd.f32 %v997, %v1019
      %1021 = vmatmul.f32.gmra.mxu0 %v931
      %v1022 = vpop.f32.mrf.mxu0
      %v1023 = vadd.f32 %v1000, %v1022
      %1024 = vdwg.mxu0
      %1025 = vmatpush.msra.mxu0 %v749
      %1026 = vmatpush.msra.mxu0 %v733
      %1027 = vmatpush.msra.mxu0 %v717
      %1028 = vmatpush.msra.mxu0 %v701
      %1029 = vmatpush.msra.mxu0 %v685
      %1030 = vmatpush.msra.mxu0 %v669
      %1031 = vmatpush.msra.mxu0 %v653
      %1032 = vmatpush.msra.mxu0 %v637
      %1033 = vmatpush.msra.mxu0 %v621
      %1034 = vmatpush.msra.mxu0 %v605
      %1035 = vmatpush.msra.mxu0 %v589
      %1036 = vmatpush.msra.mxu0 %v573
      %1037 = vmatpush.msra.mxu0 %v557
      %1038 = vmatpush.msra.mxu0 %v541
      %1039 = vmatpush.msra.mxu0 %v525
      %1040 = vmatpush.msra.mxu0 %v509
      %1041 = vmatmul.f32.gmra.mxu0 %v505
      %v1042 = vpop.f32.mrf.mxu0
      %v1043 = vadd.f32 %v897, %v1042
      %1044 = vmatmul.f32.gmra.mxu0 %v506
      %v1045 = vpop.f32.mrf.mxu0
      %v1046 = vadd.f32 %v897, %v1045
      %1047 = vdwg.mxu0
      %1048 = vmatpush.msra.mxu0 0.0
      %1049 = vmatpush.msra.mxu0 0.0
      %1050 = vmatpush.msra.mxu0 0.0
      %1051 = vmatpush.msra.mxu0 0.0
      %1052 = vmatpush.msra.mxu0 0.0
      %1053 = vmatpush.msra.mxu0 0.0
      %1054 = vmatpush.msra.mxu0 0.0
      %1055 = vmatpush.msra.mxu0 0.0
      %1056 = vmatpush.msra.mxu0 %v877
      %1057 = vmatpush.msra.mxu0 %v861
      %1058 = vmatpush.msra.mxu0 %v845
      %1059 = vmatpush.msra.mxu0 %v829
      %1060 = vmatpush.msra.mxu0 %v813
      %1061 = vmatpush.msra.mxu0 %v797
      %1062 = vmatpush.msra.mxu0 %v781
      %1063 = vmatpush.msra.mxu0 %v765
      %1064 = vmatmul.f32.gmra.mxu0 %v928
      %v1065 = vpop.f32.mrf.mxu0
      %v1066 = vadd.f32 %v1043, %v1065
      %1067 = vmatmul.f32.gmra.mxu0 %v931
      %v1068 = vpop.f32.mrf.mxu0
      %v1069 = vadd.f32 %v1046, %v1068
      %1070 = vdwg.mxu0
      %1071 = vmatpush.msra.mxu0 %v750
      %1072 = vmatpush.msra.mxu0 %v734
      %1073 = vmatpush.msra.mxu0 %v718
      %1074 = vmatpush.msra.mxu0 %v702
      %1075 = vmatpush.msra.mxu0 %v686
      %1076 = vmatpush.msra.mxu0 %v670
      %1077 = vmatpush.msra.mxu0 %v654
      %1078 = vmatpush.msra.mxu0 %v638
      %1079 = vmatpush.msra.mxu0 %v622
      %1080 = vmatpush.msra.mxu0 %v606
      %1081 = vmatpush.msra.mxu0 %v590
      %1082 = vmatpush.msra.mxu0 %v574
      %1083 = vmatpush.msra.mxu0 %v558
      %1084 = vmatpush.msra.mxu0 %v542
      %1085 = vmatpush.msra.mxu0 %v526
      %1086 = vmatpush.msra.mxu0 %v510
      %1087 = vmatmul.f32.gmra.mxu0 %v505
      %v1088 = vpop.f32.mrf.mxu0
      %v1089 = vadd.f32 %v898, %v1088
      %1090 = vmatmul.f32.gmra.mxu0 %v506
      %v1091 = vpop.f32.mrf.mxu0
      %v1092 = vadd.f32 %v898, %v1091
      %1093 = vdwg.mxu0
      %1094 = vmatpush.msra.mxu0 0.0
      %1095 = vmatpush.msra.mxu0 0.0
      %1096 = vmatpush.msra.mxu0 0.0
      %1097 = vmatpush.msra.mxu0 0.0
      %1098 = vmatpush.msra.mxu0 0.0
      %1099 = vmatpush.msra.mxu0 0.0
      %1100 = vmatpush.msra.mxu0 0.0
      %1101 = vmatpush.msra.mxu0 0.0
      %1102 = vmatpush.msra.mxu0 %v878
      %1103 = vmatpush.msra.mxu0 %v862
      %1104 = vmatpush.msra.mxu0 %v846
      %1105 = vmatpush.msra.mxu0 %v830
      %1106 = vmatpush.msra.mxu0 %v814
      %1107 = vmatpush.msra.mxu0 %v798
      %1108 = vmatpush.msra.mxu0 %v782
      %1109 = vmatpush.msra.mxu0 %v766
      %1110 = vmatmul.f32.gmra.mxu0 %v928
      %v1111 = vpop.f32.mrf.mxu0
      %v1112 = vadd.f32 %v1089, %v1111
      %1113 = vmatmul.f32.gmra.mxu0 %v931
      %v1114 = vpop.f32.mrf.mxu0
      %v1115 = vadd.f32 %v1092, %v1114
      %1116 = vdwg.mxu0
      %1117 = vmatpush.msra.mxu0 %v751
      %1118 = vmatpush.msra.mxu0 %v735
      %1119 = vmatpush.msra.mxu0 %v719
      %1120 = vmatpush.msra.mxu0 %v703
      %1121 = vmatpush.msra.mxu0 %v687
      %1122 = vmatpush.msra.mxu0 %v671
      %1123 = vmatpush.msra.mxu0 %v655
      %1124 = vmatpush.msra.mxu0 %v639
      %1125 = vmatpush.msra.mxu0 %v623
      %1126 = vmatpush.msra.mxu0 %v607
      %1127 = vmatpush.msra.mxu0 %v591
      %1128 = vmatpush.msra.mxu0 %v575
      %1129 = vmatpush.msra.mxu0 %v559
      %1130 = vmatpush.msra.mxu0 %v543
      %1131 = vmatpush.msra.mxu0 %v527
      %1132 = vmatpush.msra.mxu0 %v511
      %1133 = vmatmul.f32.gmra.mxu0 %v505
      %v1134 = vpop.f32.mrf.mxu0
      %v1135 = vadd.f32 %v899, %v1134
      %1136 = vmatmul.f32.gmra.mxu0 %v506
      %v1137 = vpop.f32.mrf.mxu0
      %v1138 = vadd.f32 %v899, %v1137
      %1139 = vdwg.mxu0
      %1140 = vmatpush.msra.mxu0 0.0
      %1141 = vmatpush.msra.mxu0 0.0
      %1142 = vmatpush.msra.mxu0 0.0
      %1143 = vmatpush.msra.mxu0 0.0
      %1144 = vmatpush.msra.mxu0 0.0
      %1145 = vmatpush.msra.mxu0 0.0
      %1146 = vmatpush.msra.mxu0 0.0
      %1147 = vmatpush.msra.mxu0 0.0
      %1148 = vmatpush.msra.mxu0 %v879
      %1149 = vmatpush.msra.mxu0 %v863
      %1150 = vmatpush.msra.mxu0 %v847
      %1151 = vmatpush.msra.mxu0 %v831
      %1152 = vmatpush.msra.mxu0 %v815
      %1153 = vmatpush.msra.mxu0 %v799
      %1154 = vmatpush.msra.mxu0 %v783
      %1155 = vmatpush.msra.mxu0 %v767
      %1156 = vmatmul.f32.gmra.mxu0 %v928
      %v1157 = vpop.f32.mrf.mxu0
      %v1158 = vadd.f32 %v1135, %v1157
      %1159 = vmatmul.f32.gmra.mxu0 %v931
      %v1160 = vpop.f32.mrf.mxu0
      %v1161 = vadd.f32 %v1138, %v1160
      %1162 = vdwg.mxu0
      %1163 = vmatpush.msra.mxu0 %v752
      %1164 = vmatpush.msra.mxu0 %v736
      %1165 = vmatpush.msra.mxu0 %v720
      %1166 = vmatpush.msra.mxu0 %v704
      %1167 = vmatpush.msra.mxu0 %v688
      %1168 = vmatpush.msra.mxu0 %v672
      %1169 = vmatpush.msra.mxu0 %v656
      %1170 = vmatpush.msra.mxu0 %v640
      %1171 = vmatpush.msra.mxu0 %v624
      %1172 = vmatpush.msra.mxu0 %v608
      %1173 = vmatpush.msra.mxu0 %v592
      %1174 = vmatpush.msra.mxu0 %v576
      %1175 = vmatpush.msra.mxu0 %v560
      %1176 = vmatpush.msra.mxu0 %v544
      %1177 = vmatpush.msra.mxu0 %v528
      %1178 = vmatpush.msra.mxu0 %v512
      %1179 = vmatmul.f32.gmra.mxu0 %v505
      %v1180 = vpop.f32.mrf.mxu0
      %v1181 = vadd.f32 %v900, %v1180
      %1182 = vmatmul.f32.gmra.mxu0 %v506
      %v1183 = vpop.f32.mrf.mxu0
      %v1184 = vadd.f32 %v900, %v1183
      %1185 = vdwg.mxu0
      %1186 = vmatpush.msra.mxu0 0.0
      %1187 = vmatpush.msra.mxu0 0.0
      %1188 = vmatpush.msra.mxu0 0.0
      %1189 = vmatpush.msra.mxu0 0.0
      %1190 = vmatpush.msra.mxu0 0.0
      %1191 = vmatpush.msra.mxu0 0.0
      %1192 = vmatpush.msra.mxu0 0.0
      %1193 = vmatpush.msra.mxu0 0.0
      %1194 = vmatpush.msra.mxu0 %v880
      %1195 = vmatpush.msra.mxu0 %v864
      %1196 = vmatpush.msra.mxu0 %v848
      %1197 = vmatpush.msra.mxu0 %v832
      %1198 = vmatpush.msra.mxu0 %v816
      %1199 = vmatpush.msra.mxu0 %v800
      %1200 = vmatpush.msra.mxu0 %v784
      %1201 = vmatpush.msra.mxu0 %v768
      %1202 = vmatmul.f32.gmra.mxu0 %v928
      %v1203 = vpop.f32.mrf.mxu0
      %v1204 = vadd.f32 %v1181, %v1203
      %1205 = vmatmul.f32.gmra.mxu0 %v931
      %v1206 = vpop.f32.mrf.mxu0
      %v1207 = vadd.f32 %v1184, %v1206
      %1208 = vdwg.mxu0
      %1209 = vmatpush.msra.mxu0 %v753
      %1210 = vmatpush.msra.mxu0 %v737
      %1211 = vmatpush.msra.mxu0 %v721
      %1212 = vmatpush.msra.mxu0 %v705
      %1213 = vmatpush.msra.mxu0 %v689
      %1214 = vmatpush.msra.mxu0 %v673
      %1215 = vmatpush.msra.mxu0 %v657
      %1216 = vmatpush.msra.mxu0 %v641
      %1217 = vmatpush.msra.mxu0 %v625
      %1218 = vmatpush.msra.mxu0 %v609
      %1219 = vmatpush.msra.mxu0 %v593
      %1220 = vmatpush.msra.mxu0 %v577
      %1221 = vmatpush.msra.mxu0 %v561
      %1222 = vmatpush.msra.mxu0 %v545
      %1223 = vmatpush.msra.mxu0 %v529
      %1224 = vmatpush.msra.mxu0 %v513
      %1225 = vmatmul.f32.gmra.mxu0 %v505
      %v1226 = vpop.f32.mrf.mxu0
      %v1227 = vadd.f32 %v901, %v1226
      %1228 = vmatmul.f32.gmra.mxu0 %v506
      %v1229 = vpop.f32.mrf.mxu0
      %v1230 = vadd.f32 %v901, %v1229
      %1231 = vdwg.mxu0
      %1232 = vmatpush.msra.mxu0 0.0
      %1233 = vmatpush.msra.mxu0 0.0
      %1234 = vmatpush.msra.mxu0 0.0
      %1235 = vmatpush.msra.mxu0 0.0
      %1236 = vmatpush.msra.mxu0 0.0
      %1237 = vmatpush.msra.mxu0 0.0
      %1238 = vmatpush.msra.mxu0 0.0
      %1239 = vmatpush.msra.mxu0 0.0
      %1240 = vmatpush.msra.mxu0 %v881
      %1241 = vmatpush.msra.mxu0 %v865
      %1242 = vmatpush.msra.mxu0 %v849
      %1243 = vmatpush.msra.mxu0 %v833
      %1244 = vmatpush.msra.mxu0 %v817
      %1245 = vmatpush.msra.mxu0 %v801
      %1246 = vmatpush.msra.mxu0 %v785
      %1247 = vmatpush.msra.mxu0 %v769
      %1248 = vmatmul.f32.gmra.mxu0 %v928
      %v1249 = vpop.f32.mrf.mxu0
      %v1250 = vadd.f32 %v1227, %v1249
      %1251 = vmatmul.f32.gmra.mxu0 %v931
      %v1252 = vpop.f32.mrf.mxu0
      %v1253 = vadd.f32 %v1230, %v1252
      %1254 = vdwg.mxu0
      %1255 = vmatpush.msra.mxu0 %v754
      %1256 = vmatpush.msra.mxu0 %v738
      %1257 = vmatpush.msra.mxu0 %v722
      %1258 = vmatpush.msra.mxu0 %v706
      %1259 = vmatpush.msra.mxu0 %v690
      %1260 = vmatpush.msra.mxu0 %v674
      %1261 = vmatpush.msra.mxu0 %v658
      %1262 = vmatpush.msra.mxu0 %v642
      %1263 = vmatpush.msra.mxu0 %v626
      %1264 = vmatpush.msra.mxu0 %v610
      %1265 = vmatpush.msra.mxu0 %v594
      %1266 = vmatpush.msra.mxu0 %v578
      %1267 = vmatpush.msra.mxu0 %v562
      %1268 = vmatpush.msra.mxu0 %v546
      %1269 = vmatpush.msra.mxu0 %v530
      %1270 = vmatpush.msra.mxu0 %v514
      %1271 = vmatmul.f32.gmra.mxu0 %v505
      %v1272 = vpop.f32.mrf.mxu0
      %v1273 = vadd.f32 %v902, %v1272
      %1274 = vmatmul.f32.gmra.mxu0 %v506
      %v1275 = vpop.f32.mrf.mxu0
      %v1276 = vadd.f32 %v902, %v1275
      %1277 = vdwg.mxu0
      %1278 = vmatpush.msra.mxu0 0.0
      %1279 = vmatpush.msra.mxu0 0.0
      %1280 = vmatpush.msra.mxu0 0.0
      %1281 = vmatpush.msra.mxu0 0.0
      %1282 = vmatpush.msra.mxu0 0.0
      %1283 = vmatpush.msra.mxu0 0.0
      %1284 = vmatpush.msra.mxu0 0.0
      %1285 = vmatpush.msra.mxu0 0.0
      %1286 = vmatpush.msra.mxu0 %v882
      %1287 = vmatpush.msra.mxu0 %v866
      %1288 = vmatpush.msra.mxu0 %v850
      %1289 = vmatpush.msra.mxu0 %v834
      %1290 = vmatpush.msra.mxu0 %v818
      %1291 = vmatpush.msra.mxu0 %v802
      %1292 = vmatpush.msra.mxu0 %v786
      %1293 = vmatpush.msra.mxu0 %v770
      %1294 = vmatmul.f32.gmra.mxu0 %v928
      %v1295 = vpop.f32.mrf.mxu0
      %v1296 = vadd.f32 %v1273, %v1295
      %1297 = vmatmul.f32.gmra.mxu0 %v931
      %v1298 = vpop.f32.mrf.mxu0
      %v1299 = vadd.f32 %v1276, %v1298
      %1300 = vdwg.mxu0
      %1301 = vmatpush.msra.mxu0 %v755
      %1302 = vmatpush.msra.mxu0 %v739
      %1303 = vmatpush.msra.mxu0 %v723
      %1304 = vmatpush.msra.mxu0 %v707
      %1305 = vmatpush.msra.mxu0 %v691
      %1306 = vmatpush.msra.mxu0 %v675
      %1307 = vmatpush.msra.mxu0 %v659
      %1308 = vmatpush.msra.mxu0 %v643
      %1309 = vmatpush.msra.mxu0 %v627
      %1310 = vmatpush.msra.mxu0 %v611
      %1311 = vmatpush.msra.mxu0 %v595
      %1312 = vmatpush.msra.mxu0 %v579
      %1313 = vmatpush.msra.mxu0 %v563
      %1314 = vmatpush.msra.mxu0 %v547
      %1315 = vmatpush.msra.mxu0 %v531
      %1316 = vmatpush.msra.mxu0 %v515
      %1317 = vmatmul.f32.gmra.mxu0 %v505
      %v1318 = vpop.f32.mrf.mxu0
      %v1319 = vadd.f32 %v903, %v1318
      %1320 = vmatmul.f32.gmra.mxu0 %v506
      %v1321 = vpop.f32.mrf.mxu0
      %v1322 = vadd.f32 %v903, %v1321
      %1323 = vdwg.mxu0
      %1324 = vmatpush.msra.mxu0 0.0
      %1325 = vmatpush.msra.mxu0 0.0
      %1326 = vmatpush.msra.mxu0 0.0
      %1327 = vmatpush.msra.mxu0 0.0
      %1328 = vmatpush.msra.mxu0 0.0
      %1329 = vmatpush.msra.mxu0 0.0
      %1330 = vmatpush.msra.mxu0 0.0
      %1331 = vmatpush.msra.mxu0 0.0
      %1332 = vmatpush.msra.mxu0 %v883
      %1333 = vmatpush.msra.mxu0 %v867
      %1334 = vmatpush.msra.mxu0 %v851
      %1335 = vmatpush.msra.mxu0 %v835
      %1336 = vmatpush.msra.mxu0 %v819
      %1337 = vmatpush.msra.mxu0 %v803
      %1338 = vmatpush.msra.mxu0 %v787
      %1339 = vmatpush.msra.mxu0 %v771
      %1340 = vmatmul.f32.gmra.mxu0 %v928
      %v1341 = vpop.f32.mrf.mxu0
      %v1342 = vadd.f32 %v1319, %v1341
      %1343 = vmatmul.f32.gmra.mxu0 %v931
      %v1344 = vpop.f32.mrf.mxu0
      %v1345 = vadd.f32 %v1322, %v1344
      %1346 = vdwg.mxu0
      %1347 = vmatpush.msra.mxu0 %v756
      %1348 = vmatpush.msra.mxu0 %v740
      %1349 = vmatpush.msra.mxu0 %v724
      %1350 = vmatpush.msra.mxu0 %v708
      %1351 = vmatpush.msra.mxu0 %v692
      %1352 = vmatpush.msra.mxu0 %v676
      %1353 = vmatpush.msra.mxu0 %v660
      %1354 = vmatpush.msra.mxu0 %v644
      %1355 = vmatpush.msra.mxu0 %v628
      %1356 = vmatpush.msra.mxu0 %v612
      %1357 = vmatpush.msra.mxu0 %v596
      %1358 = vmatpush.msra.mxu0 %v580
      %1359 = vmatpush.msra.mxu0 %v564
      %1360 = vmatpush.msra.mxu0 %v548
      %1361 = vmatpush.msra.mxu0 %v532
      %1362 = vmatpush.msra.mxu0 %v516
      %1363 = vmatmul.f32.gmra.mxu0 %v505
      %v1364 = vpop.f32.mrf.mxu0
      %v1365 = vadd.f32 %v904, %v1364
      %1366 = vmatmul.f32.gmra.mxu0 %v506
      %v1367 = vpop.f32.mrf.mxu0
      %v1368 = vadd.f32 %v904, %v1367
      %1369 = vdwg.mxu0
      %1370 = vmatpush.msra.mxu0 0.0
      %1371 = vmatpush.msra.mxu0 0.0
      %1372 = vmatpush.msra.mxu0 0.0
      %1373 = vmatpush.msra.mxu0 0.0
      %1374 = vmatpush.msra.mxu0 0.0
      %1375 = vmatpush.msra.mxu0 0.0
      %1376 = vmatpush.msra.mxu0 0.0
      %1377 = vmatpush.msra.mxu0 0.0
      %1378 = vmatpush.msra.mxu0 %v884
      %1379 = vmatpush.msra.mxu0 %v868
      %1380 = vmatpush.msra.mxu0 %v852
      %1381 = vmatpush.msra.mxu0 %v836
      %1382 = vmatpush.msra.mxu0 %v820
      %1383 = vmatpush.msra.mxu0 %v804
      %1384 = vmatpush.msra.mxu0 %v788
      %1385 = vmatpush.msra.mxu0 %v772
      %1386 = vmatmul.f32.gmra.mxu0 %v928
      %v1387 = vpop.f32.mrf.mxu0
      %v1388 = vadd.f32 %v1365, %v1387
      %1389 = vmatmul.f32.gmra.mxu0 %v931
      %v1390 = vpop.f32.mrf.mxu0
      %v1391 = vadd.f32 %v1368, %v1390
      %1392 = vdwg.mxu0
      %1393 = vmatpush.msra.mxu0 %v757
      %1394 = vmatpush.msra.mxu0 %v741
      %1395 = vmatpush.msra.mxu0 %v725
      %1396 = vmatpush.msra.mxu0 %v709
      %1397 = vmatpush.msra.mxu0 %v693
      %1398 = vmatpush.msra.mxu0 %v677
      %1399 = vmatpush.msra.mxu0 %v661
      %1400 = vmatpush.msra.mxu0 %v645
      %1401 = vmatpush.msra.mxu0 %v629
      %1402 = vmatpush.msra.mxu0 %v613
      %1403 = vmatpush.msra.mxu0 %v597
      %1404 = vmatpush.msra.mxu0 %v581
      %1405 = vmatpush.msra.mxu0 %v565
      %1406 = vmatpush.msra.mxu0 %v549
      %1407 = vmatpush.msra.mxu0 %v533
      %1408 = vmatpush.msra.mxu0 %v517
      %1409 = vmatmul.f32.gmra.mxu0 %v505
      %v1410 = vpop.f32.mrf.mxu0
      %v1411 = vadd.f32 %v905, %v1410
      %1412 = vmatmul.f32.gmra.mxu0 %v506
      %v1413 = vpop.f32.mrf.mxu0
      %v1414 = vadd.f32 %v905, %v1413
      %1415 = vdwg.mxu0
      %1416 = vmatpush.msra.mxu0 0.0
      %1417 = vmatpush.msra.mxu0 0.0
      %1418 = vmatpush.msra.mxu0 0.0
      %1419 = vmatpush.msra.mxu0 0.0
      %1420 = vmatpush.msra.mxu0 0.0
      %1421 = vmatpush.msra.mxu0 0.0
      %1422 = vmatpush.msra.mxu0 0.0
      %1423 = vmatpush.msra.mxu0 0.0
      %1424 = vmatpush.msra.mxu0 %v885
      %1425 = vmatpush.msra.mxu0 %v869
      %1426 = vmatpush.msra.mxu0 %v853
      %1427 = vmatpush.msra.mxu0 %v837
      %1428 = vmatpush.msra.mxu0 %v821
      %1429 = vmatpush.msra.mxu0 %v805
      %1430 = vmatpush.msra.mxu0 %v789
      %1431 = vmatpush.msra.mxu0 %v773
      %1432 = vmatmul.f32.gmra.mxu0 %v928
      %v1433 = vpop.f32.mrf.mxu0
      %v1434 = vadd.f32 %v1411, %v1433
      %1435 = vmatmul.f32.gmra.mxu0 %v931
      %v1436 = vpop.f32.mrf.mxu0
      %v1437 = vadd.f32 %v1414, %v1436
      %1438 = vdwg.mxu0
      %1439 = vmatpush.msra.mxu0 %v758
      %1440 = vmatpush.msra.mxu0 %v742
      %1441 = vmatpush.msra.mxu0 %v726
      %1442 = vmatpush.msra.mxu0 %v710
      %1443 = vmatpush.msra.mxu0 %v694
      %1444 = vmatpush.msra.mxu0 %v678
      %1445 = vmatpush.msra.mxu0 %v662
      %1446 = vmatpush.msra.mxu0 %v646
      %1447 = vmatpush.msra.mxu0 %v630
      %1448 = vmatpush.msra.mxu0 %v614
      %1449 = vmatpush.msra.mxu0 %v598
      %1450 = vmatpush.msra.mxu0 %v582
      %1451 = vmatpush.msra.mxu0 %v566
      %1452 = vmatpush.msra.mxu0 %v550
      %1453 = vmatpush.msra.mxu0 %v534
      %1454 = vmatpush.msra.mxu0 %v518
      %1455 = vmatmul.f32.gmra.mxu0 %v505
      %v1456 = vpop.f32.mrf.mxu0
      %v1457 = vadd.f32 %v906, %v1456
      %1458 = vmatmul.f32.gmra.mxu0 %v506
      %v1459 = vpop.f32.mrf.mxu0
      %v1460 = vadd.f32 %v906, %v1459
      %1461 = vdwg.mxu0
      %1462 = vmatpush.msra.mxu0 0.0
      %1463 = vmatpush.msra.mxu0 0.0
      %1464 = vmatpush.msra.mxu0 0.0
      %1465 = vmatpush.msra.mxu0 0.0
      %1466 = vmatpush.msra.mxu0 0.0
      %1467 = vmatpush.msra.mxu0 0.0
      %1468 = vmatpush.msra.mxu0 0.0
      %1469 = vmatpush.msra.mxu0 0.0
      %1470 = vmatpush.msra.mxu0 %v886
      %1471 = vmatpush.msra.mxu0 %v870
      %1472 = vmatpush.msra.mxu0 %v854
      %1473 = vmatpush.msra.mxu0 %v838
      %1474 = vmatpush.msra.mxu0 %v822
      %1475 = vmatpush.msra.mxu0 %v806
      %1476 = vmatpush.msra.mxu0 %v790
      %1477 = vmatpush.msra.mxu0 %v774
      %1478 = vmatmul.f32.gmra.mxu0 %v928
      %v1479 = vpop.f32.mrf.mxu0
      %v1480 = vadd.f32 %v1457, %v1479
      %1481 = vmatmul.f32.gmra.mxu0 %v931
      %v1482 = vpop.f32.mrf.mxu0
      %v1483 = vadd.f32 %v1460, %v1482
      %1484 = vdwg.mxu0
      %1485 = vmatpush.msra.mxu0 %v759
      %1486 = vmatpush.msra.mxu0 %v743
      %1487 = vmatpush.msra.mxu0 %v727
      %1488 = vmatpush.msra.mxu0 %v711
      %1489 = vmatpush.msra.mxu0 %v695
      %1490 = vmatpush.msra.mxu0 %v679
      %1491 = vmatpush.msra.mxu0 %v663
      %1492 = vmatpush.msra.mxu0 %v647
      %1493 = vmatpush.msra.mxu0 %v631
      %1494 = vmatpush.msra.mxu0 %v615
      %1495 = vmatpush.msra.mxu0 %v599
      %1496 = vmatpush.msra.mxu0 %v583
      %1497 = vmatpush.msra.mxu0 %v567
      %1498 = vmatpush.msra.mxu0 %v551
      %1499 = vmatpush.msra.mxu0 %v535
      %1500 = vmatpush.msra.mxu0 %v519
      %1501 = vmatmul.f32.gmra.mxu0 %v505
      %v1502 = vpop.f32.mrf.mxu0
      %v1503 = vadd.f32 %v907, %v1502
      %1504 = vmatmul.f32.gmra.mxu0 %v506
      %v1505 = vpop.f32.mrf.mxu0
      %v1506 = vadd.f32 %v907, %v1505
      %1507 = vdwg.mxu0
      %1508 = vmatpush.msra.mxu0 0.0
      %1509 = vmatpush.msra.mxu0 0.0
      %1510 = vmatpush.msra.mxu0 0.0
      %1511 = vmatpush.msra.mxu0 0.0
      %1512 = vmatpush.msra.mxu0 0.0
      %1513 = vmatpush.msra.mxu0 0.0
      %1514 = vmatpush.msra.mxu0 0.0
      %1515 = vmatpush.msra.mxu0 0.0
      %1516 = vmatpush.msra.mxu0 %v887
      %1517 = vmatpush.msra.mxu0 %v871
      %1518 = vmatpush.msra.mxu0 %v855
      %1519 = vmatpush.msra.mxu0 %v839
      %1520 = vmatpush.msra.mxu0 %v823
      %1521 = vmatpush.msra.mxu0 %v807
      %1522 = vmatpush.msra.mxu0 %v791
      %1523 = vmatpush.msra.mxu0 %v775
      %1524 = vmatmul.f32.gmra.mxu0 %v928
      %v1525 = vpop.f32.mrf.mxu0
      %v1526 = vadd.f32 %v1503, %v1525
      %1527 = vmatmul.f32.gmra.mxu0 %v931
      %v1528 = vpop.f32.mrf.mxu0
      %v1529 = vadd.f32 %v1506, %v1528
      %1530 = vdwg.mxu0
      %1531 = vmatpush.msra.mxu0 %v760
      %1532 = vmatpush.msra.mxu0 %v744
      %1533 = vmatpush.msra.mxu0 %v728
      %1534 = vmatpush.msra.mxu0 %v712
      %1535 = vmatpush.msra.mxu0 %v696
      %1536 = vmatpush.msra.mxu0 %v680
      %1537 = vmatpush.msra.mxu0 %v664
      %1538 = vmatpush.msra.mxu0 %v648
      %1539 = vmatpush.msra.mxu0 %v632
      %1540 = vmatpush.msra.mxu0 %v616
      %1541 = vmatpush.msra.mxu0 %v600
      %1542 = vmatpush.msra.mxu0 %v584
      %1543 = vmatpush.msra.mxu0 %v568
      %1544 = vmatpush.msra.mxu0 %v552
      %1545 = vmatpush.msra.mxu0 %v536
      %1546 = vmatpush.msra.mxu0 %v520
      %1547 = vmatmul.f32.gmra.mxu0 %v505
      %v1548 = vpop.f32.mrf.mxu0
      %v1549 = vadd.f32 %v908, %v1548
      %1550 = vmatmul.f32.gmra.mxu0 %v506
      %v1551 = vpop.f32.mrf.mxu0
      %v1552 = vadd.f32 %v908, %v1551
      %1553 = vdwg.mxu0
      %1554 = vmatpush.msra.mxu0 0.0
      %1555 = vmatpush.msra.mxu0 0.0
      %1556 = vmatpush.msra.mxu0 0.0
      %1557 = vmatpush.msra.mxu0 0.0
      %1558 = vmatpush.msra.mxu0 0.0
      %1559 = vmatpush.msra.mxu0 0.0
      %1560 = vmatpush.msra.mxu0 0.0
      %1561 = vmatpush.msra.mxu0 0.0
      %1562 = vmatpush.msra.mxu0 %v888
      %1563 = vmatpush.msra.mxu0 %v872
      %1564 = vmatpush.msra.mxu0 %v856
      %1565 = vmatpush.msra.mxu0 %v840
      %1566 = vmatpush.msra.mxu0 %v824
      %1567 = vmatpush.msra.mxu0 %v808
      %1568 = vmatpush.msra.mxu0 %v792
      %1569 = vmatpush.msra.mxu0 %v776
      %1570 = vmatmul.f32.gmra.mxu0 %v928
      %v1571 = vpop.f32.mrf.mxu0
      %v1572 = vadd.f32 %v1549, %v1571
      %1573 = vmatmul.f32.gmra.mxu0 %v931
      %v1574 = vpop.f32.mrf.mxu0
      %v1575 = vadd.f32 %v1552, %v1574
      %1576 = vdwg.mxu0
      %1577 = vmatpush.msra.mxu0 %v761
      %1578 = vmatpush.msra.mxu0 %v745
      %1579 = vmatpush.msra.mxu0 %v729
      %1580 = vmatpush.msra.mxu0 %v713
      %1581 = vmatpush.msra.mxu0 %v697
      %1582 = vmatpush.msra.mxu0 %v681
      %1583 = vmatpush.msra.mxu0 %v665
      %1584 = vmatpush.msra.mxu0 %v649
      %1585 = vmatpush.msra.mxu0 %v633
      %1586 = vmatpush.msra.mxu0 %v617
      %1587 = vmatpush.msra.mxu0 %v601
      %1588 = vmatpush.msra.mxu0 %v585
      %1589 = vmatpush.msra.mxu0 %v569
      %1590 = vmatpush.msra.mxu0 %v553
      %1591 = vmatpush.msra.mxu0 %v537
      %1592 = vmatpush.msra.mxu0 %v521
      %1593 = vmatmul.f32.gmra.mxu0 %v505
      %v1594 = vpop.f32.mrf.mxu0
      %v1595 = vadd.f32 %v909, %v1594
      %1596 = vmatmul.f32.gmra.mxu0 %v506
      %v1597 = vpop.f32.mrf.mxu0
      %v1598 = vadd.f32 %v909, %v1597
      %1599 = vdwg.mxu0
      %1600 = vmatpush.msra.mxu0 0.0
      %1601 = vmatpush.msra.mxu0 0.0
      %1602 = vmatpush.msra.mxu0 0.0
      %1603 = vmatpush.msra.mxu0 0.0
      %1604 = vmatpush.msra.mxu0 0.0
      %1605 = vmatpush.msra.mxu0 0.0
      %1606 = vmatpush.msra.mxu0 0.0
      %1607 = vmatpush.msra.mxu0 0.0
      %1608 = vmatpush.msra.mxu0 %v889
      %1609 = vmatpush.msra.mxu0 %v873
      %1610 = vmatpush.msra.mxu0 %v857
      %1611 = vmatpush.msra.mxu0 %v841
      %1612 = vmatpush.msra.mxu0 %v825
      %1613 = vmatpush.msra.mxu0 %v809
      %1614 = vmatpush.msra.mxu0 %v793
      %1615 = vmatpush.msra.mxu0 %v777
      %1616 = vmatmul.f32.gmra.mxu0 %v928
      %v1617 = vpop.f32.mrf.mxu0
      %v1618 = vadd.f32 %v1595, %v1617
      %1619 = vmatmul.f32.gmra.mxu0 %v931
      %v1620 = vpop.f32.mrf.mxu0
      %v1621 = vadd.f32 %v1598, %v1620
      %1622 = vdwg.mxu0
      %1623 = vmatpush.msra.mxu0 %v762
      %1624 = vmatpush.msra.mxu0 %v746
      %1625 = vmatpush.msra.mxu0 %v730
      %1626 = vmatpush.msra.mxu0 %v714
      %1627 = vmatpush.msra.mxu0 %v698
      %1628 = vmatpush.msra.mxu0 %v682
      %1629 = vmatpush.msra.mxu0 %v666
      %1630 = vmatpush.msra.mxu0 %v650
      %1631 = vmatpush.msra.mxu0 %v634
      %1632 = vmatpush.msra.mxu0 %v618
      %1633 = vmatpush.msra.mxu0 %v602
      %1634 = vmatpush.msra.mxu0 %v586
      %1635 = vmatpush.msra.mxu0 %v570
      %1636 = vmatpush.msra.mxu0 %v554
      %1637 = vmatpush.msra.mxu0 %v538
      %1638 = vmatpush.msra.mxu0 %v522
      %1639 = vmatmul.f32.gmra.mxu0 %v505
      %v1640 = vpop.f32.mrf.mxu0
      %v1641 = vadd.f32 %v910, %v1640
      %1642 = vmatmul.f32.gmra.mxu0 %v506
      %v1643 = vpop.f32.mrf.mxu0
      %v1644 = vadd.f32 %v910, %v1643
      %1645 = vdwg.mxu0
      %1646 = vmatpush.msra.mxu0 0.0
      %1647 = vmatpush.msra.mxu0 0.0
      %1648 = vmatpush.msra.mxu0 0.0
      %1649 = vmatpush.msra.mxu0 0.0
      %1650 = vmatpush.msra.mxu0 0.0
      %1651 = vmatpush.msra.mxu0 0.0
      %1652 = vmatpush.msra.mxu0 0.0
      %1653 = vmatpush.msra.mxu0 0.0
      %1654 = vmatpush.msra.mxu0 %v890
      %1655 = vmatpush.msra.mxu0 %v874
      %1656 = vmatpush.msra.mxu0 %v858
      %1657 = vmatpush.msra.mxu0 %v842
      %1658 = vmatpush.msra.mxu0 %v826
      %1659 = vmatpush.msra.mxu0 %v810
      %1660 = vmatpush.msra.mxu0 %v794
      %1661 = vmatpush.msra.mxu0 %v778
      %1662 = vmatmul.f32.gmra.mxu0 %v928
      %v1663 = vpop.f32.mrf.mxu0
      %v1664 = vadd.f32 %v1641, %v1663
      %1665 = vmatmul.f32.gmra.mxu0 %v931
      %v1666 = vpop.f32.mrf.mxu0
      %v1667 = vadd.f32 %v1644, %v1666
      %1668 = vdwg.mxu0
      %v1669 = vmax.f32 %v974, 0.0
      %v1670 = vmax.f32 %v1020, 0.0
      %v1671 = vmax.f32 %v1066, 0.0
      %v1672 = vmax.f32 %v1112, 0.0
      %v1673 = vmax.f32 %v1158, 0.0
      %v1674 = vmax.f32 %v1204, 0.0
      %v1675 = vmax.f32 %v1250, 0.0
      %v1676 = vmax.f32 %v1296, 0.0
      %v1677 = vmax.f32 %v1342, 0.0
      %v1678 = vmax.f32 %v1388, 0.0
      %v1679 = vmax.f32 %v1434, 0.0
      %v1680 = vmax.f32 %v1480, 0.0
      %v1681 = vmax.f32 %v1526, 0.0
      %v1682 = vmax.f32 %v1572, 0.0
      %v1683 = vmax.f32 %v1618, 0.0
      %v1684 = vmax.f32 %v1664, 0.0
      %v1685 = vmax.f32 %v977, 0.0
      %v1686 = vmax.f32 %v1023, 0.0
      %v1687 = vmax.f32 %v1069, 0.0
      %v1688 = vmax.f32 %v1115, 0.0
      %v1689 = vmax.f32 %v1161, 0.0
      %v1690 = vmax.f32 %v1207, 0.0
      %v1691 = vmax.f32 %v1253, 0.0
      %v1692 = vmax.f32 %v1299, 0.0
      %v1693 = vmax.f32 %v1345, 0.0
      %v1694 = vmax.f32 %v1391, 0.0
      %v1695 = vmax.f32 %v1437, 0.0
      %v1696 = vmax.f32 %v1483, 0.0
      %v1697 = vmax.f32 %v1529, 0.0
      %v1698 = vmax.f32 %v1575, 0.0
      %v1699 = vmax.f32 %v1621, 0.0
      %v1700 = vmax.f32 %v1667, 0.0
      %v1701 = vld [vmem:[%s3] sm:$0xff]
      %v1702 = vld [vmem:[%s3 + $0x8] sm:$0xff]
      %v1703 = vld [vmem:[%s3 + $0x10] sm:$0xff]
      %v1704 = vld [vmem:[%s3 + $0x18] sm:$0xff]
      %v1705 = vld [vmem:[%s3 + $0x20] sm:$0xff]
      %v1706 = vld [vmem:[%s3 + $0x28] sm:$0xff]
      %v1707 = vld [vmem:[%s3 + $0x30] sm:$0xff]
      %v1708 = vld [vmem:[%s3 + $0x38] sm:$0xff]
      %v1709 = vld [vmem:[%s3 + $0x40] sm:$0xff]
      %v1710 = vld [vmem:[%s3 + $0x48] sm:$0xff]
      %v1711 = vld [vmem:[%s3 + $0x50] sm:$0xff]
      %v1712 = vld [vmem:[%s3 + $0x58] sm:$0xff]
      %v1713 = vld [vmem:[%s3 + $0x60] sm:$0xff]
      %v1714 = vld [vmem:[%s3 + $0x68] sm:$0xff]
      %v1715 = vld [vmem:[%s3 + $0x70] sm:$0xff]
      %v1716 = vld [vmem:[%s3 + $0x78] sm:$0xff]
      %v1717 = vld [vmem:[%s3 + $0x80] sm:$0xff]
      %v1718 = vld [vmem:[%s3 + $0x88] sm:$0xff]
      %v1719 = vld [vmem:[%s3 + $0x90] sm:$0xff]
      %v1720 = vld [vmem:[%s3 + $0x98] sm:$0xff]
      %v1721 = vld [vmem:[%s3 + $0xa0] sm:$0xff]
      %v1722 = vld [vmem:[%s3 + $0xa8] sm:$0xff]
      %v1723 = vld [vmem:[%s3 + $0xb0] sm:$0xff]
      %v1724 = vld [vmem:[%s3 + $0xb8] sm:$0xff]
      %v1725 = vld [vmem:[%s3 + $0xc0] sm:$0xff]
      %v1726 = vld [vmem:[%s3 + $0xc8] sm:$0xff]
      %v1727 = vld [vmem:[%s3 + $0xd0] sm:$0xff]
      %v1728 = vld [vmem:[%s3 + $0xd8] sm:$0xff]
      %v1729 = vld [vmem:[%s3 + $0xe0] sm:$0xff]
      %v1730 = vld [vmem:[%s3 + $0xe8] sm:$0xff]
      %v1731 = vld [vmem:[%s3 + $0xf0] sm:$0xff]
      %v1732 = vld [vmem:[%s3 + $0xf8] sm:$0xff]
      %v1733 = vld [vmem:[%s3 + $0x100] sm:$0xff]
      %v1734 = vld [vmem:[%s3 + $0x108] sm:$0xff]
      %v1735 = vld [vmem:[%s3 + $0x110] sm:$0xff]
      %v1736 = vld [vmem:[%s3 + $0x118] sm:$0xff]
      %v1737 = vld [vmem:[%s3 + $0x120] sm:$0xff]
      %v1738 = vld [vmem:[%s3 + $0x128] sm:$0xff]
      %v1739 = vld [vmem:[%s3 + $0x130] sm:$0xff]
      %v1740 = vld [vmem:[%s3 + $0x138] sm:$0xff]
      %v1741 = vld [vmem:[%s3 + $0x140] sm:$0xff]
      %v1742 = vld [vmem:[%s3 + $0x148] sm:$0xff]
      %v1743 = vld [vmem:[%s3 + $0x150] sm:$0xff]
      %v1744 = vld [vmem:[%s3 + $0x158] sm:$0xff]
      %v1745 = vld [vmem:[%s3 + $0x160] sm:$0xff]
      %v1746 = vld [vmem:[%s3 + $0x168] sm:$0xff]
      %v1747 = vld [vmem:[%s3 + $0x170] sm:$0xff]
      %v1748 = vld [vmem:[%s3 + $0x178] sm:$0xff]
      %v1749 = vld [vmem:[%s3 + $0x180] sm:$0xff]
      %v1750 = vld [vmem:[%s3 + $0x188] sm:$0xff]
      %v1751 = vld [vmem:[%s3 + $0x190] sm:$0xff]
      %v1752 = vld [vmem:[%s3 + $0x198] sm:$0xff]
      %v1753 = vld [vmem:[%s3 + $0x1a0] sm:$0xff]
      %v1754 = vld [vmem:[%s3 + $0x1a8] sm:$0xff]
      %v1755 = vld [vmem:[%s3 + $0x1b0] sm:$0xff]
      %v1756 = vld [vmem:[%s3 + $0x1b8] sm:$0xff]
      %v1757 = vld [vmem:[%s3 + $0x1c0] sm:$0xff]
      %v1758 = vld [vmem:[%s3 + $0x1c8] sm:$0xff]
      %v1759 = vld [vmem:[%s3 + $0x1d0] sm:$0xff]
      %v1760 = vld [vmem:[%s3 + $0x1d8] sm:$0xff]
      %v1761 = vld [vmem:[%s3 + $0x1e0] sm:$0xff]
      %v1762 = vld [vmem:[%s3 + $0x1e8] sm:$0xff]
      %v1763 = vld [vmem:[%s3 + $0x1f0] sm:$0xff]
      %v1764 = vld [vmem:[%s3 + $0x1f8] sm:$0xff]
      %v1765 = vld [vmem:[%s3 + $0x200] sm:$0xff]
      %v1766 = vld [vmem:[%s3 + $0x208] sm:$0xff]
      %v1767 = vld [vmem:[%s3 + $0x210] sm:$0xff]
      %v1768 = vld [vmem:[%s3 + $0x218] sm:$0xff]
      %v1769 = vld [vmem:[%s3 + $0x220] sm:$0xff]
      %v1770 = vld [vmem:[%s3 + $0x228] sm:$0xff]
      %v1771 = vld [vmem:[%s3 + $0x230] sm:$0xff]
      %v1772 = vld [vmem:[%s3 + $0x238] sm:$0xff]
      %v1773 = vld [vmem:[%s3 + $0x240] sm:$0xff]
      %v1774 = vld [vmem:[%s3 + $0x248] sm:$0xff]
      %v1775 = vld [vmem:[%s3 + $0x250] sm:$0xff]
      %v1776 = vld [vmem:[%s3 + $0x258] sm:$0xff]
      %v1777 = vld [vmem:[%s3 + $0x260] sm:$0xff]
      %v1778 = vld [vmem:[%s3 + $0x268] sm:$0xff]
      %v1779 = vld [vmem:[%s3 + $0x270] sm:$0xff]
      %v1780 = vld [vmem:[%s3 + $0x278] sm:$0xff]
      %v1781 = vld [vmem:[%s3 + $0x280] sm:$0xff]
      %v1782 = vld [vmem:[%s3 + $0x288] sm:$0xff]
      %v1783 = vld [vmem:[%s3 + $0x290] sm:$0xff]
      %v1784 = vld [vmem:[%s3 + $0x298] sm:$0xff]
      %v1785 = vld [vmem:[%s3 + $0x2a0] sm:$0xff]
      %v1786 = vld [vmem:[%s3 + $0x2a8] sm:$0xff]
      %v1787 = vld [vmem:[%s3 + $0x2b0] sm:$0xff]
      %v1788 = vld [vmem:[%s3 + $0x2b8] sm:$0xff]
      %v1789 = vld [vmem:[%s3 + $0x2c0] sm:$0xff]
      %v1790 = vld [vmem:[%s3 + $0x2c8] sm:$0xff]
      %v1791 = vld [vmem:[%s3 + $0x2d0] sm:$0xff]
      %v1792 = vld [vmem:[%s3 + $0x2d8] sm:$0xff]
      %v1793 = vld [vmem:[%s3 + $0x2e0] sm:$0xff]
      %v1794 = vld [vmem:[%s3 + $0x2e8] sm:$0xff]
      %v1795 = vld [vmem:[%s3 + $0x2f0] sm:$0xff]
      %v1796 = vld [vmem:[%s3 + $0x2f8] sm:$0xff]
      %v1797 = vld [vmem:[%s3 + $0x300] sm:$0xff]
      %v1798 = vld [vmem:[%s3 + $0x308] sm:$0xff]
      %v1799 = vld [vmem:[%s3 + $0x310] sm:$0xff]
      %v1800 = vld [vmem:[%s3 + $0x318] sm:$0xff]
      %v1801 = vld [vmem:[%s3 + $0x320] sm:$0xff]
      %v1802 = vld [vmem:[%s3 + $0x328] sm:$0xff]
      %v1803 = vld [vmem:[%s3 + $0x330] sm:$0xff]
      %v1804 = vld [vmem:[%s3 + $0x338] sm:$0xff]
      %v1805 = vld [vmem:[%s3 + $0x340] sm:$0xff]
      %v1806 = vld [vmem:[%s3 + $0x348] sm:$0xff]
      %v1807 = vld [vmem:[%s3 + $0x350] sm:$0xff]
      %v1808 = vld [vmem:[%s3 + $0x358] sm:$0xff]
      %v1809 = vld [vmem:[%s3 + $0x360] sm:$0xff]
      %v1810 = vld [vmem:[%s3 + $0x368] sm:$0xff]
      %v1811 = vld [vmem:[%s3 + $0x370] sm:$0xff]
      %v1812 = vld [vmem:[%s3 + $0x378] sm:$0xff]
      %v1813 = vld [vmem:[%s3 + $0x380] sm:$0xff]
      %v1814 = vld [vmem:[%s3 + $0x388] sm:$0xff]
      %v1815 = vld [vmem:[%s3 + $0x390] sm:$0xff]
      %v1816 = vld [vmem:[%s3 + $0x398] sm:$0xff]
      %v1817 = vld [vmem:[%s3 + $0x3a0] sm:$0xff]
      %v1818 = vld [vmem:[%s3 + $0x3a8] sm:$0xff]
      %v1819 = vld [vmem:[%s3 + $0x3b0] sm:$0xff]
      %v1820 = vld [vmem:[%s3 + $0x3b8] sm:$0xff]
      %v1821 = vld [vmem:[%s3 + $0x3c0] sm:$0xff]
      %v1822 = vld [vmem:[%s3 + $0x3c8] sm:$0xff]
      %v1823 = vld [vmem:[%s3 + $0x3d0] sm:$0xff]
      %v1824 = vld [vmem:[%s3 + $0x3d8] sm:$0xff]
      %v1825 = vld [vmem:[%s3 + $0x3e0] sm:$0xff]
      %v1826 = vld [vmem:[%s3 + $0x3e8] sm:$0xff]
      %v1827 = vld [vmem:[%s3 + $0x3f0] sm:$0xff]
      %v1828 = vld [vmem:[%s3 + $0x3f8] sm:$0xff]
      %v1829 = vld [vmem:[%s3 + $0x400] sm:$0xff]
      %v1830 = vld [vmem:[%s3 + $0x408] sm:$0xff]
      %v1831 = vld [vmem:[%s3 + $0x410] sm:$0xff]
      %v1832 = vld [vmem:[%s3 + $0x418] sm:$0xff]
      %v1833 = vld [vmem:[%s3 + $0x420] sm:$0xff]
      %v1834 = vld [vmem:[%s3 + $0x428] sm:$0xff]
      %v1835 = vld [vmem:[%s3 + $0x430] sm:$0xff]
      %v1836 = vld [vmem:[%s3 + $0x438] sm:$0xff]
      %v1837 = vld [vmem:[%s3 + $0x440] sm:$0xff]
      %v1838 = vld [vmem:[%s3 + $0x448] sm:$0xff]
      %v1839 = vld [vmem:[%s3 + $0x450] sm:$0xff]
      %v1840 = vld [vmem:[%s3 + $0x458] sm:$0xff]
      %v1841 = vld [vmem:[%s3 + $0x460] sm:$0xff]
      %v1842 = vld [vmem:[%s3 + $0x468] sm:$0xff]
      %v1843 = vld [vmem:[%s3 + $0x470] sm:$0xff]
      %v1844 = vld [vmem:[%s3 + $0x478] sm:$0xff]
      %v1845 = vld [vmem:[%s3 + $0x480] sm:$0xff]
      %v1846 = vld [vmem:[%s3 + $0x488] sm:$0xff]
      %v1847 = vld [vmem:[%s3 + $0x490] sm:$0xff]
      %v1848 = vld [vmem:[%s3 + $0x498] sm:$0xff]
      %v1849 = vld [vmem:[%s3 + $0x4a0] sm:$0xff]
      %v1850 = vld [vmem:[%s3 + $0x4a8] sm:$0xff]
      %v1851 = vld [vmem:[%s3 + $0x4b0] sm:$0xff]
      %v1852 = vld [vmem:[%s3 + $0x4b8] sm:$0xff]
      %v1853 = vld [vmem:[%s3 + $0x4c0] sm:$0xff]
      %v1854 = vld [vmem:[%s3 + $0x4c8] sm:$0xff]
      %v1855 = vld [vmem:[%s3 + $0x4d0] sm:$0xff]
      %v1856 = vld [vmem:[%s3 + $0x4d8] sm:$0xff]
      %v1857 = vld [vmem:[%s3 + $0x4e0] sm:$0xff]
      %v1858 = vld [vmem:[%s3 + $0x4e8] sm:$0xff]
      %v1859 = vld [vmem:[%s3 + $0x4f0] sm:$0xff]
      %v1860 = vld [vmem:[%s3 + $0x4f8] sm:$0xff]
      %v1861 = vld [vmem:[%s3 + $0x500] sm:$0xff]
      %v1862 = vld [vmem:[%s3 + $0x508] sm:$0xff]
      %v1863 = vld [vmem:[%s3 + $0x510] sm:$0xff]
      %v1864 = vld [vmem:[%s3 + $0x518] sm:$0xff]
      %v1865 = vld [vmem:[%s3 + $0x520] sm:$0xff]
      %v1866 = vld [vmem:[%s3 + $0x528] sm:$0xff]
      %v1867 = vld [vmem:[%s3 + $0x530] sm:$0xff]
      %v1868 = vld [vmem:[%s3 + $0x538] sm:$0xff]
      %v1869 = vld [vmem:[%s3 + $0x540] sm:$0xff]
      %v1870 = vld [vmem:[%s3 + $0x548] sm:$0xff]
      %v1871 = vld [vmem:[%s3 + $0x550] sm:$0xff]
      %v1872 = vld [vmem:[%s3 + $0x558] sm:$0xff]
      %v1873 = vld [vmem:[%s3 + $0x560] sm:$0xff]
      %v1874 = vld [vmem:[%s3 + $0x568] sm:$0xff]
      %v1875 = vld [vmem:[%s3 + $0x570] sm:$0xff]
      %v1876 = vld [vmem:[%s3 + $0x578] sm:$0xff]
      %v1877 = vld [vmem:[%s3 + $0x580] sm:$0xff]
      %v1878 = vld [vmem:[%s3 + $0x588] sm:$0xff]
      %v1879 = vld [vmem:[%s3 + $0x590] sm:$0xff]
      %v1880 = vld [vmem:[%s3 + $0x598] sm:$0xff]
      %v1881 = vld [vmem:[%s3 + $0x5a0] sm:$0xff]
      %v1882 = vld [vmem:[%s3 + $0x5a8] sm:$0xff]
      %v1883 = vld [vmem:[%s3 + $0x5b0] sm:$0xff]
      %v1884 = vld [vmem:[%s3 + $0x5b8] sm:$0xff]
      %v1885 = vld [vmem:[%s3 + $0x5c0] sm:$0xff]
      %v1886 = vld [vmem:[%s3 + $0x5c8] sm:$0xff]
      %v1887 = vld [vmem:[%s3 + $0x5d0] sm:$0xff]
      %v1888 = vld [vmem:[%s3 + $0x5d8] sm:$0xff]
      %v1889 = vld [vmem:[%s3 + $0x5e0] sm:$0xff]
      %v1890 = vld [vmem:[%s3 + $0x5e8] sm:$0xff]
      %v1891 = vld [vmem:[%s3 + $0x5f0] sm:$0xff]
      %v1892 = vld [vmem:[%s3 + $0x5f8] sm:$0xff]
      %v1893 = vld [vmem:[%s3 + $0x600] sm:$0xff]
      %v1894 = vld [vmem:[%s3 + $0x608] sm:$0xff]
      %v1895 = vld [vmem:[%s3 + $0x610] sm:$0xff]
      %v1896 = vld [vmem:[%s3 + $0x618] sm:$0xff]
      %v1897 = vld [vmem:[%s3 + $0x620] sm:$0xff]
      %v1898 = vld [vmem:[%s3 + $0x628] sm:$0xff]
      %v1899 = vld [vmem:[%s3 + $0x630] sm:$0xff]
      %v1900 = vld [vmem:[%s3 + $0x638] sm:$0xff]
      %v1901 = vld [vmem:[%s3 + $0x640] sm:$0xff]
      %v1902 = vld [vmem:[%s3 + $0x648] sm:$0xff]
      %v1903 = vld [vmem:[%s3 + $0x650] sm:$0xff]
      %v1904 = vld [vmem:[%s3 + $0x658] sm:$0xff]
      %v1905 = vld [vmem:[%s3 + $0x660] sm:$0xff]
      %v1906 = vld [vmem:[%s3 + $0x668] sm:$0xff]
      %v1907 = vld [vmem:[%s3 + $0x670] sm:$0xff]
      %v1908 = vld [vmem:[%s3 + $0x678] sm:$0xff]
      %v1909 = vld [vmem:[%s3 + $0x680] sm:$0xff]
      %v1910 = vld [vmem:[%s3 + $0x688] sm:$0xff]
      %v1911 = vld [vmem:[%s3 + $0x690] sm:$0xff]
      %v1912 = vld [vmem:[%s3 + $0x698] sm:$0xff]
      %v1913 = vld [vmem:[%s3 + $0x6a0] sm:$0xff]
      %v1914 = vld [vmem:[%s3 + $0x6a8] sm:$0xff]
      %v1915 = vld [vmem:[%s3 + $0x6b0] sm:$0xff]
      %v1916 = vld [vmem:[%s3 + $0x6b8] sm:$0xff]
      %v1917 = vld [vmem:[%s3 + $0x6c0] sm:$0xff]
      %v1918 = vld [vmem:[%s3 + $0x6c8] sm:$0xff]
      %v1919 = vld [vmem:[%s3 + $0x6d0] sm:$0xff]
      %v1920 = vld [vmem:[%s3 + $0x6d8] sm:$0xff]
      %v1921 = vld [vmem:[%s3 + $0x6e0] sm:$0xff]
      %v1922 = vld [vmem:[%s3 + $0x6e8] sm:$0xff]
      %v1923 = vld [vmem:[%s3 + $0x6f0] sm:$0xff]
      %v1924 = vld [vmem:[%s3 + $0x6f8] sm:$0xff]
      %v1925 = vld [vmem:[%s3 + $0x700] sm:$0xff]
      %v1926 = vld [vmem:[%s3 + $0x708] sm:$0xff]
      %v1927 = vld [vmem:[%s3 + $0x710] sm:$0xff]
      %v1928 = vld [vmem:[%s3 + $0x718] sm:$0xff]
      %v1929 = vld [vmem:[%s3 + $0x720] sm:$0xff]
      %v1930 = vld [vmem:[%s3 + $0x728] sm:$0xff]
      %v1931 = vld [vmem:[%s3 + $0x730] sm:$0xff]
      %v1932 = vld [vmem:[%s3 + $0x738] sm:$0xff]
      %v1933 = vld [vmem:[%s3 + $0x740] sm:$0xff]
      %v1934 = vld [vmem:[%s3 + $0x748] sm:$0xff]
      %v1935 = vld [vmem:[%s3 + $0x750] sm:$0xff]
      %v1936 = vld [vmem:[%s3 + $0x758] sm:$0xff]
      %v1937 = vld [vmem:[%s3 + $0x760] sm:$0xff]
      %v1938 = vld [vmem:[%s3 + $0x768] sm:$0xff]
      %v1939 = vld [vmem:[%s3 + $0x770] sm:$0xff]
      %v1940 = vld [vmem:[%s3 + $0x778] sm:$0xff]
      %v1941 = vld [vmem:[%s3 + $0x780] sm:$0xff]
      %v1942 = vld [vmem:[%s3 + $0x788] sm:$0xff]
      %v1943 = vld [vmem:[%s3 + $0x790] sm:$0xff]
      %v1944 = vld [vmem:[%s3 + $0x798] sm:$0xff]
      %v1945 = vld [vmem:[%s3 + $0x7a0] sm:$0xff]
      %v1946 = vld [vmem:[%s3 + $0x7a8] sm:$0xff]
      %v1947 = vld [vmem:[%s3 + $0x7b0] sm:$0xff]
      %v1948 = vld [vmem:[%s3 + $0x7b8] sm:$0xff]
      %v1949 = vld [vmem:[%s3 + $0x7c0] sm:$0xff]
      %v1950 = vld [vmem:[%s3 + $0x7c8] sm:$0xff]
      %v1951 = vld [vmem:[%s3 + $0x7d0] sm:$0xff]
      %v1952 = vld [vmem:[%s3 + $0x7d8] sm:$0xff]
      %v1953 = vld [vmem:[%s3 + $0x7e0] sm:$0xff]
      %v1954 = vld [vmem:[%s3 + $0x7e8] sm:$0xff]
      %v1955 = vld [vmem:[%s3 + $0x7f0] sm:$0xff]
      %v1956 = vld [vmem:[%s3 + $0x7f8] sm:$0xff]
      %v1957 = vld [vmem:[%s3 + $0x800] sm:$0xff]
      %v1958 = vld [vmem:[%s3 + $0x808] sm:$0xff]
      %v1959 = vld [vmem:[%s3 + $0x810] sm:$0xff]
      %v1960 = vld [vmem:[%s3 + $0x818] sm:$0xff]
      %v1961 = vld [vmem:[%s3 + $0x820] sm:$0xff]
      %v1962 = vld [vmem:[%s3 + $0x828] sm:$0xff]
      %v1963 = vld [vmem:[%s3 + $0x830] sm:$0xff]
      %v1964 = vld [vmem:[%s3 + $0x838] sm:$0xff]
      %v1965 = vld [vmem:[%s3 + $0x840] sm:$0xff]
      %v1966 = vld [vmem:[%s3 + $0x848] sm:$0xff]
      %v1967 = vld [vmem:[%s3 + $0x850] sm:$0xff]
      %v1968 = vld [vmem:[%s3 + $0x858] sm:$0xff]
      %v1969 = vld [vmem:[%s3 + $0x860] sm:$0xff]
      %v1970 = vld [vmem:[%s3 + $0x868] sm:$0xff]
      %v1971 = vld [vmem:[%s3 + $0x870] sm:$0xff]
      %v1972 = vld [vmem:[%s3 + $0x878] sm:$0xff]
      %v1973 = vld [vmem:[%s3 + $0x880] sm:$0xff]
      %v1974 = vld [vmem:[%s3 + $0x888] sm:$0xff]
      %v1975 = vld [vmem:[%s3 + $0x890] sm:$0xff]
      %v1976 = vld [vmem:[%s3 + $0x898] sm:$0xff]
      %v1977 = vld [vmem:[%s3 + $0x8a0] sm:$0xff]
      %v1978 = vld [vmem:[%s3 + $0x8a8] sm:$0xff]
      %v1979 = vld [vmem:[%s3 + $0x8b0] sm:$0xff]
      %v1980 = vld [vmem:[%s3 + $0x8b8] sm:$0xff]
      %v1981 = vld [vmem:[%s3 + $0x8c0] sm:$0xff]
      %v1982 = vld [vmem:[%s3 + $0x8c8] sm:$0xff]
      %v1983 = vld [vmem:[%s3 + $0x8d0] sm:$0xff]
      %v1984 = vld [vmem:[%s3 + $0x8d8] sm:$0xff]
      %v1985 = vld [vmem:[%s3 + $0x8e0] sm:$0xff]
      %v1986 = vld [vmem:[%s3 + $0x8e8] sm:$0xff]
      %v1987 = vld [vmem:[%s3 + $0x8f0] sm:$0xff]
      %v1988 = vld [vmem:[%s3 + $0x8f8] sm:$0xff]
      %v1989 = vld [vmem:[%s3 + $0x900] sm:$0xff]
      %v1990 = vld [vmem:[%s3 + $0x908] sm:$0xff]
      %v1991 = vld [vmem:[%s3 + $0x910] sm:$0xff]
      %v1992 = vld [vmem:[%s3 + $0x918] sm:$0xff]
      %v1993 = vld [vmem:[%s3 + $0x920] sm:$0xff]
      %v1994 = vld [vmem:[%s3 + $0x928] sm:$0xff]
      %v1995 = vld [vmem:[%s3 + $0x930] sm:$0xff]
      %v1996 = vld [vmem:[%s3 + $0x938] sm:$0xff]
      %v1997 = vld [vmem:[%s3 + $0x940] sm:$0xff]
      %v1998 = vld [vmem:[%s3 + $0x948] sm:$0xff]
      %v1999 = vld [vmem:[%s3 + $0x950] sm:$0xff]
      %v2000 = vld [vmem:[%s3 + $0x958] sm:$0xff]
      %v2001 = vld [vmem:[%s3 + $0x960] sm:$0xff]
      %v2002 = vld [vmem:[%s3 + $0x968] sm:$0xff]
      %v2003 = vld [vmem:[%s3 + $0x970] sm:$0xff]
      %v2004 = vld [vmem:[%s3 + $0x978] sm:$0xff]
      %v2005 = vld [vmem:[%s3 + $0x980] sm:$0xff]
      %v2006 = vld [vmem:[%s3 + $0x988] sm:$0xff]
      %v2007 = vld [vmem:[%s3 + $0x990] sm:$0xff]
      %v2008 = vld [vmem:[%s3 + $0x998] sm:$0xff]
      %v2009 = vld [vmem:[%s3 + $0x9a0] sm:$0xff]
      %v2010 = vld [vmem:[%s3 + $0x9a8] sm:$0xff]
      %v2011 = vld [vmem:[%s3 + $0x9b0] sm:$0xff]
      %v2012 = vld [vmem:[%s3 + $0x9b8] sm:$0xff]
      %v2013 = vld [vmem:[%s3 + $0x9c0] sm:$0xff]
      %v2014 = vld [vmem:[%s3 + $0x9c8] sm:$0xff]
      %v2015 = vld [vmem:[%s3 + $0x9d0] sm:$0xff]
      %v2016 = vld [vmem:[%s3 + $0x9d8] sm:$0xff]
      %v2017 = vld [vmem:[%s3 + $0x9e0] sm:$0xff]
      %v2018 = vld [vmem:[%s3 + $0x9e8] sm:$0xff]
      %v2019 = vld [vmem:[%s3 + $0x9f0] sm:$0xff]
      %v2020 = vld [vmem:[%s3 + $0x9f8] sm:$0xff]
      %v2021 = vld [vmem:[%s3 + $0xa00] sm:$0xff]
      %v2022 = vld [vmem:[%s3 + $0xa08] sm:$0xff]
      %v2023 = vld [vmem:[%s3 + $0xa10] sm:$0xff]
      %v2024 = vld [vmem:[%s3 + $0xa18] sm:$0xff]
      %v2025 = vld [vmem:[%s3 + $0xa20] sm:$0xff]
      %v2026 = vld [vmem:[%s3 + $0xa28] sm:$0xff]
      %v2027 = vld [vmem:[%s3 + $0xa30] sm:$0xff]
      %v2028 = vld [vmem:[%s3 + $0xa38] sm:$0xff]
      %v2029 = vld [vmem:[%s3 + $0xa40] sm:$0xff]
      %v2030 = vld [vmem:[%s3 + $0xa48] sm:$0xff]
      %v2031 = vld [vmem:[%s3 + $0xa50] sm:$0xff]
      %v2032 = vld [vmem:[%s3 + $0xa58] sm:$0xff]
      %v2033 = vld [vmem:[%s3 + $0xa60] sm:$0xff]
      %v2034 = vld [vmem:[%s3 + $0xa68] sm:$0xff]
      %v2035 = vld [vmem:[%s3 + $0xa70] sm:$0xff]
      %v2036 = vld [vmem:[%s3 + $0xa78] sm:$0xff]
      %v2037 = vld [vmem:[%s3 + $0xa80] sm:$0xff]
      %v2038 = vld [vmem:[%s3 + $0xa88] sm:$0xff]
      %v2039 = vld [vmem:[%s3 + $0xa90] sm:$0xff]
      %v2040 = vld [vmem:[%s3 + $0xa98] sm:$0xff]
      %v2041 = vld [vmem:[%s3 + $0xaa0] sm:$0xff]
      %v2042 = vld [vmem:[%s3 + $0xaa8] sm:$0xff]
      %v2043 = vld [vmem:[%s3 + $0xab0] sm:$0xff]
      %v2044 = vld [vmem:[%s3 + $0xab8] sm:$0xff]
      %v2045 = vld [vmem:[%s3 + $0xac0] sm:$0xff]
      %v2046 = vld [vmem:[%s3 + $0xac8] sm:$0xff]
      %v2047 = vld [vmem:[%s3 + $0xad0] sm:$0xff]
      %v2048 = vld [vmem:[%s3 + $0xad8] sm:$0xff]
      %v2049 = vld [vmem:[%s3 + $0xae0] sm:$0xff]
      %v2050 = vld [vmem:[%s3 + $0xae8] sm:$0xff]
      %v2051 = vld [vmem:[%s3 + $0xaf0] sm:$0xff]
      %v2052 = vld [vmem:[%s3 + $0xaf8] sm:$0xff]
      %v2053 = vld [vmem:[%s3 + $0xb00] sm:$0xff]
      %v2054 = vld [vmem:[%s3 + $0xb08] sm:$0xff]
      %v2055 = vld [vmem:[%s3 + $0xb10] sm:$0xff]
      %v2056 = vld [vmem:[%s3 + $0xb18] sm:$0xff]
      %v2057 = vld [vmem:[%s3 + $0xb20] sm:$0xff]
      %v2058 = vld [vmem:[%s3 + $0xb28] sm:$0xff]
      %v2059 = vld [vmem:[%s3 + $0xb30] sm:$0xff]
      %v2060 = vld [vmem:[%s3 + $0xb38] sm:$0xff]
      %v2061 = vld [vmem:[%s3 + $0xb40] sm:$0xff]
      %v2062 = vld [vmem:[%s3 + $0xb48] sm:$0xff]
      %v2063 = vld [vmem:[%s3 + $0xb50] sm:$0xff]
      %v2064 = vld [vmem:[%s3 + $0xb58] sm:$0xff]
      %v2065 = vld [vmem:[%s3 + $0xb60] sm:$0xff]
      %v2066 = vld [vmem:[%s3 + $0xb68] sm:$0xff]
      %v2067 = vld [vmem:[%s3 + $0xb70] sm:$0xff]
      %v2068 = vld [vmem:[%s3 + $0xb78] sm:$0xff]
      %v2069 = vld [vmem:[%s3 + $0xb80] sm:$0xff]
      %v2070 = vld [vmem:[%s3 + $0xb88] sm:$0xff]
      %v2071 = vld [vmem:[%s3 + $0xb90] sm:$0xff]
      %v2072 = vld [vmem:[%s3 + $0xb98] sm:$0xff]
      %v2073 = vld [vmem:[%s3 + $0xba0] sm:$0xff]
      %v2074 = vld [vmem:[%s3 + $0xba8] sm:$0xff]
      %v2075 = vld [vmem:[%s3 + $0xbb0] sm:$0xff]
      %v2076 = vld [vmem:[%s3 + $0xbb8] sm:$0xff]
      %v2077 = vld [vmem:[%s3 + $0xbc0] sm:$0xff]
      %v2078 = vld [vmem:[%s3 + $0xbc8] sm:$0xff]
      %v2079 = vld [vmem:[%s3 + $0xbd0] sm:$0xff]
      %v2080 = vld [vmem:[%s3 + $0xbd8] sm:$0xff]
      %v2081 = vld [vmem:[%s3 + $0xbe0] sm:$0xff]
      %v2082 = vld [vmem:[%s3 + $0xbe8] sm:$0xff]
      %v2083 = vld [vmem:[%s3 + $0xbf0] sm:$0xff]
      %v2084 = vld [vmem:[%s3 + $0xbf8] sm:$0xff]
      %v2085 = vld [vmem:[%s4] sm:$0xff]
      %v2086 = vld [vmem:[%s4 + $0x8] sm:$0xff]
      %v2089 = vperm.slane %v2085, 0
      %v2090 = vperm.slane %v2085, 1
      %v2091 = vperm.slane %v2085, 2
      %v2092 = vperm.slane %v2085, 3
      %v2093 = vperm.slane %v2085, 4
      %v2094 = vperm.slane %v2085, 5
      %v2095 = vperm.slane %v2085, 6
      %v2096 = vperm.slane %v2085, 7
      %v2097 = vperm.slane %v2086, 0
      %v2098 = vperm.slane %v2086, 1
      %v2099 = vperm.slane %v2086, 2
      %v2100 = vperm.slane %v2086, 3
      %v2101 = vperm.slane %v2086, 4
      %v2102 = vperm.slane %v2086, 5
      %v2103 = vperm.slane %v2086, 6
      %v2104 = vperm.slane %v2086, 7
      %2121 = vmatpush.msra.mxu0 %v1941
      %2122 = vmatpush.msra.mxu0 %v1925
      %2123 = vmatpush.msra.mxu0 %v1909
      %2124 = vmatpush.msra.mxu0 %v1893
      %2125 = vmatpush.msra.mxu0 %v1877
      %2126 = vmatpush.msra.mxu0 %v1861
      %2127 = vmatpush.msra.mxu0 %v1845
      %2128 = vmatpush.msra.mxu0 %v1829
      %2129 = vmatpush.msra.mxu0 %v1813
      %2130 = vmatpush.msra.mxu0 %v1797
      %2131 = vmatpush.msra.mxu0 %v1781
      %2132 = vmatpush.msra.mxu0 %v1765
      %2133 = vmatpush.msra.mxu0 %v1749
      %2134 = vmatpush.msra.mxu0 %v1733
      %2135 = vmatpush.msra.mxu0 %v1717
      %2136 = vmatpush.msra.mxu0 %v1701
      %2137 = vmatmul.f32.gmra.mxu0 %v505
      %v2138 = vpop.f32.mrf.mxu0
      %v2139 = vadd.f32 %v2089, %v2138
      %2140 = vmatmul.f32.gmra.mxu0 %v506
      %v2141 = vpop.f32.mrf.mxu0
      %v2142 = vadd.f32 %v2089, %v2141
      %2143 = vdwg.mxu0
      %2144 = vmatpush.msra.mxu0 0.0
      %2145 = vmatpush.msra.mxu0 0.0
      %2146 = vmatpush.msra.mxu0 0.0
      %2147 = vmatpush.msra.mxu0 0.0
      %2148 = vmatpush.msra.mxu0 0.0
      %2149 = vmatpush.msra.mxu0 0.0
      %2150 = vmatpush.msra.mxu0 0.0
      %2151 = vmatpush.msra.mxu0 0.0
      %2152 = vmatpush.msra.mxu0 %v2069
      %2153 = vmatpush.msra.mxu0 %v2053
      %2154 = vmatpush.msra.mxu0 %v2037
      %2155 = vmatpush.msra.mxu0 %v2021
      %2156 = vmatpush.msra.mxu0 %v2005
      %2157 = vmatpush.msra.mxu0 %v1989
      %2158 = vmatpush.msra.mxu0 %v1973
      %2159 = vmatpush.msra.mxu0 %v1957
      %2160 = vmatmul.f32.gmra.mxu0 %v928
      %v2161 = vpop.f32.mrf.mxu0
      %v2162 = vadd.f32 %v2139, %v2161
      %2163 = vmatmul.f32.gmra.mxu0 %v931
      %v2164 = vpop.f32.mrf.mxu0
      %v2165 = vadd.f32 %v2142, %v2164
      %2166 = vdwg.mxu0
      %2167 = vmatpush.msra.mxu0 %v1942
      %2168 = vmatpush.msra.mxu0 %v1926
      %2169 = vmatpush.msra.mxu0 %v1910
      %2170 = vmatpush.msra.mxu0 %v1894
      %2171 = vmatpush.msra.mxu0 %v1878
      %2172 = vmatpush.msra.mxu0 %v1862
      %2173 = vmatpush.msra.mxu0 %v1846
      %2174 = vmatpush.msra.mxu0 %v1830
      %2175 = vmatpush.msra.mxu0 %v1814
      %2176 = vmatpush.msra.mxu0 %v1798
      %2177 = vmatpush.msra.mxu0 %v1782
      %2178 = vmatpush.msra.mxu0 %v1766
      %2179 = vmatpush.msra.mxu0 %v1750
      %2180 = vmatpush.msra.mxu0 %v1734
      %2181 = vmatpush.msra.mxu0 %v1718
      %2182 = vmatpush.msra.mxu0 %v1702
      %2183 = vmatmul.f32.gmra.mxu0 %v505
      %v2184 = vpop.f32.mrf.mxu0
      %v2185 = vadd.f32 %v2090, %v2184
      %2186 = vmatmul.f32.gmra.mxu0 %v506
      %v2187 = vpop.f32.mrf.mxu0
      %v2188 = vadd.f32 %v2090, %v2187
      %2189 = vdwg.mxu0
      %2190 = vmatpush.msra.mxu0 0.0
      %2191 = vmatpush.msra.mxu0 0.0
      %2192 = vmatpush.msra.mxu0 0.0
      %2193 = vmatpush.msra.mxu0 0.0
      %2194 = vmatpush.msra.mxu0 0.0
      %2195 = vmatpush.msra.mxu0 0.0
      %2196 = vmatpush.msra.mxu0 0.0
      %2197 = vmatpush.msra.mxu0 0.0
      %2198 = vmatpush.msra.mxu0 %v2070
      %2199 = vmatpush.msra.mxu0 %v2054
      %2200 = vmatpush.msra.mxu0 %v2038
      %2201 = vmatpush.msra.mxu0 %v2022
      %2202 = vmatpush.msra.mxu0 %v2006
      %2203 = vmatpush.msra.mxu0 %v1990
      %2204 = vmatpush.msra.mxu0 %v1974
      %2205 = vmatpush.msra.mxu0 %v1958
      %2206 = vmatmul.f32.gmra.mxu0 %v928
      %v2207 = vpop.f32.mrf.mxu0
      %v2208 = vadd.f32 %v2185, %v2207
      %2209 = vmatmul.f32.gmra.mxu0 %v931
      %v2210 = vpop.f32.mrf.mxu0
      %v2211 = vadd.f32 %v2188, %v2210
      %2212 = vdwg.mxu0
      %2213 = vmatpush.msra.mxu0 %v1943
      %2214 = vmatpush.msra.mxu0 %v1927
      %2215 = vmatpush.msra.mxu0 %v1911
      %2216 = vmatpush.msra.mxu0 %v1895
      %2217 = vmatpush.msra.mxu0 %v1879
      %2218 = vmatpush.msra.mxu0 %v1863
      %2219 = vmatpush.msra.mxu0 %v1847
      %2220 = vmatpush.msra.mxu0 %v1831
      %2221 = vmatpush.msra.mxu0 %v1815
      %2222 = vmatpush.msra.mxu0 %v1799
      %2223 = vmatpush.msra.mxu0 %v1783
      %2224 = vmatpush.msra.mxu0 %v1767
      %2225 = vmatpush.msra.mxu0 %v1751
      %2226 = vmatpush.msra.mxu0 %v1735
      %2227 = vmatpush.msra.mxu0 %v1719
      %2228 = vmatpush.msra.mxu0 %v1703
      %2229 = vmatmul.f32.gmra.mxu0 %v505
      %v2230 = vpop.f32.mrf.mxu0
      %v2231 = vadd.f32 %v2091, %v2230
      %2232 = vmatmul.f32.gmra.mxu0 %v506
      %v2233 = vpop.f32.mrf.mxu0
      %v2234 = vadd.f32 %v2091, %v2233
      %2235 = vdwg.mxu0
      %2236 = vmatpush.msra.mxu0 0.0
      %2237 = vmatpush.msra.mxu0 0.0
      %2238 = vmatpush.msra.mxu0 0.0
      %2239 = vmatpush.msra.mxu0 0.0
      %2240 = vmatpush.msra.mxu0 0.0
      %2241 = vmatpush.msra.mxu0 0.0
      %2242 = vmatpush.msra.mxu0 0.0
      %2243 = vmatpush.msra.mxu0 0.0
      %2244 = vmatpush.msra.mxu0 %v2071
      %2245 = vmatpush.msra.mxu0 %v2055
      %2246 = vmatpush.msra.mxu0 %v2039
      %2247 = vmatpush.msra.mxu0 %v2023
      %2248 = vmatpush.msra.mxu0 %v2007
      %2249 = vmatpush.msra.mxu0 %v1991
      %2250 = vmatpush.msra.mxu0 %v1975
      %2251 = vmatpush.msra.mxu0 %v1959
      %2252 = vmatmul.f32.gmra.mxu0 %v928
      %v2253 = vpop.f32.mrf.mxu0
      %v2254 = vadd.f32 %v2231, %v2253
      %2255 = vmatmul.f32.gmra.mxu0 %v931
      %v2256 = vpop.f32.mrf.mxu0
      %v2257 = vadd.f32 %v2234, %v2256
      %2258 = vdwg.mxu0
      %2259 = vmatpush.msra.mxu0 %v1944
      %2260 = vmatpush.msra.mxu0 %v1928
      %2261 = vmatpush.msra.mxu0 %v1912
      %2262 = vmatpush.msra.mxu0 %v1896
      %2263 = vmatpush.msra.mxu0 %v1880
      %2264 = vmatpush.msra.mxu0 %v1864
      %2265 = vmatpush.msra.mxu0 %v1848
      %2266 = vmatpush.msra.mxu0 %v1832
      %2267 = vmatpush.msra.mxu0 %v1816
      %2268 = vmatpush.msra.mxu0 %v1800
      %2269 = vmatpush.msra.mxu0 %v1784
      %2270 = vmatpush.msra.mxu0 %v1768
      %2271 = vmatpush.msra.mxu0 %v1752
      %2272 = vmatpush.msra.mxu0 %v1736
      %2273 = vmatpush.msra.mxu0 %v1720
      %2274 = vmatpush.msra.mxu0 %v1704
      %2275 = vmatmul.f32.gmra.mxu0 %v505
      %v2276 = vpop.f32.mrf.mxu0
      %v2277 = vadd.f32 %v2092, %v2276
      %2278 = vmatmul.f32.gmra.mxu0 %v506
      %v2279 = vpop.f32.mrf.mxu0
      %v2280 = vadd.f32 %v2092, %v2279
      %2281 = vdwg.mxu0
      %2282 = vmatpush.msra.mxu0 0.0
      %2283 = vmatpush.msra.mxu0 0.0
      %2284 = vmatpush.msra.mxu0 0.0
      %2285 = vmatpush.msra.mxu0 0.0
      %2286 = vmatpush.msra.mxu0 0.0
      %2287 = vmatpush.msra.mxu0 0.0
      %2288 = vmatpush.msra.mxu0 0.0
      %2289 = vmatpush.msra.mxu0 0.0
      %2290 = vmatpush.msra.mxu0 %v2072
      %2291 = vmatpush.msra.mxu0 %v2056
      %2292 = vmatpush.msra.mxu0 %v2040
      %2293 = vmatpush.msra.mxu0 %v2024
      %2294 = vmatpush.msra.mxu0 %v2008
      %2295 = vmatpush.msra.mxu0 %v1992
      %2296 = vmatpush.msra.mxu0 %v1976
      %2297 = vmatpush.msra.mxu0 %v1960
      %2298 = vmatmul.f32.gmra.mxu0 %v928
      %v2299 = vpop.f32.mrf.mxu0
      %v2300 = vadd.f32 %v2277, %v2299
      %2301 = vmatmul.f32.gmra.mxu0 %v931
      %v2302 = vpop.f32.mrf.mxu0
      %v2303 = vadd.f32 %v2280, %v2302
      %2304 = vdwg.mxu0
      %2305 = vmatpush.msra.mxu0 %v1945
      %2306 = vmatpush.msra.mxu0 %v1929
      %2307 = vmatpush.msra.mxu0 %v1913
      %2308 = vmatpush.msra.mxu0 %v1897
      %2309 = vmatpush.msra.mxu0 %v1881
      %2310 = vmatpush.msra.mxu0 %v1865
      %2311 = vmatpush.msra.mxu0 %v1849
      %2312 = vmatpush.msra.mxu0 %v1833
      %2313 = vmatpush.msra.mxu0 %v1817
      %2314 = vmatpush.msra.mxu0 %v1801
      %2315 = vmatpush.msra.mxu0 %v1785
      %2316 = vmatpush.msra.mxu0 %v1769
      %2317 = vmatpush.msra.mxu0 %v1753
      %2318 = vmatpush.msra.mxu0 %v1737
      %2319 = vmatpush.msra.mxu0 %v1721
      %2320 = vmatpush.msra.mxu0 %v1705
      %2321 = vmatmul.f32.gmra.mxu0 %v505
      %v2322 = vpop.f32.mrf.mxu0
      %v2323 = vadd.f32 %v2093, %v2322
      %2324 = vmatmul.f32.gmra.mxu0 %v506
      %v2325 = vpop.f32.mrf.mxu0
      %v2326 = vadd.f32 %v2093, %v2325
      %2327 = vdwg.mxu0
      %2328 = vmatpush.msra.mxu0 0.0
      %2329 = vmatpush.msra.mxu0 0.0
      %2330 = vmatpush.msra.mxu0 0.0
      %2331 = vmatpush.msra.mxu0 0.0
      %2332 = vmatpush.msra.mxu0 0.0
      %2333 = vmatpush.msra.mxu0 0.0
      %2334 = vmatpush.msra.mxu0 0.0
      %2335 = vmatpush.msra.mxu0 0.0
      %2336 = vmatpush.msra.mxu0 %v2073
      %2337 = vmatpush.msra.mxu0 %v2057
      %2338 = vmatpush.msra.mxu0 %v2041
      %2339 = vmatpush.msra.mxu0 %v2025
      %2340 = vmatpush.msra.mxu0 %v2009
      %2341 = vmatpush.msra.mxu0 %v1993
      %2342 = vmatpush.msra.mxu0 %v1977
      %2343 = vmatpush.msra.mxu0 %v1961
      %2344 = vmatmul.f32.gmra.mxu0 %v928
      %v2345 = vpop.f32.mrf.mxu0
      %v2346 = vadd.f32 %v2323, %v2345
      %2347 = vmatmul.f32.gmra.mxu0 %v931
      %v2348 = vpop.f32.mrf.mxu0
      %v2349 = vadd.f32 %v2326, %v2348
      %2350 = vdwg.mxu0
      %2351 = vmatpush.msra.mxu0 %v1946
      %2352 = vmatpush.msra.mxu0 %v1930
      %2353 = vmatpush.msra.mxu0 %v1914
      %2354 = vmatpush.msra.mxu0 %v1898
      %2355 = vmatpush.msra.mxu0 %v1882
      %2356 = vmatpush.msra.mxu0 %v1866
      %2357 = vmatpush.msra.mxu0 %v1850
      %2358 = vmatpush.msra.mxu0 %v1834
      %2359 = vmatpush.msra.mxu0 %v1818
      %2360 = vmatpush.msra.mxu0 %v1802
      %2361 = vmatpush.msra.mxu0 %v1786
      %2362 = vmatpush.msra.mxu0 %v1770
      %2363 = vmatpush.msra.mxu0 %v1754
      %2364 = vmatpush.msra.mxu0 %v1738
      %2365 = vmatpush.msra.mxu0 %v1722
      %2366 = vmatpush.msra.mxu0 %v1706
      %2367 = vmatmul.f32.gmra.mxu0 %v505
      %v2368 = vpop.f32.mrf.mxu0
      %v2369 = vadd.f32 %v2094, %v2368
      %2370 = vmatmul.f32.gmra.mxu0 %v506
      %v2371 = vpop.f32.mrf.mxu0
      %v2372 = vadd.f32 %v2094, %v2371
      %2373 = vdwg.mxu0
      %2374 = vmatpush.msra.mxu0 0.0
      %2375 = vmatpush.msra.mxu0 0.0
      %2376 = vmatpush.msra.mxu0 0.0
      %2377 = vmatpush.msra.mxu0 0.0
      %2378 = vmatpush.msra.mxu0 0.0
      %2379 = vmatpush.msra.mxu0 0.0
      %2380 = vmatpush.msra.mxu0 0.0
      %2381 = vmatpush.msra.mxu0 0.0
      %2382 = vmatpush.msra.mxu0 %v2074
      %2383 = vmatpush.msra.mxu0 %v2058
      %2384 = vmatpush.msra.mxu0 %v2042
      %2385 = vmatpush.msra.mxu0 %v2026
      %2386 = vmatpush.msra.mxu0 %v2010
      %2387 = vmatpush.msra.mxu0 %v1994
      %2388 = vmatpush.msra.mxu0 %v1978
      %2389 = vmatpush.msra.mxu0 %v1962
      %2390 = vmatmul.f32.gmra.mxu0 %v928
      %v2391 = vpop.f32.mrf.mxu0
      %v2392 = vadd.f32 %v2369, %v2391
      %2393 = vmatmul.f32.gmra.mxu0 %v931
      %v2394 = vpop.f32.mrf.mxu0
      %v2395 = vadd.f32 %v2372, %v2394
      %2396 = vdwg.mxu0
      %2397 = vmatpush.msra.mxu0 %v1947
      %2398 = vmatpush.msra.mxu0 %v1931
      %2399 = vmatpush.msra.mxu0 %v1915
      %2400 = vmatpush.msra.mxu0 %v1899
      %2401 = vmatpush.msra.mxu0 %v1883
      %2402 = vmatpush.msra.mxu0 %v1867
      %2403 = vmatpush.msra.mxu0 %v1851
      %2404 = vmatpush.msra.mxu0 %v1835
      %2405 = vmatpush.msra.mxu0 %v1819
      %2406 = vmatpush.msra.mxu0 %v1803
      %2407 = vmatpush.msra.mxu0 %v1787
      %2408 = vmatpush.msra.mxu0 %v1771
      %2409 = vmatpush.msra.mxu0 %v1755
      %2410 = vmatpush.msra.mxu0 %v1739
      %2411 = vmatpush.msra.mxu0 %v1723
      %2412 = vmatpush.msra.mxu0 %v1707
      %2413 = vmatmul.f32.gmra.mxu0 %v505
      %v2414 = vpop.f32.mrf.mxu0
      %v2415 = vadd.f32 %v2095, %v2414
      %2416 = vmatmul.f32.gmra.mxu0 %v506
      %v2417 = vpop.f32.mrf.mxu0
      %v2418 = vadd.f32 %v2095, %v2417
      %2419 = vdwg.mxu0
      %2420 = vmatpush.msra.mxu0 0.0
      %2421 = vmatpush.msra.mxu0 0.0
      %2422 = vmatpush.msra.mxu0 0.0
      %2423 = vmatpush.msra.mxu0 0.0
      %2424 = vmatpush.msra.mxu0 0.0
      %2425 = vmatpush.msra.mxu0 0.0
      %2426 = vmatpush.msra.mxu0 0.0
      %2427 = vmatpush.msra.mxu0 0.0
      %2428 = vmatpush.msra.mxu0 %v2075
      %2429 = vmatpush.msra.mxu0 %v2059
      %2430 = vmatpush.msra.mxu0 %v2043
      %2431 = vmatpush.msra.mxu0 %v2027
      %2432 = vmatpush.msra.mxu0 %v2011
      %2433 = vmatpush.msra.mxu0 %v1995
      %2434 = vmatpush.msra.mxu0 %v1979
      %2435 = vmatpush.msra.mxu0 %v1963
      %2436 = vmatmul.f32.gmra.mxu0 %v928
      %v2437 = vpop.f32.mrf.mxu0
      %v2438 = vadd.f32 %v2415, %v2437
      %2439 = vmatmul.f32.gmra.mxu0 %v931
      %v2440 = vpop.f32.mrf.mxu0
      %v2441 = vadd.f32 %v2418, %v2440
      %2442 = vdwg.mxu0
      %2443 = vmatpush.msra.mxu0 %v1948
      %2444 = vmatpush.msra.mxu0 %v1932
      %2445 = vmatpush.msra.mxu0 %v1916
      %2446 = vmatpush.msra.mxu0 %v1900
      %2447 = vmatpush.msra.mxu0 %v1884
      %2448 = vmatpush.msra.mxu0 %v1868
      %2449 = vmatpush.msra.mxu0 %v1852
      %2450 = vmatpush.msra.mxu0 %v1836
      %2451 = vmatpush.msra.mxu0 %v1820
      %2452 = vmatpush.msra.mxu0 %v1804
      %2453 = vmatpush.msra.mxu0 %v1788
      %2454 = vmatpush.msra.mxu0 %v1772
      %2455 = vmatpush.msra.mxu0 %v1756
      %2456 = vmatpush.msra.mxu0 %v1740
      %2457 = vmatpush.msra.mxu0 %v1724
      %2458 = vmatpush.msra.mxu0 %v1708
      %2459 = vmatmul.f32.gmra.mxu0 %v505
      %v2460 = vpop.f32.mrf.mxu0
      %v2461 = vadd.f32 %v2096, %v2460
      %2462 = vmatmul.f32.gmra.mxu0 %v506
      %v2463 = vpop.f32.mrf.mxu0
      %v2464 = vadd.f32 %v2096, %v2463
      %2465 = vdwg.mxu0
      %2466 = vmatpush.msra.mxu0 0.0
      %2467 = vmatpush.msra.mxu0 0.0
      %2468 = vmatpush.msra.mxu0 0.0
      %2469 = vmatpush.msra.mxu0 0.0
      %2470 = vmatpush.msra.mxu0 0.0
      %2471 = vmatpush.msra.mxu0 0.0
      %2472 = vmatpush.msra.mxu0 0.0
      %2473 = vmatpush.msra.mxu0 0.0
      %2474 = vmatpush.msra.mxu0 %v2076
      %2475 = vmatpush.msra.mxu0 %v2060
      %2476 = vmatpush.msra.mxu0 %v2044
      %2477 = vmatpush.msra.mxu0 %v2028
      %2478 = vmatpush.msra.mxu0 %v2012
      %2479 = vmatpush.msra.mxu0 %v1996
      %2480 = vmatpush.msra.mxu0 %v1980
      %2481 = vmatpush.msra.mxu0 %v1964
      %2482 = vmatmul.f32.gmra.mxu0 %v928
      %v2483 = vpop.f32.mrf.mxu0
      %v2484 = vadd.f32 %v2461, %v2483
      %2485 = vmatmul.f32.gmra.mxu0 %v931
      %v2486 = vpop.f32.mrf.mxu0
      %v2487 = vadd.f32 %v2464, %v2486
      %2488 = vdwg.mxu0
      %2489 = vmatpush.msra.mxu0 %v1949
      %2490 = vmatpush.msra.mxu0 %v1933
      %2491 = vmatpush.msra.mxu0 %v1917
      %2492 = vmatpush.msra.mxu0 %v1901
      %2493 = vmatpush.msra.mxu0 %v1885
      %2494 = vmatpush.msra.mxu0 %v1869
      %2495 = vmatpush.msra.mxu0 %v1853
      %2496 = vmatpush.msra.mxu0 %v1837
      %2497 = vmatpush.msra.mxu0 %v1821
      %2498 = vmatpush.msra.mxu0 %v1805
      %2499 = vmatpush.msra.mxu0 %v1789
      %2500 = vmatpush.msra.mxu0 %v1773
      %2501 = vmatpush.msra.mxu0 %v1757
      %2502 = vmatpush.msra.mxu0 %v1741
      %2503 = vmatpush.msra.mxu0 %v1725
      %2504 = vmatpush.msra.mxu0 %v1709
      %2505 = vmatmul.f32.gmra.mxu0 %v505
      %v2506 = vpop.f32.mrf.mxu0
      %v2507 = vadd.f32 %v2097, %v2506
      %2508 = vmatmul.f32.gmra.mxu0 %v506
      %v2509 = vpop.f32.mrf.mxu0
      %v2510 = vadd.f32 %v2097, %v2509
      %2511 = vdwg.mxu0
      %2512 = vmatpush.msra.mxu0 0.0
      %2513 = vmatpush.msra.mxu0 0.0
      %2514 = vmatpush.msra.mxu0 0.0
      %2515 = vmatpush.msra.mxu0 0.0
      %2516 = vmatpush.msra.mxu0 0.0
      %2517 = vmatpush.msra.mxu0 0.0
      %2518 = vmatpush.msra.mxu0 0.0
      %2519 = vmatpush.msra.mxu0 0.0
      %2520 = vmatpush.msra.mxu0 %v2077
      %2521 = vmatpush.msra.mxu0 %v2061
      %2522 = vmatpush.msra.mxu0 %v2045
      %2523 = vmatpush.msra.mxu0 %v2029
      %2524 = vmatpush.msra.mxu0 %v2013
      %2525 = vmatpush.msra.mxu0 %v1997
      %2526 = vmatpush.msra.mxu0 %v1981
      %2527 = vmatpush.msra.mxu0 %v1965
      %2528 = vmatmul.f32.gmra.mxu0 %v928
      %v2529 = vpop.f32.mrf.mxu0
      %v2530 = vadd.f32 %v2507, %v2529
      %2531 = vmatmul.f32.gmra.mxu0 %v931
      %v2532 = vpop.f32.mrf.mxu0
      %v2533 = vadd.f32 %v2510, %v2532
      %2534 = vdwg.mxu0
      %2535 = vmatpush.msra.mxu0 %v1950
      %2536 = vmatpush.msra.mxu0 %v1934
      %2537 = vmatpush.msra.mxu0 %v1918
      %2538 = vmatpush.msra.mxu0 %v1902
      %2539 = vmatpush.msra.mxu0 %v1886
      %2540 = vmatpush.msra.mxu0 %v1870
      %2541 = vmatpush.msra.mxu0 %v1854
      %2542 = vmatpush.msra.mxu0 %v1838
      %2543 = vmatpush.msra.mxu0 %v1822
      %2544 = vmatpush.msra.mxu0 %v1806
      %2545 = vmatpush.msra.mxu0 %v1790
      %2546 = vmatpush.msra.mxu0 %v1774
      %2547 = vmatpush.msra.mxu0 %v1758
      %2548 = vmatpush.msra.mxu0 %v1742
      %2549 = vmatpush.msra.mxu0 %v1726
      %2550 = vmatpush.msra.mxu0 %v1710
      %2551 = vmatmul.f32.gmra.mxu0 %v505
      %v2552 = vpop.f32.mrf.mxu0
      %v2553 = vadd.f32 %v2098, %v2552
      %2554 = vmatmul.f32.gmra.mxu0 %v506
      %v2555 = vpop.f32.mrf.mxu0
      %v2556 = vadd.f32 %v2098, %v2555
      %2557 = vdwg.mxu0
      %2558 = vmatpush.msra.mxu0 0.0
      %2559 = vmatpush.msra.mxu0 0.0
      %2560 = vmatpush.msra.mxu0 0.0
      %2561 = vmatpush.msra.mxu0 0.0
      %2562 = vmatpush.msra.mxu0 0.0
      %2563 = vmatpush.msra.mxu0 0.0
      %2564 = vmatpush.msra.mxu0 0.0
      %2565 = vmatpush.msra.mxu0 0.0
      %2566 = vmatpush.msra.mxu0 %v2078
      %2567 = vmatpush.msra.mxu0 %v2062
      %2568 = vmatpush.msra.mxu0 %v2046
      %2569 = vmatpush.msra.mxu0 %v2030
      %2570 = vmatpush.msra.mxu0 %v2014
      %2571 = vmatpush.msra.mxu0 %v1998
      %2572 = vmatpush.msra.mxu0 %v1982
      %2573 = vmatpush.msra.mxu0 %v1966
      %2574 = vmatmul.f32.gmra.mxu0 %v928
      %v2575 = vpop.f32.mrf.mxu0
      %v2576 = vadd.f32 %v2553, %v2575
      %2577 = vmatmul.f32.gmra.mxu0 %v931
      %v2578 = vpop.f32.mrf.mxu0
      %v2579 = vadd.f32 %v2556, %v2578
      %2580 = vdwg.mxu0
      %2581 = vmatpush.msra.mxu0 %v1951
      %2582 = vmatpush.msra.mxu0 %v1935
      %2583 = vmatpush.msra.mxu0 %v1919
      %2584 = vmatpush.msra.mxu0 %v1903
      %2585 = vmatpush.msra.mxu0 %v1887
      %2586 = vmatpush.msra.mxu0 %v1871
      %2587 = vmatpush.msra.mxu0 %v1855
      %2588 = vmatpush.msra.mxu0 %v1839
      %2589 = vmatpush.msra.mxu0 %v1823
      %2590 = vmatpush.msra.mxu0 %v1807
      %2591 = vmatpush.msra.mxu0 %v1791
      %2592 = vmatpush.msra.mxu0 %v1775
      %2593 = vmatpush.msra.mxu0 %v1759
      %2594 = vmatpush.msra.mxu0 %v1743
      %2595 = vmatpush.msra.mxu0 %v1727
      %2596 = vmatpush.msra.mxu0 %v1711
      %2597 = vmatmul.f32.gmra.mxu0 %v505
      %v2598 = vpop.f32.mrf.mxu0
      %v2599 = vadd.f32 %v2099, %v2598
      %2600 = vmatmul.f32.gmra.mxu0 %v506
      %v2601 = vpop.f32.mrf.mxu0
      %v2602 = vadd.f32 %v2099, %v2601
      %2603 = vdwg.mxu0
      %2604 = vmatpush.msra.mxu0 0.0
      %2605 = vmatpush.msra.mxu0 0.0
      %2606 = vmatpush.msra.mxu0 0.0
      %2607 = vmatpush.msra.mxu0 0.0
      %2608 = vmatpush.msra.mxu0 0.0
      %2609 = vmatpush.msra.mxu0 0.0
      %2610 = vmatpush.msra.mxu0 0.0
      %2611 = vmatpush.msra.mxu0 0.0
      %2612 = vmatpush.msra.mxu0 %v2079
      %2613 = vmatpush.msra.mxu0 %v2063
      %2614 = vmatpush.msra.mxu0 %v2047
      %2615 = vmatpush.msra.mxu0 %v2031
      %2616 = vmatpush.msra.mxu0 %v2015
      %2617 = vmatpush.msra.mxu0 %v1999
      %2618 = vmatpush.msra.mxu0 %v1983
      %2619 = vmatpush.msra.mxu0 %v1967
      %2620 = vmatmul.f32.gmra.mxu0 %v928
      %v2621 = vpop.f32.mrf.mxu0
      %v2622 = vadd.f32 %v2599, %v2621
      %2623 = vmatmul.f32.gmra.mxu0 %v931
      %v2624 = vpop.f32.mrf.mxu0
      %v2625 = vadd.f32 %v2602, %v2624
      %2626 = vdwg.mxu0
      %2627 = vmatpush.msra.mxu0 %v1952
      %2628 = vmatpush.msra.mxu0 %v1936
      %2629 = vmatpush.msra.mxu0 %v1920
      %2630 = vmatpush.msra.mxu0 %v1904
      %2631 = vmatpush.msra.mxu0 %v1888
      %2632 = vmatpush.msra.mxu0 %v1872
      %2633 = vmatpush.msra.mxu0 %v1856
      %2634 = vmatpush.msra.mxu0 %v1840
      %2635 = vmatpush.msra.mxu0 %v1824
      %2636 = vmatpush.msra.mxu0 %v1808
      %2637 = vmatpush.msra.mxu0 %v1792
      %2638 = vmatpush.msra.mxu0 %v1776
      %2639 = vmatpush.msra.mxu0 %v1760
      %2640 = vmatpush.msra.mxu0 %v1744
      %2641 = vmatpush.msra.mxu0 %v1728
      %2642 = vmatpush.msra.mxu0 %v1712
      %2643 = vmatmul.f32.gmra.mxu0 %v505
      %v2644 = vpop.f32.mrf.mxu0
      %v2645 = vadd.f32 %v2100, %v2644
      %2646 = vmatmul.f32.gmra.mxu0 %v506
      %v2647 = vpop.f32.mrf.mxu0
      %v2648 = vadd.f32 %v2100, %v2647
      %2649 = vdwg.mxu0
      %2650 = vmatpush.msra.mxu0 0.0
      %2651 = vmatpush.msra.mxu0 0.0
      %2652 = vmatpush.msra.mxu0 0.0
      %2653 = vmatpush.msra.mxu0 0.0
      %2654 = vmatpush.msra.mxu0 0.0
      %2655 = vmatpush.msra.mxu0 0.0
      %2656 = vmatpush.msra.mxu0 0.0
      %2657 = vmatpush.msra.mxu0 0.0
      %2658 = vmatpush.msra.mxu0 %v2080
      %2659 = vmatpush.msra.mxu0 %v2064
      %2660 = vmatpush.msra.mxu0 %v2048
      %2661 = vmatpush.msra.mxu0 %v2032
      %2662 = vmatpush.msra.mxu0 %v2016
      %2663 = vmatpush.msra.mxu0 %v2000
      %2664 = vmatpush.msra.mxu0 %v1984
      %2665 = vmatpush.msra.mxu0 %v1968
      %2666 = vmatmul.f32.gmra.mxu0 %v928
      %v2667 = vpop.f32.mrf.mxu0
      %v2668 = vadd.f32 %v2645, %v2667
      %2669 = vmatmul.f32.gmra.mxu0 %v931
      %v2670 = vpop.f32.mrf.mxu0
      %v2671 = vadd.f32 %v2648, %v2670
      %2672 = vdwg.mxu0
      %2673 = vmatpush.msra.mxu0 %v1953
      %2674 = vmatpush.msra.mxu0 %v1937
      %2675 = vmatpush.msra.mxu0 %v1921
      %2676 = vmatpush.msra.mxu0 %v1905
      %2677 = vmatpush.msra.mxu0 %v1889
      %2678 = vmatpush.msra.mxu0 %v1873
      %2679 = vmatpush.msra.mxu0 %v1857
      %2680 = vmatpush.msra.mxu0 %v1841
      %2681 = vmatpush.msra.mxu0 %v1825
      %2682 = vmatpush.msra.mxu0 %v1809
      %2683 = vmatpush.msra.mxu0 %v1793
      %2684 = vmatpush.msra.mxu0 %v1777
      %2685 = vmatpush.msra.mxu0 %v1761
      %2686 = vmatpush.msra.mxu0 %v1745
      %2687 = vmatpush.msra.mxu0 %v1729
      %2688 = vmatpush.msra.mxu0 %v1713
      %2689 = vmatmul.f32.gmra.mxu0 %v505
      %v2690 = vpop.f32.mrf.mxu0
      %v2691 = vadd.f32 %v2101, %v2690
      %2692 = vmatmul.f32.gmra.mxu0 %v506
      %v2693 = vpop.f32.mrf.mxu0
      %v2694 = vadd.f32 %v2101, %v2693
      %2695 = vdwg.mxu0
      %2696 = vmatpush.msra.mxu0 0.0
      %2697 = vmatpush.msra.mxu0 0.0
      %2698 = vmatpush.msra.mxu0 0.0
      %2699 = vmatpush.msra.mxu0 0.0
      %2700 = vmatpush.msra.mxu0 0.0
      %2701 = vmatpush.msra.mxu0 0.0
      %2702 = vmatpush.msra.mxu0 0.0
      %2703 = vmatpush.msra.mxu0 0.0
      %2704 = vmatpush.msra.mxu0 %v2081
      %2705 = vmatpush.msra.mxu0 %v2065
      %2706 = vmatpush.msra.mxu0 %v2049
      %2707 = vmatpush.msra.mxu0 %v2033
      %2708 = vmatpush.msra.mxu0 %v2017
      %2709 = vmatpush.msra.mxu0 %v2001
      %2710 = vmatpush.msra.mxu0 %v1985
      %2711 = vmatpush.msra.mxu0 %v1969
      %2712 = vmatmul.f32.gmra.mxu0 %v928
      %v2713 = vpop.f32.mrf.mxu0
      %v2714 = vadd.f32 %v2691, %v2713
      %2715 = vmatmul.f32.gmra.mxu0 %v931
      %v2716 = vpop.f32.mrf.mxu0
      %v2717 = vadd.f32 %v2694, %v2716
      %2718 = vdwg.mxu0
      %2719 = vmatpush.msra.mxu0 %v1954
      %2720 = vmatpush.msra.mxu0 %v1938
      %2721 = vmatpush.msra.mxu0 %v1922
      %2722 = vmatpush.msra.mxu0 %v1906
      %2723 = vmatpush.msra.mxu0 %v1890
      %2724 = vmatpush.msra.mxu0 %v1874
      %2725 = vmatpush.msra.mxu0 %v1858
      %2726 = vmatpush.msra.mxu0 %v1842
      %2727 = vmatpush.msra.mxu0 %v1826
      %2728 = vmatpush.msra.mxu0 %v1810
      %2729 = vmatpush.msra.mxu0 %v1794
      %2730 = vmatpush.msra.mxu0 %v1778
      %2731 = vmatpush.msra.mxu0 %v1762
      %2732 = vmatpush.msra.mxu0 %v1746
      %2733 = vmatpush.msra.mxu0 %v1730
      %2734 = vmatpush.msra.mxu0 %v1714
      %2735 = vmatmul.f32.gmra.mxu0 %v505
      %v2736 = vpop.f32.mrf.mxu0
      %v2737 = vadd.f32 %v2102, %v2736
      %2738 = vmatmul.f32.gmra.mxu0 %v506
      %v2739 = vpop.f32.mrf.mxu0
      %v2740 = vadd.f32 %v2102, %v2739
      %2741 = vdwg.mxu0
      %2742 = vmatpush.msra.mxu0 0.0
      %2743 = vmatpush.msra.mxu0 0.0
      %2744 = vmatpush.msra.mxu0 0.0
      %2745 = vmatpush.msra.mxu0 0.0
      %2746 = vmatpush.msra.mxu0 0.0
      %2747 = vmatpush.msra.mxu0 0.0
      %2748 = vmatpush.msra.mxu0 0.0
      %2749 = vmatpush.msra.mxu0 0.0
      %2750 = vmatpush.msra.mxu0 %v2082
      %2751 = vmatpush.msra.mxu0 %v2066
      %2752 = vmatpush.msra.mxu0 %v2050
      %2753 = vmatpush.msra.mxu0 %v2034
      %2754 = vmatpush.msra.mxu0 %v2018
      %2755 = vmatpush.msra.mxu0 %v2002
      %2756 = vmatpush.msra.mxu0 %v1986
      %2757 = vmatpush.msra.mxu0 %v1970
      %2758 = vmatmul.f32.gmra.mxu0 %v928
      %v2759 = vpop.f32.mrf.mxu0
      %v2760 = vadd.f32 %v2737, %v2759
      %2761 = vmatmul.f32.gmra.mxu0 %v931
      %v2762 = vpop.f32.mrf.mxu0
      %v2763 = vadd.f32 %v2740, %v2762
      %2764 = vdwg.mxu0
      %2765 = vmatpush.msra.mxu0 %v1955
      %2766 = vmatpush.msra.mxu0 %v1939
      %2767 = vmatpush.msra.mxu0 %v1923
      %2768 = vmatpush.msra.mxu0 %v1907
      %2769 = vmatpush.msra.mxu0 %v1891
      %2770 = vmatpush.msra.mxu0 %v1875
      %2771 = vmatpush.msra.mxu0 %v1859
      %2772 = vmatpush.msra.mxu0 %v1843
      %2773 = vmatpush.msra.mxu0 %v1827
      %2774 = vmatpush.msra.mxu0 %v1811
      %2775 = vmatpush.msra.mxu0 %v1795
      %2776 = vmatpush.msra.mxu0 %v1779
      %2777 = vmatpush.msra.mxu0 %v1763
      %2778 = vmatpush.msra.mxu0 %v1747
      %2779 = vmatpush.msra.mxu0 %v1731
      %2780 = vmatpush.msra.mxu0 %v1715
      %2781 = vmatmul.f32.gmra.mxu0 %v505
      %v2782 = vpop.f32.mrf.mxu0
      %v2783 = vadd.f32 %v2103, %v2782
      %2784 = vmatmul.f32.gmra.mxu0 %v506
      %v2785 = vpop.f32.mrf.mxu0
      %v2786 = vadd.f32 %v2103, %v2785
      %2787 = vdwg.mxu0
      %2788 = vmatpush.msra.mxu0 0.0
      %2789 = vmatpush.msra.mxu0 0.0
      %2790 = vmatpush.msra.mxu0 0.0
      %2791 = vmatpush.msra.mxu0 0.0
      %2792 = vmatpush.msra.mxu0 0.0
      %2793 = vmatpush.msra.mxu0 0.0
      %2794 = vmatpush.msra.mxu0 0.0
      %2795 = vmatpush.msra.mxu0 0.0
      %2796 = vmatpush.msra.mxu0 %v2083
      %2797 = vmatpush.msra.mxu0 %v2067
      %2798 = vmatpush.msra.mxu0 %v2051
      %2799 = vmatpush.msra.mxu0 %v2035
      %2800 = vmatpush.msra.mxu0 %v2019
      %2801 = vmatpush.msra.mxu0 %v2003
      %2802 = vmatpush.msra.mxu0 %v1987
      %2803 = vmatpush.msra.mxu0 %v1971
      %2804 = vmatmul.f32.gmra.mxu0 %v928
      %v2805 = vpop.f32.mrf.mxu0
      %v2806 = vadd.f32 %v2783, %v2805
      %2807 = vmatmul.f32.gmra.mxu0 %v931
      %v2808 = vpop.f32.mrf.mxu0
      %v2809 = vadd.f32 %v2786, %v2808
      %2810 = vdwg.mxu0
      %2811 = vmatpush.msra.mxu0 %v1956
      %2812 = vmatpush.msra.mxu0 %v1940
      %2813 = vmatpush.msra.mxu0 %v1924
      %2814 = vmatpush.msra.mxu0 %v1908
      %2815 = vmatpush.msra.mxu0 %v1892
      %2816 = vmatpush.msra.mxu0 %v1876
      %2817 = vmatpush.msra.mxu0 %v1860
      %2818 = vmatpush.msra.mxu0 %v1844
      %2819 = vmatpush.msra.mxu0 %v1828
      %2820 = vmatpush.msra.mxu0 %v1812
      %2821 = vmatpush.msra.mxu0 %v1796
      %2822 = vmatpush.msra.mxu0 %v1780
      %2823 = vmatpush.msra.mxu0 %v1764
      %2824 = vmatpush.msra.mxu0 %v1748
      %2825 = vmatpush.msra.mxu0 %v1732
      %2826 = vmatpush.msra.mxu0 %v1716
      %2827 = vmatmul.f32.gmra.mxu0 %v505
      %v2828 = vpop.f32.mrf.mxu0
      %v2829 = vadd.f32 %v2104, %v2828
      %2830 = vmatmul.f32.gmra.mxu0 %v506
      %v2831 = vpop.f32.mrf.mxu0
      %v2832 = vadd.f32 %v2104, %v2831
      %2833 = vdwg.mxu0
      %2834 = vmatpush.msra.mxu0 0.0
      %2835 = vmatpush.msra.mxu0 0.0
      %2836 = vmatpush.msra.mxu0 0.0
      %2837 = vmatpush.msra.mxu0 0.0
      %2838 = vmatpush.msra.mxu0 0.0
      %2839 = vmatpush.msra.mxu0 0.0
      %2840 = vmatpush.msra.mxu0 0.0
      %2841 = vmatpush.msra.mxu0 0.0
      %2842 = vmatpush.msra.mxu0 %v2084
      %2843 = vmatpush.msra.mxu0 %v2068
      %2844 = vmatpush.msra.mxu0 %v2052
      %2845 = vmatpush.msra.mxu0 %v2036
      %2846 = vmatpush.msra.mxu0 %v2020
      %2847 = vmatpush.msra.mxu0 %v2004
      %2848 = vmatpush.msra.mxu0 %v1988
      %2849 = vmatpush.msra.mxu0 %v1972
      %2850 = vmatmul.f32.gmra.mxu0 %v928
      %v2851 = vpop.f32.mrf.mxu0
      %v2852 = vadd.f32 %v2829, %v2851
      %2853 = vmatmul.f32.gmra.mxu0 %v931
      %v2854 = vpop.f32.mrf.mxu0
      %v2855 = vadd.f32 %v2832, %v2854
      %2856 = vdwg.mxu0
      %v2857 = vmax.f32 %v2162, 0.0
      %v2858 = vmax.f32 %v2208, 0.0
      %v2859 = vmax.f32 %v2254, 0.0
      %v2860 = vmax.f32 %v2300, 0.0
      %v2861 = vmax.f32 %v2346, 0.0
      %v2862 = vmax.f32 %v2392, 0.0
      %v2863 = vmax.f32 %v2438, 0.0
      %v2864 = vmax.f32 %v2484, 0.0
      %v2865 = vmax.f32 %v2530, 0.0
      %v2866 = vmax.f32 %v2576, 0.0
      %v2867 = vmax.f32 %v2622, 0.0
      %v2868 = vmax.f32 %v2668, 0.0
      %v2869 = vmax.f32 %v2714, 0.0
      %v2870 = vmax.f32 %v2760, 0.0
      %v2871 = vmax.f32 %v2806, 0.0
      %v2872 = vmax.f32 %v2852, 0.0
      %v2873 = vmax.f32 %v2165, 0.0
      %v2874 = vmax.f32 %v2211, 0.0
      %v2875 = vmax.f32 %v2257, 0.0
      %v2876 = vmax.f32 %v2303, 0.0
      %v2877 = vmax.f32 %v2349, 0.0
      %v2878 = vmax.f32 %v2395, 0.0
      %v2879 = vmax.f32 %v2441, 0.0
      %v2880 = vmax.f32 %v2487, 0.0
      %v2881 = vmax.f32 %v2533, 0.0
      %v2882 = vmax.f32 %v2579, 0.0
      %v2883 = vmax.f32 %v2625, 0.0
      %v2884 = vmax.f32 %v2671, 0.0
      %v2885 = vmax.f32 %v2717, 0.0
      %v2886 = vmax.f32 %v2763, 0.0
      %v2887 = vmax.f32 %v2809, 0.0
      %v2888 = vmax.f32 %v2855, 0.0
      %v2889 = vmax.f32 %v1669, %v1685
      %v2890 = vrot.slane %v2889, 4
      %v2891 = vmax.f32 %v2889, %v2890
      %v2892 = vrot.slane %v2891, 2
      %v2893 = vmax.f32 %v2891, %v2892
      %v2894 = vrot.slane %v2893, 1
      %v2895 = vmax.f32 %v2893, %v2894
      %v2896 = vmax.f32 %v1670, %v1686
      %v2897 = vrot.slane %v2896, 4
      %v2898 = vmax.f32 %v2896, %v2897
      %v2899 = vrot.slane %v2898, 2
      %v2900 = vmax.f32 %v2898, %v2899
      %v2901 = vrot.slane %v2900, 1
      %v2902 = vmax.f32 %v2900, %v2901
      %v2903 = vmax.f32 %v1671, %v1687
      %v2904 = vrot.slane %v2903, 4
      %v2905 = vmax.f32 %v2903, %v2904
      %v2906 = vrot.slane %v2905, 2
      %v2907 = vmax.f32 %v2905, %v2906
      %v2908 = vrot.slane %v2907, 1
      %v2909 = vmax.f32 %v2907, %v2908
      %v2910 = vmax.f32 %v1672, %v1688
      %v2911 = vrot.slane %v2910, 4
      %v2912 = vmax.f32 %v2910, %v2911
      %v2913 = vrot.slane %v2912, 2
      %v2914 = vmax.f32 %v2912, %v2913
      %v2915 = vrot.slane %v2914, 1
      %v2916 = vmax.f32 %v2914, %v2915
      %v2917 = vmax.f32 %v1673, %v1689
      %v2918 = vrot.slane %v2917, 4
      %v2919 = vmax.f32 %v2917, %v2918
      %v2920 = vrot.slane %v2919, 2
      %v2921 = vmax.f32 %v2919, %v2920
      %v2922 = vrot.slane %v2921, 1
      %v2923 = vmax.f32 %v2921, %v2922
      %v2924 = vmax.f32 %v1674, %v1690
      %v2925 = vrot.slane %v2924, 4
      %v2926 = vmax.f32 %v2924, %v2925
      %v2927 = vrot.slane %v2926, 2
      %v2928 = vmax.f32 %v2926, %v2927
      %v2929 = vrot.slane %v2928, 1
      %v2930 = vmax.f32 %v2928, %v2929
      %v2931 = vmax.f32 %v1675, %v1691
      %v2932 = vrot.slane %v2931, 4
      %v2933 = vmax.f32 %v2931, %v2932
      %v2934 = vrot.slane %v2933, 2
      %v2935 = vmax.f32 %v2933, %v2934
      %v2936 = vrot.slane %v2935, 1
      %v2937 = vmax.f32 %v2935, %v2936
      %v2938 = vmax.f32 %v1676, %v1692
      %v2939 = vrot.slane %v2938, 4
      %v2940 = vmax.f32 %v2938, %v2939
      %v2941 = vrot.slane %v2940, 2
      %v2942 = vmax.f32 %v2940, %v2941
      %v2943 = vrot.slane %v2942, 1
      %v2944 = vmax.f32 %v2942, %v2943
      %v2945 = vmax.f32 %v1677, %v1693
      %v2946 = vrot.slane %v2945, 4
      %v2947 = vmax.f32 %v2945, %v2946
      %v2948 = vrot.slane %v2947, 2
      %v2949 = vmax.f32 %v2947, %v2948
      %v2950 = vrot.slane %v2949, 1
      %v2951 = vmax.f32 %v2949, %v2950
      %v2952 = vmax.f32 %v1678, %v1694
      %v2953 = vrot.slane %v2952, 4
      %v2954 = vmax.f32 %v2952, %v2953
      %v2955 = vrot.slane %v2954, 2
      %v2956 = vmax.f32 %v2954, %v2955
      %v2957 = vrot.slane %v2956, 1
      %v2958 = vmax.f32 %v2956, %v2957
      %v2959 = vmax.f32 %v1679, %v1695
      %v2960 = vrot.slane %v2959, 4
      %v2961 = vmax.f32 %v2959, %v2960
      %v2962 = vrot.slane %v2961, 2
      %v2963 = vmax.f32 %v2961, %v2962
      %v2964 = vrot.slane %v2963, 1
      %v2965 = vmax.f32 %v2963, %v2964
      %v2966 = vmax.f32 %v1680, %v1696
      %v2967 = vrot.slane %v2966, 4
      %v2968 = vmax.f32 %v2966, %v2967
      %v2969 = vrot.slane %v2968, 2
      %v2970 = vmax.f32 %v2968, %v2969
      %v2971 = vrot.slane %v2970, 1
      %v2972 = vmax.f32 %v2970, %v2971
      %v2973 = vmax.f32 %v1681, %v1697
      %v2974 = vrot.slane %v2973, 4
      %v2975 = vmax.f32 %v2973, %v2974
      %v2976 = vrot.slane %v2975, 2
      %v2977 = vmax.f32 %v2975, %v2976
      %v2978 = vrot.slane %v2977, 1
      %v2979 = vmax.f32 %v2977, %v2978
      %v2980 = vmax.f32 %v1682, %v1698
      %v2981 = vrot.slane %v2980, 4
      %v2982 = vmax.f32 %v2980, %v2981
      %v2983 = vrot.slane %v2982, 2
      %v2984 = vmax.f32 %v2982, %v2983
      %v2985 = vrot.slane %v2984, 1
      %v2986 = vmax.f32 %v2984, %v2985
      %v2987 = vmax.f32 %v1683, %v1699
      %v2988 = vrot.slane %v2987, 4
      %v2989 = vmax.f32 %v2987, %v2988
      %v2990 = vrot.slane %v2989, 2
      %v2991 = vmax.f32 %v2989, %v2990
      %v2992 = vrot.slane %v2991, 1
      %v2993 = vmax.f32 %v2991, %v2992
      %v2994 = vmax.f32 %v1684, %v1700
      %v2995 = vrot.slane %v2994, 4
      %v2996 = vmax.f32 %v2994, %v2995
      %v2997 = vrot.slane %v2996, 2
      %v2998 = vmax.f32 %v2996, %v2997
      %v2999 = vrot.slane %v2998, 1
      %v3000 = vmax.f32 %v2998, %v2999
      %v3001 = vmax.f32 %v2857, %v2865
      %v3002 = vmax.f32 %v2858, %v2866
      %v3003 = vmax.f32 %v2859, %v2867
      %v3004 = vmax.f32 %v2860, %v2868
      %v3005 = vmax.f32 %v2861, %v2869
      %v3006 = vmax.f32 %v2862, %v2870
      %v3007 = vmax.f32 %v2863, %v2871
      %v3008 = vmax.f32 %v2864, %v2872
      %v3009 = vmax.f32 %v2873, %v2881
      %v3010 = vmax.f32 %v2874, %v2882
      %v3011 = vmax.f32 %v2875, %v2883
      %v3012 = vmax.f32 %v2876, %v2884
      %v3013 = vmax.f32 %v2877, %v2885
      %v3014 = vmax.f32 %v2878, %v2886
      %v3015 = vmax.f32 %v2879, %v2887
      %v3016 = vmax.f32 %v2880, %v2888
      %v3017 = vmax.f32 %v3001, %v3005
      %v3018 = vmax.f32 %v3002, %v3006
      %v3019 = vmax.f32 %v3003, %v3007
      %v3020 = vmax.f32 %v3004, %v3008
      %v3021 = vmax.f32 %v3009, %v3013
      %v3022 = vmax.f32 %v3010, %v3014
      %v3023 = vmax.f32 %v3011, %v3015
      %v3024 = vmax.f32 %v3012, %v3016
      %v3025 = vmax.f32 %v3017, %v3019
      %v3026 = vmax.f32 %v3018, %v3020
      %v3027 = vmax.f32 %v3021, %v3023
      %v3028 = vmax.f32 %v3022, %v3024
      %v3029 = vmax.f32 %v3025, %v3026
      %v3030 = vmax.f32 %v3027, %v3028
      %v3031 = vld [vmem:[%s5] sm:$0xff]
      %v3032 = vld [vmem:[%s5 + $0x8] sm:$0xff]
      %v3033 = vld [vmem:[%s5 + $0x10] sm:$0xff]
      %v3034 = vld [vmem:[%s5 + $0x18] sm:$0xff]
      %v3035 = vld [vmem:[%s5 + $0x20] sm:$0xff]
      %v3036 = vld [vmem:[%s5 + $0x28] sm:$0xff]
      %v3037 = vld [vmem:[%s5 + $0x30] sm:$0xff]
      %v3038 = vld [vmem:[%s5 + $0x38] sm:$0xff]
      %v3039 = vld [vmem:[%s5 + $0x40] sm:$0xff]
      %v3040 = vld [vmem:[%s5 + $0x48] sm:$0xff]
      %v3041 = vld [vmem:[%s5 + $0x50] sm:$0xff]
      %v3042 = vld [vmem:[%s5 + $0x58] sm:$0xff]
      %v3043 = vld [vmem:[%s5 + $0x60] sm:$0xff]
      %v3044 = vld [vmem:[%s5 + $0x68] sm:$0xff]
      %v3045 = vld [vmem:[%s5 + $0x70] sm:$0xff]
      %v3046 = vld [vmem:[%s5 + $0x78] sm:$0xff]
      %v3047 = vld [vmem:[%s5 + $0x80] sm:$0xff]
      %v3048 = vld [vmem:[%s5 + $0x88] sm:$0xff]
      %v3049 = vld [vmem:[%s5 + $0x90] sm:$0xff]
      %v3050 = vld [vmem:[%s5 + $0x98] sm:$0xff]
      %v3051 = vld [vmem:[%s5 + $0xa0] sm:$0xff]
      %v3052 = vld [vmem:[%s5 + $0xa8] sm:$0xff]
      %v3053 = vld [vmem:[%s5 + $0xb0] sm:$0xff]
      %v3054 = vld [vmem:[%s5 + $0xb8] sm:$0xff]
      %v3055 = vld [vmem:[%s5 + $0xc0] sm:$0xff]
      %v3056 = vld [vmem:[%s5 + $0xc8] sm:$0xff]
      %v3057 = vld [vmem:[%s5 + $0xd0] sm:$0xff]
      %v3058 = vld [vmem:[%s5 + $0xd8] sm:$0xff]
      %v3059 = vld [vmem:[%s5 + $0xe0] sm:$0xff]
      %v3060 = vld [vmem:[%s5 + $0xe8] sm:$0xff]
      %v3061 = vld [vmem:[%s5 + $0xf0] sm:$0xff]
      %v3062 = vld [vmem:[%s5 + $0xf8] sm:$0xff]
      %v3063 = vld [vmem:[%s5 + $0x100] sm:$0xff]
      %v3064 = vld [vmem:[%s5 + $0x108] sm:$0xff]
      %v3065 = vld [vmem:[%s5 + $0x110] sm:$0xff]
      %v3066 = vld [vmem:[%s5 + $0x118] sm:$0xff]
      %v3067 = vld [vmem:[%s5 + $0x120] sm:$0xff]
      %v3068 = vld [vmem:[%s5 + $0x128] sm:$0xff]
      %v3069 = vld [vmem:[%s5 + $0x130] sm:$0xff]
      %v3070 = vld [vmem:[%s5 + $0x138] sm:$0xff]
      %v3071 = vld [vmem:[%s5 + $0x140] sm:$0xff]
      %v3072 = vld [vmem:[%s5 + $0x148] sm:$0xff]
      %v3073 = vld [vmem:[%s5 + $0x150] sm:$0xff]
      %v3074 = vld [vmem:[%s5 + $0x158] sm:$0xff]
      %v3075 = vld [vmem:[%s5 + $0x160] sm:$0xff]
      %v3076 = vld [vmem:[%s5 + $0x168] sm:$0xff]
      %v3077 = vld [vmem:[%s5 + $0x170] sm:$0xff]
      %v3078 = vld [vmem:[%s5 + $0x178] sm:$0xff]
      %v3079 = vld [vmem:[%s5 + $0x180] sm:$0xff]
      %v3080 = vld [vmem:[%s5 + $0x188] sm:$0xff]
      %v3081 = vld [vmem:[%s5 + $0x190] sm:$0xff]
      %v3082 = vld [vmem:[%s5 + $0x198] sm:$0xff]
      %v3083 = vld [vmem:[%s5 + $0x1a0] sm:$0xff]
      %v3084 = vld [vmem:[%s5 + $0x1a8] sm:$0xff]
      %v3085 = vld [vmem:[%s5 + $0x1b0] sm:$0xff]
      %v3086 = vld [vmem:[%s5 + $0x1b8] sm:$0xff]
      %v3087 = vld [vmem:[%s5 + $0x1c0] sm:$0xff]
      %v3088 = vld [vmem:[%s5 + $0x1c8] sm:$0xff]
      %v3089 = vld [vmem:[%s5 + $0x1d0] sm:$0xff]
      %v3090 = vld [vmem:[%s5 + $0x1d8] sm:$0xff]
      %v3091 = vld [vmem:[%s5 + $0x1e0] sm:$0xff]
      %v3092 = vld [vmem:[%s5 + $0x1e8] sm:$0xff]
      %v3093 = vld [vmem:[%s5 + $0x1f0] sm:$0xff]
      %v3094 = vld [vmem:[%s5 + $0x1f8] sm:$0xff]
      %v3095 = vld [vmem:[%s5 + $0x200] sm:$0xff]
      %v3096 = vld [vmem:[%s5 + $0x208] sm:$0xff]
      %v3097 = vld [vmem:[%s5 + $0x210] sm:$0xff]
      %v3098 = vld [vmem:[%s5 + $0x218] sm:$0xff]
      %v3099 = vld [vmem:[%s5 + $0x220] sm:$0xff]
      %v3100 = vld [vmem:[%s5 + $0x228] sm:$0xff]
      %v3101 = vld [vmem:[%s5 + $0x230] sm:$0xff]
      %v3102 = vld [vmem:[%s5 + $0x238] sm:$0xff]
      %v3103 = vld [vmem:[%s5 + $0x240] sm:$0xff]
      %v3104 = vld [vmem:[%s5 + $0x248] sm:$0xff]
      %v3105 = vld [vmem:[%s5 + $0x250] sm:$0xff]
      %v3106 = vld [vmem:[%s5 + $0x258] sm:$0xff]
      %v3107 = vld [vmem:[%s5 + $0x260] sm:$0xff]
      %v3108 = vld [vmem:[%s5 + $0x268] sm:$0xff]
      %v3109 = vld [vmem:[%s5 + $0x270] sm:$0xff]
      %v3110 = vld [vmem:[%s5 + $0x278] sm:$0xff]
      %v3111 = vld [vmem:[%s5 + $0x280] sm:$0xff]
      %v3112 = vld [vmem:[%s5 + $0x288] sm:$0xff]
      %v3113 = vld [vmem:[%s5 + $0x290] sm:$0xff]
      %v3114 = vld [vmem:[%s5 + $0x298] sm:$0xff]
      %v3115 = vld [vmem:[%s5 + $0x2a0] sm:$0xff]
      %v3116 = vld [vmem:[%s5 + $0x2a8] sm:$0xff]
      %v3117 = vld [vmem:[%s5 + $0x2b0] sm:$0xff]
      %v3118 = vld [vmem:[%s5 + $0x2b8] sm:$0xff]
      %v3119 = vld [vmem:[%s5 + $0x2c0] sm:$0xff]
      %v3120 = vld [vmem:[%s5 + $0x2c8] sm:$0xff]
      %v3121 = vld [vmem:[%s5 + $0x2d0] sm:$0xff]
      %v3122 = vld [vmem:[%s5 + $0x2d8] sm:$0xff]
      %v3123 = vld [vmem:[%s5 + $0x2e0] sm:$0xff]
      %v3124 = vld [vmem:[%s5 + $0x2e8] sm:$0xff]
      %v3125 = vld [vmem:[%s5 + $0x2f0] sm:$0xff]
      %v3126 = vld [vmem:[%s5 + $0x2f8] sm:$0xff]
      %v3127 = vld [vmem:[%s5 + $0x300] sm:$0xff]
      %v3128 = vld [vmem:[%s5 + $0x308] sm:$0xff]
      %v3129 = vld [vmem:[%s5 + $0x310] sm:$0xff]
      %v3130 = vld [vmem:[%s5 + $0x318] sm:$0xff]
      %v3131 = vld [vmem:[%s5 + $0x320] sm:$0xff]
      %v3132 = vld [vmem:[%s5 + $0x328] sm:$0xff]
      %v3133 = vld [vmem:[%s5 + $0x330] sm:$0xff]
      %v3134 = vld [vmem:[%s5 + $0x338] sm:$0xff]
      %v3135 = vld [vmem:[%s5 + $0x340] sm:$0xff]
      %v3136 = vld [vmem:[%s5 + $0x348] sm:$0xff]
      %v3137 = vld [vmem:[%s5 + $0x350] sm:$0xff]
      %v3138 = vld [vmem:[%s5 + $0x358] sm:$0xff]
      %v3139 = vld [vmem:[%s5 + $0x360] sm:$0xff]
      %v3140 = vld [vmem:[%s5 + $0x368] sm:$0xff]
      %v3141 = vld [vmem:[%s5 + $0x370] sm:$0xff]
      %v3142 = vld [vmem:[%s5 + $0x378] sm:$0xff]
      %v3143 = vld [vmem:[%s5 + $0x380] sm:$0xff]
      %v3144 = vld [vmem:[%s5 + $0x388] sm:$0xff]
      %v3145 = vld [vmem:[%s5 + $0x390] sm:$0xff]
      %v3146 = vld [vmem:[%s5 + $0x398] sm:$0xff]
      %v3147 = vld [vmem:[%s5 + $0x3a0] sm:$0xff]
      %v3148 = vld [vmem:[%s5 + $0x3a8] sm:$0xff]
      %v3149 = vld [vmem:[%s5 + $0x3b0] sm:$0xff]
      %v3150 = vld [vmem:[%s5 + $0x3b8] sm:$0xff]
      %v3151 = vld [vmem:[%s5 + $0x3c0] sm:$0xff]
      %v3152 = vld [vmem:[%s5 + $0x3c8] sm:$0xff]
      %v3153 = vld [vmem:[%s5 + $0x3d0] sm:$0xff]
      %v3154 = vld [vmem:[%s5 + $0x3d8] sm:$0xff]
      %v3155 = vld [vmem:[%s5 + $0x3e0] sm:$0xff]
      %v3156 = vld [vmem:[%s5 + $0x3e8] sm:$0xff]
      %v3157 = vld [vmem:[%s5 + $0x3f0] sm:$0xff]
      %v3158 = vld [vmem:[%s5 + $0x3f8] sm:$0xff]
      %v3159 = vld [vmem:[%s5 + $0x400] sm:$0xff]
      %v3160 = vld [vmem:[%s5 + $0x408] sm:$0xff]
      %v3161 = vld [vmem:[%s5 + $0x410] sm:$0xff]
      %v3162 = vld [vmem:[%s5 + $0x418] sm:$0xff]
      %v3163 = vld [vmem:[%s5 + $0x420] sm:$0xff]
      %v3164 = vld [vmem:[%s5 + $0x428] sm:$0xff]
      %v3165 = vld [vmem:[%s5 + $0x430] sm:$0xff]
      %v3166 = vld [vmem:[%s5 + $0x438] sm:$0xff]
      %v3167 = vld [vmem:[%s5 + $0x440] sm:$0xff]
      %v3168 = vld [vmem:[%s5 + $0x448] sm:$0xff]
      %v3169 = vld [vmem:[%s5 + $0x450] sm:$0xff]
      %v3170 = vld [vmem:[%s5 + $0x458] sm:$0xff]
      %v3171 = vld [vmem:[%s5 + $0x460] sm:$0xff]
      %v3172 = vld [vmem:[%s5 + $0x468] sm:$0xff]
      %v3173 = vld [vmem:[%s5 + $0x470] sm:$0xff]
      %v3174 = vld [vmem:[%s5 + $0x478] sm:$0xff]
      %v3175 = vld [vmem:[%s5 + $0x480] sm:$0xff]
      %v3176 = vld [vmem:[%s5 + $0x488] sm:$0xff]
      %v3177 = vld [vmem:[%s5 + $0x490] sm:$0xff]
      %v3178 = vld [vmem:[%s5 + $0x498] sm:$0xff]
      %v3179 = vld [vmem:[%s5 + $0x4a0] sm:$0xff]
      %v3180 = vld [vmem:[%s5 + $0x4a8] sm:$0xff]
      %v3181 = vld [vmem:[%s5 + $0x4b0] sm:$0xff]
      %v3182 = vld [vmem:[%s5 + $0x4b8] sm:$0xff]
      %v3183 = vld [vmem:[%s5 + $0x4c0] sm:$0xff]
      %v3184 = vld [vmem:[%s5 + $0x4c8] sm:$0xff]
      %v3185 = vld [vmem:[%s5 + $0x4d0] sm:$0xff]
      %v3186 = vld [vmem:[%s5 + $0x4d8] sm:$0xff]
      %v3187 = vld [vmem:[%s5 + $0x4e0] sm:$0xff]
      %v3188 = vld [vmem:[%s5 + $0x4e8] sm:$0xff]
      %v3189 = vld [vmem:[%s5 + $0x4f0] sm:$0xff]
      %v3190 = vld [vmem:[%s5 + $0x4f8] sm:$0xff]
      %v3191 = vld [vmem:[%s5 + $0x500] sm:$0xff]
      %v3192 = vld [vmem:[%s5 + $0x508] sm:$0xff]
      %v3193 = vld [vmem:[%s5 + $0x510] sm:$0xff]
      %v3194 = vld [vmem:[%s5 + $0x518] sm:$0xff]
      %v3195 = vld [vmem:[%s5 + $0x520] sm:$0xff]
      %v3196 = vld [vmem:[%s5 + $0x528] sm:$0xff]
      %v3197 = vld [vmem:[%s5 + $0x530] sm:$0xff]
      %v3198 = vld [vmem:[%s5 + $0x538] sm:$0xff]
      %v3199 = vld [vmem:[%s5 + $0x540] sm:$0xff]
      %v3200 = vld [vmem:[%s5 + $0x548] sm:$0xff]
      %v3201 = vld [vmem:[%s5 + $0x550] sm:$0xff]
      %v3202 = vld [vmem:[%s5 + $0x558] sm:$0xff]
      %v3203 = vld [vmem:[%s5 + $0x560] sm:$0xff]
      %v3204 = vld [vmem:[%s5 + $0x568] sm:$0xff]
      %v3205 = vld [vmem:[%s5 + $0x570] sm:$0xff]
      %v3206 = vld [vmem:[%s5 + $0x578] sm:$0xff]
      %v3207 = vld [vmem:[%s5 + $0x580] sm:$0xff]
      %v3208 = vld [vmem:[%s5 + $0x588] sm:$0xff]
      %v3209 = vld [vmem:[%s5 + $0x590] sm:$0xff]
      %v3210 = vld [vmem:[%s5 + $0x598] sm:$0xff]
      %v3211 = vld [vmem:[%s5 + $0x5a0] sm:$0xff]
      %v3212 = vld [vmem:[%s5 + $0x5a8] sm:$0xff]
      %v3213 = vld [vmem:[%s5 + $0x5b0] sm:$0xff]
      %v3214 = vld [vmem:[%s5 + $0x5b8] sm:$0xff]
      %v3215 = vld [vmem:[%s5 + $0x5c0] sm:$0xff]
      %v3216 = vld [vmem:[%s5 + $0x5c8] sm:$0xff]
      %v3217 = vld [vmem:[%s5 + $0x5d0] sm:$0xff]
      %v3218 = vld [vmem:[%s5 + $0x5d8] sm:$0xff]
      %v3219 = vld [vmem:[%s5 + $0x5e0] sm:$0xff]
      %v3220 = vld [vmem:[%s5 + $0x5e8] sm:$0xff]
      %v3221 = vld [vmem:[%s5 + $0x5f0] sm:$0xff]
      %v3222 = vld [vmem:[%s5 + $0x5f8] sm:$0xff]
      %v3223 = vld [vmem:[%s5 + $0x600] sm:$0xff]
      %v3224 = vld [vmem:[%s5 + $0x608] sm:$0xff]
      %v3225 = vld [vmem:[%s5 + $0x610] sm:$0xff]
      %v3226 = vld [vmem:[%s5 + $0x618] sm:$0xff]
      %v3227 = vld [vmem:[%s5 + $0x620] sm:$0xff]
      %v3228 = vld [vmem:[%s5 + $0x628] sm:$0xff]
      %v3229 = vld [vmem:[%s5 + $0x630] sm:$0xff]
      %v3230 = vld [vmem:[%s5 + $0x638] sm:$0xff]
      %v3231 = vld [vmem:[%s5 + $0x640] sm:$0xff]
      %v3232 = vld [vmem:[%s5 + $0x648] sm:$0xff]
      %v3233 = vld [vmem:[%s5 + $0x650] sm:$0xff]
      %v3234 = vld [vmem:[%s5 + $0x658] sm:$0xff]
      %v3235 = vld [vmem:[%s5 + $0x660] sm:$0xff]
      %v3236 = vld [vmem:[%s5 + $0x668] sm:$0xff]
      %v3237 = vld [vmem:[%s5 + $0x670] sm:$0xff]
      %v3238 = vld [vmem:[%s5 + $0x678] sm:$0xff]
      %v3239 = vld [vmem:[%s5 + $0x680] sm:$0xff]
      %v3240 = vld [vmem:[%s5 + $0x688] sm:$0xff]
      %v3241 = vld [vmem:[%s5 + $0x690] sm:$0xff]
      %v3242 = vld [vmem:[%s5 + $0x698] sm:$0xff]
      %v3243 = vld [vmem:[%s5 + $0x6a0] sm:$0xff]
      %v3244 = vld [vmem:[%s5 + $0x6a8] sm:$0xff]
      %v3245 = vld [vmem:[%s5 + $0x6b0] sm:$0xff]
      %v3246 = vld [vmem:[%s5 + $0x6b8] sm:$0xff]
      %v3247 = vld [vmem:[%s5 + $0x6c0] sm:$0xff]
      %v3248 = vld [vmem:[%s5 + $0x6c8] sm:$0xff]
      %v3249 = vld [vmem:[%s5 + $0x6d0] sm:$0xff]
      %v3250 = vld [vmem:[%s5 + $0x6d8] sm:$0xff]
      %v3251 = vld [vmem:[%s5 + $0x6e0] sm:$0xff]
      %v3252 = vld [vmem:[%s5 + $0x6e8] sm:$0xff]
      %v3253 = vld [vmem:[%s5 + $0x6f0] sm:$0xff]
      %v3254 = vld [vmem:[%s5 + $0x6f8] sm:$0xff]
      %v3255 = vld [vmem:[%s5 + $0x700] sm:$0xff]
      %v3256 = vld [vmem:[%s5 + $0x708] sm:$0xff]
      %v3257 = vld [vmem:[%s5 + $0x710] sm:$0xff]
      %v3258 = vld [vmem:[%s5 + $0x718] sm:$0xff]
      %v3259 = vld [vmem:[%s5 + $0x720] sm:$0xff]
      %v3260 = vld [vmem:[%s5 + $0x728] sm:$0xff]
      %v3261 = vld [vmem:[%s5 + $0x730] sm:$0xff]
      %v3262 = vld [vmem:[%s5 + $0x738] sm:$0xff]
      %v3263 = vld [vmem:[%s5 + $0x740] sm:$0xff]
      %v3264 = vld [vmem:[%s5 + $0x748] sm:$0xff]
      %v3265 = vld [vmem:[%s5 + $0x750] sm:$0xff]
      %v3266 = vld [vmem:[%s5 + $0x758] sm:$0xff]
      %v3267 = vld [vmem:[%s5 + $0x760] sm:$0xff]
      %v3268 = vld [vmem:[%s5 + $0x768] sm:$0xff]
      %v3269 = vld [vmem:[%s5 + $0x770] sm:$0xff]
      %v3270 = vld [vmem:[%s5 + $0x778] sm:$0xff]
      %v3271 = vld [vmem:[%s5 + $0x780] sm:$0xff]
      %v3272 = vld [vmem:[%s5 + $0x788] sm:$0xff]
      %v3273 = vld [vmem:[%s5 + $0x790] sm:$0xff]
      %v3274 = vld [vmem:[%s5 + $0x798] sm:$0xff]
      %v3275 = vld [vmem:[%s5 + $0x7a0] sm:$0xff]
      %v3276 = vld [vmem:[%s5 + $0x7a8] sm:$0xff]
      %v3277 = vld [vmem:[%s5 + $0x7b0] sm:$0xff]
      %v3278 = vld [vmem:[%s5 + $0x7b8] sm:$0xff]
      %v3279 = vld [vmem:[%s5 + $0x7c0] sm:$0xff]
      %v3280 = vld [vmem:[%s5 + $0x7c8] sm:$0xff]
      %v3281 = vld [vmem:[%s5 + $0x7d0] sm:$0xff]
      %v3282 = vld [vmem:[%s5 + $0x7d8] sm:$0xff]
      %v3283 = vld [vmem:[%s5 + $0x7e0] sm:$0xff]
      %v3284 = vld [vmem:[%s5 + $0x7e8] sm:$0xff]
      %v3285 = vld [vmem:[%s5 + $0x7f0] sm:$0xff]
      %v3286 = vld [vmem:[%s5 + $0x7f8] sm:$0xff]
      %v3287 = vld [vmem:[%s5 + $0x800] sm:$0xff]
      %v3288 = vld [vmem:[%s5 + $0x808] sm:$0xff]
      %v3289 = vld [vmem:[%s5 + $0x810] sm:$0xff]
      %v3290 = vld [vmem:[%s5 + $0x818] sm:$0xff]
      %v3291 = vld [vmem:[%s5 + $0x820] sm:$0xff]
      %v3292 = vld [vmem:[%s5 + $0x828] sm:$0xff]
      %v3293 = vld [vmem:[%s5 + $0x830] sm:$0xff]
      %v3294 = vld [vmem:[%s5 + $0x838] sm:$0xff]
      %v3295 = vld [vmem:[%s5 + $0x840] sm:$0xff]
      %v3296 = vld [vmem:[%s5 + $0x848] sm:$0xff]
      %v3297 = vld [vmem:[%s5 + $0x850] sm:$0xff]
      %v3298 = vld [vmem:[%s5 + $0x858] sm:$0xff]
      %v3299 = vld [vmem:[%s5 + $0x860] sm:$0xff]
      %v3300 = vld [vmem:[%s5 + $0x868] sm:$0xff]
      %v3301 = vld [vmem:[%s5 + $0x870] sm:$0xff]
      %v3302 = vld [vmem:[%s5 + $0x878] sm:$0xff]
      %v3303 = vld [vmem:[%s5 + $0x880] sm:$0xff]
      %v3304 = vld [vmem:[%s5 + $0x888] sm:$0xff]
      %v3305 = vld [vmem:[%s5 + $0x890] sm:$0xff]
      %v3306 = vld [vmem:[%s5 + $0x898] sm:$0xff]
      %v3307 = vld [vmem:[%s5 + $0x8a0] sm:$0xff]
      %v3308 = vld [vmem:[%s5 + $0x8a8] sm:$0xff]
      %v3309 = vld [vmem:[%s5 + $0x8b0] sm:$0xff]
      %v3310 = vld [vmem:[%s5 + $0x8b8] sm:$0xff]
      %v3311 = vld [vmem:[%s5 + $0x8c0] sm:$0xff]
      %v3312 = vld [vmem:[%s5 + $0x8c8] sm:$0xff]
      %v3313 = vld [vmem:[%s5 + $0x8d0] sm:$0xff]
      %v3314 = vld [vmem:[%s5 + $0x8d8] sm:$0xff]
      %v3315 = vld [vmem:[%s5 + $0x8e0] sm:$0xff]
      %v3316 = vld [vmem:[%s5 + $0x8e8] sm:$0xff]
      %v3317 = vld [vmem:[%s5 + $0x8f0] sm:$0xff]
      %v3318 = vld [vmem:[%s5 + $0x8f8] sm:$0xff]
      %v3319 = vld [vmem:[%s5 + $0x900] sm:$0xff]
      %v3320 = vld [vmem:[%s5 + $0x908] sm:$0xff]
      %v3321 = vld [vmem:[%s5 + $0x910] sm:$0xff]
      %v3322 = vld [vmem:[%s5 + $0x918] sm:$0xff]
      %v3323 = vld [vmem:[%s5 + $0x920] sm:$0xff]
      %v3324 = vld [vmem:[%s5 + $0x928] sm:$0xff]
      %v3325 = vld [vmem:[%s5 + $0x930] sm:$0xff]
      %v3326 = vld [vmem:[%s5 + $0x938] sm:$0xff]
      %v3327 = vld [vmem:[%s5 + $0x940] sm:$0xff]
      %v3328 = vld [vmem:[%s5 + $0x948] sm:$0xff]
      %v3329 = vld [vmem:[%s5 + $0x950] sm:$0xff]
      %v3330 = vld [vmem:[%s5 + $0x958] sm:$0xff]
      %v3331 = vld [vmem:[%s5 + $0x960] sm:$0xff]
      %v3332 = vld [vmem:[%s5 + $0x968] sm:$0xff]
      %v3333 = vld [vmem:[%s5 + $0x970] sm:$0xff]
      %v3334 = vld [vmem:[%s5 + $0x978] sm:$0xff]
      %v3335 = vld [vmem:[%s5 + $0x980] sm:$0xff]
      %v3336 = vld [vmem:[%s5 + $0x988] sm:$0xff]
      %v3337 = vld [vmem:[%s5 + $0x990] sm:$0xff]
      %v3338 = vld [vmem:[%s5 + $0x998] sm:$0xff]
      %v3339 = vld [vmem:[%s5 + $0x9a0] sm:$0xff]
      %v3340 = vld [vmem:[%s5 + $0x9a8] sm:$0xff]
      %v3341 = vld [vmem:[%s5 + $0x9b0] sm:$0xff]
      %v3342 = vld [vmem:[%s5 + $0x9b8] sm:$0xff]
      %v3343 = vld [vmem:[%s5 + $0x9c0] sm:$0xff]
      %v3344 = vld [vmem:[%s5 + $0x9c8] sm:$0xff]
      %v3345 = vld [vmem:[%s5 + $0x9d0] sm:$0xff]
      %v3346 = vld [vmem:[%s5 + $0x9d8] sm:$0xff]
      %v3347 = vld [vmem:[%s5 + $0x9e0] sm:$0xff]
      %v3348 = vld [vmem:[%s5 + $0x9e8] sm:$0xff]
      %v3349 = vld [vmem:[%s5 + $0x9f0] sm:$0xff]
      %v3350 = vld [vmem:[%s5 + $0x9f8] sm:$0xff]
      %v3351 = vld [vmem:[%s5 + $0xa00] sm:$0xff]
      %v3352 = vld [vmem:[%s5 + $0xa08] sm:$0xff]
      %v3353 = vld [vmem:[%s5 + $0xa10] sm:$0xff]
      %v3354 = vld [vmem:[%s5 + $0xa18] sm:$0xff]
      %v3355 = vld [vmem:[%s5 + $0xa20] sm:$0xff]
      %v3356 = vld [vmem:[%s5 + $0xa28] sm:$0xff]
      %v3357 = vld [vmem:[%s5 + $0xa30] sm:$0xff]
      %v3358 = vld [vmem:[%s5 + $0xa38] sm:$0xff]
      %v3359 = vld [vmem:[%s5 + $0xa40] sm:$0xff]
      %v3360 = vld [vmem:[%s5 + $0xa48] sm:$0xff]
      %v3361 = vld [vmem:[%s5 + $0xa50] sm:$0xff]
      %v3362 = vld [vmem:[%s5 + $0xa58] sm:$0xff]
      %v3363 = vld [vmem:[%s5 + $0xa60] sm:$0xff]
      %v3364 = vld [vmem:[%s5 + $0xa68] sm:$0xff]
      %v3365 = vld [vmem:[%s5 + $0xa70] sm:$0xff]
      %v3366 = vld [vmem:[%s5 + $0xa78] sm:$0xff]
      %v3367 = vld [vmem:[%s5 + $0xa80] sm:$0xff]
      %v3368 = vld [vmem:[%s5 + $0xa88] sm:$0xff]
      %v3369 = vld [vmem:[%s5 + $0xa90] sm:$0xff]
      %v3370 = vld [vmem:[%s5 + $0xa98] sm:$0xff]
      %v3371 = vld [vmem:[%s5 + $0xaa0] sm:$0xff]
      %v3372 = vld [vmem:[%s5 + $0xaa8] sm:$0xff]
      %v3373 = vld [vmem:[%s5 + $0xab0] sm:$0xff]
      %v3374 = vld [vmem:[%s5 + $0xab8] sm:$0xff]
      %v3375 = vld [vmem:[%s5 + $0xac0] sm:$0xff]
      %v3376 = vld [vmem:[%s5 + $0xac8] sm:$0xff]
      %v3377 = vld [vmem:[%s5 + $0xad0] sm:$0xff]
      %v3378 = vld [vmem:[%s5 + $0xad8] sm:$0xff]
      %v3379 = vld [vmem:[%s5 + $0xae0] sm:$0xff]
      %v3380 = vld [vmem:[%s5 + $0xae8] sm:$0xff]
      %v3381 = vld [vmem:[%s5 + $0xaf0] sm:$0xff]
      %v3382 = vld [vmem:[%s5 + $0xaf8] sm:$0xff]
      %v3383 = vld [vmem:[%s5 + $0xb00] sm:$0xff]
      %v3384 = vld [vmem:[%s5 + $0xb08] sm:$0xff]
      %v3385 = vld [vmem:[%s5 + $0xb10] sm:$0xff]
      %v3386 = vld [vmem:[%s5 + $0xb18] sm:$0xff]
      %v3387 = vld [vmem:[%s5 + $0xb20] sm:$0xff]
      %v3388 = vld [vmem:[%s5 + $0xb28] sm:$0xff]
      %v3389 = vld [vmem:[%s5 + $0xb30] sm:$0xff]
      %v3390 = vld [vmem:[%s5 + $0xb38] sm:$0xff]
      %v3391 = vld [vmem:[%s5 + $0xb40] sm:$0xff]
      %v3392 = vld [vmem:[%s5 + $0xb48] sm:$0xff]
      %v3393 = vld [vmem:[%s5 + $0xb50] sm:$0xff]
      %v3394 = vld [vmem:[%s5 + $0xb58] sm:$0xff]
      %v3395 = vld [vmem:[%s5 + $0xb60] sm:$0xff]
      %v3396 = vld [vmem:[%s5 + $0xb68] sm:$0xff]
      %v3397 = vld [vmem:[%s5 + $0xb70] sm:$0xff]
      %v3398 = vld [vmem:[%s5 + $0xb78] sm:$0xff]
      %v3399 = vld [vmem:[%s5 + $0xb80] sm:$0xff]
      %v3400 = vld [vmem:[%s5 + $0xb88] sm:$0xff]
      %v3401 = vld [vmem:[%s5 + $0xb90] sm:$0xff]
      %v3402 = vld [vmem:[%s5 + $0xb98] sm:$0xff]
      %v3403 = vld [vmem:[%s5 + $0xba0] sm:$0xff]
      %v3404 = vld [vmem:[%s5 + $0xba8] sm:$0xff]
      %v3405 = vld [vmem:[%s5 + $0xbb0] sm:$0xff]
      %v3406 = vld [vmem:[%s5 + $0xbb8] sm:$0xff]
      %v3407 = vld [vmem:[%s5 + $0xbc0] sm:$0xff]
      %v3408 = vld [vmem:[%s5 + $0xbc8] sm:$0xff]
      %v3409 = vld [vmem:[%s5 + $0xbd0] sm:$0xff]
      %v3410 = vld [vmem:[%s5 + $0xbd8] sm:$0xff]
      %v3411 = vld [vmem:[%s5 + $0xbe0] sm:$0xff]
      %v3412 = vld [vmem:[%s5 + $0xbe8] sm:$0xff]
      %v3413 = vld [vmem:[%s5 + $0xbf0] sm:$0xff]
      %v3414 = vld [vmem:[%s5 + $0xbf8] sm:$0xff]
      %v3415 = vld [vmem:[%s5 + $0xc00] sm:$0xff]
      %v3416 = vld [vmem:[%s5 + $0xc08] sm:$0xff]
      %v3417 = vld [vmem:[%s5 + $0xc10] sm:$0xff]
      %v3418 = vld [vmem:[%s5 + $0xc18] sm:$0xff]
      %v3419 = vld [vmem:[%s5 + $0xc20] sm:$0xff]
      %v3420 = vld [vmem:[%s5 + $0xc28] sm:$0xff]
      %v3421 = vld [vmem:[%s5 + $0xc30] sm:$0xff]
      %v3422 = vld [vmem:[%s5 + $0xc38] sm:$0xff]
      %v3423 = vld [vmem:[%s5 + $0xc40] sm:$0xff]
      %v3424 = vld [vmem:[%s5 + $0xc48] sm:$0xff]
      %v3425 = vld [vmem:[%s5 + $0xc50] sm:$0xff]
      %v3426 = vld [vmem:[%s5 + $0xc58] sm:$0xff]
      %v3427 = vld [vmem:[%s5 + $0xc60] sm:$0xff]
      %v3428 = vld [vmem:[%s5 + $0xc68] sm:$0xff]
      %v3429 = vld [vmem:[%s5 + $0xc70] sm:$0xff]
      %v3430 = vld [vmem:[%s5 + $0xc78] sm:$0xff]
      %v3431 = vld [vmem:[%s5 + $0xc80] sm:$0xff]
      %v3432 = vld [vmem:[%s5 + $0xc88] sm:$0xff]
      %v3433 = vld [vmem:[%s5 + $0xc90] sm:$0xff]
      %v3434 = vld [vmem:[%s5 + $0xc98] sm:$0xff]
      %v3435 = vld [vmem:[%s5 + $0xca0] sm:$0xff]
      %v3436 = vld [vmem:[%s5 + $0xca8] sm:$0xff]
      %v3437 = vld [vmem:[%s5 + $0xcb0] sm:$0xff]
      %v3438 = vld [vmem:[%s5 + $0xcb8] sm:$0xff]
      %v3439 = vld [vmem:[%s5 + $0xcc0] sm:$0xff]
      %v3440 = vld [vmem:[%s5 + $0xcc8] sm:$0xff]
      %v3441 = vld [vmem:[%s5 + $0xcd0] sm:$0xff]
      %v3442 = vld [vmem:[%s5 + $0xcd8] sm:$0xff]
      %v3443 = vld [vmem:[%s5 + $0xce0] sm:$0xff]
      %v3444 = vld [vmem:[%s5 + $0xce8] sm:$0xff]
      %v3445 = vld [vmem:[%s5 + $0xcf0] sm:$0xff]
      %v3446 = vld [vmem:[%s5 + $0xcf8] sm:$0xff]
      %v3447 = vld [vmem:[%s5 + $0xd00] sm:$0xff]
      %v3448 = vld [vmem:[%s5 + $0xd08] sm:$0xff]
      %v3449 = vld [vmem:[%s5 + $0xd10] sm:$0xff]
      %v3450 = vld [vmem:[%s5 + $0xd18] sm:$0xff]
      %v3451 = vld [vmem:[%s5 + $0xd20] sm:$0xff]
      %v3452 = vld [vmem:[%s5 + $0xd28] sm:$0xff]
      %v3453 = vld [vmem:[%s5 + $0xd30] sm:$0xff]
      %v3454 = vld [vmem:[%s5 + $0xd38] sm:$0xff]
      %v3455 = vld [vmem:[%s5 + $0xd40] sm:$0xff]
      %v3456 = vld [vmem:[%s5 + $0xd48] sm:$0xff]
      %v3457 = vld [vmem:[%s5 + $0xd50] sm:$0xff]
      %v3458 = vld [vmem:[%s5 + $0xd58] sm:$0xff]
      %v3459 = vld [vmem:[%s5 + $0xd60] sm:$0xff]
      %v3460 = vld [vmem:[%s5 + $0xd68] sm:$0xff]
      %v3461 = vld [vmem:[%s5 + $0xd70] sm:$0xff]
      %v3462 = vld [vmem:[%s5 + $0xd78] sm:$0xff]
      %v3463 = vld [vmem:[%s5 + $0xd80] sm:$0xff]
      %v3464 = vld [vmem:[%s5 + $0xd88] sm:$0xff]
      %v3465 = vld [vmem:[%s5 + $0xd90] sm:$0xff]
      %v3466 = vld [vmem:[%s5 + $0xd98] sm:$0xff]
      %v3467 = vld [vmem:[%s5 + $0xda0] sm:$0xff]
      %v3468 = vld [vmem:[%s5 + $0xda8] sm:$0xff]
      %v3469 = vld [vmem:[%s5 + $0xdb0] sm:$0xff]
      %v3470 = vld [vmem:[%s5 + $0xdb8] sm:$0xff]
      %v3471 = vld [vmem:[%s5 + $0xdc0] sm:$0xff]
      %v3472 = vld [vmem:[%s5 + $0xdc8] sm:$0xff]
      %v3473 = vld [vmem:[%s5 + $0xdd0] sm:$0xff]
      %v3474 = vld [vmem:[%s5 + $0xdd8] sm:$0xff]
      %v3475 = vld [vmem:[%s5 + $0xde0] sm:$0xff]
      %v3476 = vld [vmem:[%s5 + $0xde8] sm:$0xff]
      %v3477 = vld [vmem:[%s5 + $0xdf0] sm:$0xff]
      %v3478 = vld [vmem:[%s5 + $0xdf8] sm:$0xff]
      %v3479 = vld [vmem:[%s5 + $0xe00] sm:$0xff]
      %v3480 = vld [vmem:[%s5 + $0xe08] sm:$0xff]
      %v3481 = vld [vmem:[%s5 + $0xe10] sm:$0xff]
      %v3482 = vld [vmem:[%s5 + $0xe18] sm:$0xff]
      %v3483 = vld [vmem:[%s5 + $0xe20] sm:$0xff]
      %v3484 = vld [vmem:[%s5 + $0xe28] sm:$0xff]
      %v3485 = vld [vmem:[%s5 + $0xe30] sm:$0xff]
      %v3486 = vld [vmem:[%s5 + $0xe38] sm:$0xff]
      %v3487 = vld [vmem:[%s5 + $0xe40] sm:$0xff]
      %v3488 = vld [vmem:[%s5 + $0xe48] sm:$0xff]
      %v3489 = vld [vmem:[%s5 + $0xe50] sm:$0xff]
      %v3490 = vld [vmem:[%s5 + $0xe58] sm:$0xff]
      %v3491 = vld [vmem:[%s5 + $0xe60] sm:$0xff]
      %v3492 = vld [vmem:[%s5 + $0xe68] sm:$0xff]
      %v3493 = vld [vmem:[%s5 + $0xe70] sm:$0xff]
      %v3494 = vld [vmem:[%s5 + $0xe78] sm:$0xff]
      %v3495 = vld [vmem:[%s5 + $0xe80] sm:$0xff]
      %v3496 = vld [vmem:[%s5 + $0xe88] sm:$0xff]
      %v3497 = vld [vmem:[%s5 + $0xe90] sm:$0xff]
      %v3498 = vld [vmem:[%s5 + $0xe98] sm:$0xff]
      %v3499 = vld [vmem:[%s5 + $0xea0] sm:$0xff]
      %v3500 = vld [vmem:[%s5 + $0xea8] sm:$0xff]
      %v3501 = vld [vmem:[%s5 + $0xeb0] sm:$0xff]
      %v3502 = vld [vmem:[%s5 + $0xeb8] sm:$0xff]
      %v3503 = vld [vmem:[%s5 + $0xec0] sm:$0xff]
      %v3504 = vld [vmem:[%s5 + $0xec8] sm:$0xff]
      %v3505 = vld [vmem:[%s5 + $0xed0] sm:$0xff]
      %v3506 = vld [vmem:[%s5 + $0xed8] sm:$0xff]
      %v3507 = vld [vmem:[%s5 + $0xee0] sm:$0xff]
      %v3508 = vld [vmem:[%s5 + $0xee8] sm:$0xff]
      %v3509 = vld [vmem:[%s5 + $0xef0] sm:$0xff]
      %v3510 = vld [vmem:[%s5 + $0xef8] sm:$0xff]
      %v3511 = vld [vmem:[%s5 + $0xf00] sm:$0xff]
      %v3512 = vld [vmem:[%s5 + $0xf08] sm:$0xff]
      %v3513 = vld [vmem:[%s5 + $0xf10] sm:$0xff]
      %v3514 = vld [vmem:[%s5 + $0xf18] sm:$0xff]
      %v3515 = vld [vmem:[%s5 + $0xf20] sm:$0xff]
      %v3516 = vld [vmem:[%s5 + $0xf28] sm:$0xff]
      %v3517 = vld [vmem:[%s5 + $0xf30] sm:$0xff]
      %v3518 = vld [vmem:[%s5 + $0xf38] sm:$0xff]
      %v3519 = vld [vmem:[%s5 + $0xf40] sm:$0xff]
      %v3520 = vld [vmem:[%s5 + $0xf48] sm:$0xff]
      %v3521 = vld [vmem:[%s5 + $0xf50] sm:$0xff]
      %v3522 = vld [vmem:[%s5 + $0xf58] sm:$0xff]
      %v3523 = vld [vmem:[%s5 + $0xf60] sm:$0xff]
      %v3524 = vld [vmem:[%s5 + $0xf68] sm:$0xff]
      %v3525 = vld [vmem:[%s5 + $0xf70] sm:$0xff]
      %v3526 = vld [vmem:[%s5 + $0xf78] sm:$0xff]
      %v3527 = vld [vmem:[%s5 + $0xf80] sm:$0xff]
      %v3528 = vld [vmem:[%s5 + $0xf88] sm:$0xff]
      %v3529 = vld [vmem:[%s5 + $0xf90] sm:$0xff]
      %v3530 = vld [vmem:[%s5 + $0xf98] sm:$0xff]
      %v3531 = vld [vmem:[%s5 + $0xfa0] sm:$0xff]
      %v3532 = vld [vmem:[%s5 + $0xfa8] sm:$0xff]
      %v3533 = vld [vmem:[%s5 + $0xfb0] sm:$0xff]
      %v3534 = vld [vmem:[%s5 + $0xfb8] sm:$0xff]
      %v3535 = vld [vmem:[%s5 + $0xfc0] sm:$0xff]
      %v3536 = vld [vmem:[%s5 + $0xfc8] sm:$0xff]
      %v3537 = vld [vmem:[%s5 + $0xfd0] sm:$0xff]
      %v3538 = vld [vmem:[%s5 + $0xfd8] sm:$0xff]
      %v3539 = vld [vmem:[%s5 + $0xfe0] sm:$0xff]
      %v3540 = vld [vmem:[%s5 + $0xfe8] sm:$0xff]
      %v3541 = vld [vmem:[%s5 + $0xff0] sm:$0xff]
      %v3542 = vld [vmem:[%s5 + $0xff8] sm:$0xff]
      %3543 = vmatpush.msra.mxu0 %v3061
      %3544 = vmatpush.msra.mxu0 %v3059
      %3545 = vmatpush.msra.mxu0 %v3057
      %3546 = vmatpush.msra.mxu0 %v3055
      %3547 = vmatpush.msra.mxu0 %v3053
      %3548 = vmatpush.msra.mxu0 %v3051
      %3549 = vmatpush.msra.mxu0 %v3049
      %3550 = vmatpush.msra.mxu0 %v3047
      %3551 = vmatpush.msra.mxu0 %v3045
      %3552 = vmatpush.msra.mxu0 %v3043
      %3553 = vmatpush.msra.mxu0 %v3041
      %3554 = vmatpush.msra.mxu0 %v3039
      %3555 = vmatpush.msra.mxu0 %v3037
      %3556 = vmatpush.msra.mxu0 %v3035
      %3557 = vmatpush.msra.mxu0 %v3033
      %3558 = vmatpush.msra.mxu0 %v3031
      %3559 = vmatmul.f32.gmra.mxu0 %v2895
      %v3560 = vpop.f32.mrf.mxu0
      %v3561 = vadd.f32 0.0, %v3560
      %3562 = vdwg.mxu0
      %3563 = vmatpush.msra.mxu0 %v3093
      %3564 = vmatpush.msra.mxu0 %v3091
      %3565 = vmatpush.msra.mxu0 %v3089
      %3566 = vmatpush.msra.mxu0 %v3087
      %3567 = vmatpush.msra.mxu0 %v3085
      %3568 = vmatpush.msra.mxu0 %v3083
      %3569 = vmatpush.msra.mxu0 %v3081
      %3570 = vmatpush.msra.mxu0 %v3079
      %3571 = vmatpush.msra.mxu0 %v3077
      %3572 = vmatpush.msra.mxu0 %v3075
      %3573 = vmatpush.msra.mxu0 %v3073
      %3574 = vmatpush.msra.mxu0 %v3071
      %3575 = vmatpush.msra.mxu0 %v3069
      %3576 = vmatpush.msra.mxu0 %v3067
      %3577 = vmatpush.msra.mxu0 %v3065
      %3578 = vmatpush.msra.mxu0 %v3063
      %3579 = vmatmul.f32.gmra.mxu0 %v2902
      %v3580 = vpop.f32.mrf.mxu0
      %v3581 = vadd.f32 %v3561, %v3580
      %3582 = vdwg.mxu0
      %3583 = vmatpush.msra.mxu0 %v3125
      %3584 = vmatpush.msra.mxu0 %v3123
      %3585 = vmatpush.msra.mxu0 %v3121
      %3586 = vmatpush.msra.mxu0 %v3119
      %3587 = vmatpush.msra.mxu0 %v3117
      %3588 = vmatpush.msra.mxu0 %v3115
      %3589 = vmatpush.msra.mxu0 %v3113
      %3590 = vmatpush.msra.mxu0 %v3111
      %3591 = vmatpush.msra.mxu0 %v3109
      %3592 = vmatpush.msra.mxu0 %v3107
      %3593 = vmatpush.msra.mxu0 %v3105
      %3594 = vmatpush.msra.mxu0 %v3103
      %3595 = vmatpush.msra.mxu0 %v3101
      %3596 = vmatpush.msra.mxu0 %v3099
      %3597 = vmatpush.msra.mxu0 %v3097
      %3598 = vmatpush.msra.mxu0 %v3095
      %3599 = vmatmul.f32.gmra.mxu0 %v2909
      %v3600 = vpop.f32.mrf.mxu0
      %v3601 = vadd.f32 %v3581, %v3600
      %3602 = vdwg.mxu0
      %3603 = vmatpush.msra.mxu0 %v3157
      %3604 = vmatpush.msra.mxu0 %v3155
      %3605 = vmatpush.msra.mxu0 %v3153
      %3606 = vmatpush.msra.mxu0 %v3151
      %3607 = vmatpush.msra.mxu0 %v3149
      %3608 = vmatpush.msra.mxu0 %v3147
      %3609 = vmatpush.msra.mxu0 %v3145
      %3610 = vmatpush.msra.mxu0 %v3143
      %3611 = vmatpush.msra.mxu0 %v3141
      %3612 = vmatpush.msra.mxu0 %v3139
      %3613 = vmatpush.msra.mxu0 %v3137
      %3614 = vmatpush.msra.mxu0 %v3135
      %3615 = vmatpush.msra.mxu0 %v3133
      %3616 = vmatpush.msra.mxu0 %v3131
      %3617 = vmatpush.msra.mxu0 %v3129
      %3618 = vmatpush.msra.mxu0 %v3127
      %3619 = vmatmul.f32.gmra.mxu0 %v2916
      %v3620 = vpop.f32.mrf.mxu0
      %v3621 = vadd.f32 %v3601, %v3620
      %3622 = vdwg.mxu0
      %3623 = vmatpush.msra.mxu0 %v3189
      %3624 = vmatpush.msra.mxu0 %v3187
      %3625 = vmatpush.msra.mxu0 %v3185
      %3626 = vmatpush.msra.mxu0 %v3183
      %3627 = vmatpush.msra.mxu0 %v3181
      %3628 = vmatpush.msra.mxu0 %v3179
      %3629 = vmatpush.msra.mxu0 %v3177
      %3630 = vmatpush.msra.mxu0 %v3175
      %3631 = vmatpush.msra.mxu0 %v3173
      %3632 = vmatpush.msra.mxu0 %v3171
      %3633 = vmatpush.msra.mxu0 %v3169
      %3634 = vmatpush.msra.mxu0 %v3167
      %3635 = vmatpush.msra.mxu0 %v3165
      %3636 = vmatpush.msra.mxu0 %v3163
      %3637 = vmatpush.msra.mxu0 %v3161
      %3638 = vmatpush.msra.mxu0 %v3159
      %3639 = vmatmul.f32.gmra.mxu0 %v2923
      %v3640 = vpop.f32.mrf.mxu0
      %v3641 = vadd.f32 %v3621, %v3640
      %3642 = vdwg.mxu0
      %3643 = vmatpush.msra.mxu0 %v3221
      %3644 = vmatpush.msra.mxu0 %v3219
      %3645 = vmatpush.msra.mxu0 %v3217
      %3646 = vmatpush.msra.mxu0 %v3215
      %3647 = vmatpush.msra.mxu0 %v3213
      %3648 = vmatpush.msra.mxu0 %v3211
      %3649 = vmatpush.msra.mxu0 %v3209
      %3650 = vmatpush.msra.mxu0 %v3207
      %3651 = vmatpush.msra.mxu0 %v3205
      %3652 = vmatpush.msra.mxu0 %v3203
      %3653 = vmatpush.msra.mxu0 %v3201
      %3654 = vmatpush.msra.mxu0 %v3199
      %3655 = vmatpush.msra.mxu0 %v3197
      %3656 = vmatpush.msra.mxu0 %v3195
      %3657 = vmatpush.msra.mxu0 %v3193
      %3658 = vmatpush.msra.mxu0 %v3191
      %3659 = vmatmul.f32.gmra.mxu0 %v2930
      %v3660 = vpop.f32.mrf.mxu0
      %v3661 = vadd.f32 %v3641, %v3660
      %3662 = vdwg.mxu0
      %3663 = vmatpush.msra.mxu0 %v3253
      %3664 = vmatpush.msra.mxu0 %v3251
      %3665 = vmatpush.msra.mxu0 %v3249
      %3666 = vmatpush.msra.mxu0 %v3247
      %3667 = vmatpush.msra.mxu0 %v3245
      %3668 = vmatpush.msra.mxu0 %v3243
      %3669 = vmatpush.msra.mxu0 %v3241
      %3670 = vmatpush.msra.mxu0 %v3239
      %3671 = vmatpush.msra.mxu0 %v3237
      %3672 = vmatpush.msra.mxu0 %v3235
      %3673 = vmatpush.msra.mxu0 %v3233
      %3674 = vmatpush.msra.mxu0 %v3231
      %3675 = vmatpush.msra.mxu0 %v3229
      %3676 = vmatpush.msra.mxu0 %v3227
      %3677 = vmatpush.msra.mxu0 %v3225
      %3678 = vmatpush.msra.mxu0 %v3223
      %3679 = vmatmul.f32.gmra.mxu0 %v2937
      %v3680 = vpop.f32.mrf.mxu0
      %v3681 = vadd.f32 %v3661, %v3680
      %3682 = vdwg.mxu0
      %3683 = vmatpush.msra.mxu0 %v3285
      %3684 = vmatpush.msra.mxu0 %v3283
      %3685 = vmatpush.msra.mxu0 %v3281
      %3686 = vmatpush.msra.mxu0 %v3279
      %3687 = vmatpush.msra.mxu0 %v3277
      %3688 = vmatpush.msra.mxu0 %v3275
      %3689 = vmatpush.msra.mxu0 %v3273
      %3690 = vmatpush.msra.mxu0 %v3271
      %3691 = vmatpush.msra.mxu0 %v3269
      %3692 = vmatpush.msra.mxu0 %v3267
      %3693 = vmatpush.msra.mxu0 %v3265
      %3694 = vmatpush.msra.mxu0 %v3263
      %3695 = vmatpush.msra.mxu0 %v3261
      %3696 = vmatpush.msra.mxu0 %v3259
      %3697 = vmatpush.msra.mxu0 %v3257
      %3698 = vmatpush.msra.mxu0 %v3255
      %3699 = vmatmul.f32.gmra.mxu0 %v2944
      %v3700 = vpop.f32.mrf.mxu0
      %v3701 = vadd.f32 %v3681, %v3700
      %3702 = vdwg.mxu0
      %3703 = vmatpush.msra.mxu0 %v3317
      %3704 = vmatpush.msra.mxu0 %v3315
      %3705 = vmatpush.msra.mxu0 %v3313
      %3706 = vmatpush.msra.mxu0 %v3311
      %3707 = vmatpush.msra.mxu0 %v3309
      %3708 = vmatpush.msra.mxu0 %v3307
      %3709 = vmatpush.msra.mxu0 %v3305
      %3710 = vmatpush.msra.mxu0 %v3303
      %3711 = vmatpush.msra.mxu0 %v3301
      %3712 = vmatpush.msra.mxu0 %v3299
      %3713 = vmatpush.msra.mxu0 %v3297
      %3714 = vmatpush.msra.mxu0 %v3295
      %3715 = vmatpush.msra.mxu0 %v3293
      %3716 = vmatpush.msra.mxu0 %v3291
      %3717 = vmatpush.msra.mxu0 %v3289
      %3718 = vmatpush.msra.mxu0 %v3287
      %3719 = vmatmul.f32.gmra.mxu0 %v2951
      %v3720 = vpop.f32.mrf.mxu0
      %v3721 = vadd.f32 %v3701, %v3720
      %3722 = vdwg.mxu0
      %3723 = vmatpush.msra.mxu0 %v3349
      %3724 = vmatpush.msra.mxu0 %v3347
      %3725 = vmatpush.msra.mxu0 %v3345
      %3726 = vmatpush.msra.mxu0 %v3343
      %3727 = vmatpush.msra.mxu0 %v3341
      %3728 = vmatpush.msra.mxu0 %v3339
      %3729 = vmatpush.msra.mxu0 %v3337
      %3730 = vmatpush.msra.mxu0 %v3335
      %3731 = vmatpush.msra.mxu0 %v3333
      %3732 = vmatpush.msra.mxu0 %v3331
      %3733 = vmatpush.msra.mxu0 %v3329
      %3734 = vmatpush.msra.mxu0 %v3327
      %3735 = vmatpush.msra.mxu0 %v3325
      %3736 = vmatpush.msra.mxu0 %v3323
      %3737 = vmatpush.msra.mxu0 %v3321
      %3738 = vmatpush.msra.mxu0 %v3319
      %3739 = vmatmul.f32.gmra.mxu0 %v2958
      %v3740 = vpop.f32.mrf.mxu0
      %v3741 = vadd.f32 %v3721, %v3740
      %3742 = vdwg.mxu0
      %3743 = vmatpush.msra.mxu0 %v3381
      %3744 = vmatpush.msra.mxu0 %v3379
      %3745 = vmatpush.msra.mxu0 %v3377
      %3746 = vmatpush.msra.mxu0 %v3375
      %3747 = vmatpush.msra.mxu0 %v3373
      %3748 = vmatpush.msra.mxu0 %v3371
      %3749 = vmatpush.msra.mxu0 %v3369
      %3750 = vmatpush.msra.mxu0 %v3367
      %3751 = vmatpush.msra.mxu0 %v3365
      %3752 = vmatpush.msra.mxu0 %v3363
      %3753 = vmatpush.msra.mxu0 %v3361
      %3754 = vmatpush.msra.mxu0 %v3359
      %3755 = vmatpush.msra.mxu0 %v3357
      %3756 = vmatpush.msra.mxu0 %v3355
      %3757 = vmatpush.msra.mxu0 %v3353
      %3758 = vmatpush.msra.mxu0 %v3351
      %3759 = vmatmul.f32.gmra.mxu0 %v2965
      %v3760 = vpop.f32.mrf.mxu0
      %v3761 = vadd.f32 %v3741, %v3760
      %3762 = vdwg.mxu0
      %3763 = vmatpush.msra.mxu0 %v3413
      %3764 = vmatpush.msra.mxu0 %v3411
      %3765 = vmatpush.msra.mxu0 %v3409
      %3766 = vmatpush.msra.mxu0 %v3407
      %3767 = vmatpush.msra.mxu0 %v3405
      %3768 = vmatpush.msra.mxu0 %v3403
      %3769 = vmatpush.msra.mxu0 %v3401
      %3770 = vmatpush.msra.mxu0 %v3399
      %3771 = vmatpush.msra.mxu0 %v3397
      %3772 = vmatpush.msra.mxu0 %v3395
      %3773 = vmatpush.msra.mxu0 %v3393
      %3774 = vmatpush.msra.mxu0 %v3391
      %3775 = vmatpush.msra.mxu0 %v3389
      %3776 = vmatpush.msra.mxu0 %v3387
      %3777 = vmatpush.msra.mxu0 %v3385
      %3778 = vmatpush.msra.mxu0 %v3383
      %3779 = vmatmul.f32.gmra.mxu0 %v2972
      %v3780 = vpop.f32.mrf.mxu0
      %v3781 = vadd.f32 %v3761, %v3780
      %3782 = vdwg.mxu0
      %3783 = vmatpush.msra.mxu0 %v3445
      %3784 = vmatpush.msra.mxu0 %v3443
      %3785 = vmatpush.msra.mxu0 %v3441
      %3786 = vmatpush.msra.mxu0 %v3439
      %3787 = vmatpush.msra.mxu0 %v3437
      %3788 = vmatpush.msra.mxu0 %v3435
      %3789 = vmatpush.msra.mxu0 %v3433
      %3790 = vmatpush.msra.mxu0 %v3431
      %3791 = vmatpush.msra.mxu0 %v3429
      %3792 = vmatpush.msra.mxu0 %v3427
      %3793 = vmatpush.msra.mxu0 %v3425
      %3794 = vmatpush.msra.mxu0 %v3423
      %3795 = vmatpush.msra.mxu0 %v3421
      %3796 = vmatpush.msra.mxu0 %v3419
      %3797 = vmatpush.msra.mxu0 %v3417
      %3798 = vmatpush.msra.mxu0 %v3415
      %3799 = vmatmul.f32.gmra.mxu0 %v2979
      %v3800 = vpop.f32.mrf.mxu0
      %v3801 = vadd.f32 %v3781, %v3800
      %3802 = vdwg.mxu0
      %3803 = vmatpush.msra.mxu0 %v3477
      %3804 = vmatpush.msra.mxu0 %v3475
      %3805 = vmatpush.msra.mxu0 %v3473
      %3806 = vmatpush.msra.mxu0 %v3471
      %3807 = vmatpush.msra.mxu0 %v3469
      %3808 = vmatpush.msra.mxu0 %v3467
      %3809 = vmatpush.msra.mxu0 %v3465
      %3810 = vmatpush.msra.mxu0 %v3463
      %3811 = vmatpush.msra.mxu0 %v3461
      %3812 = vmatpush.msra.mxu0 %v3459
      %3813 = vmatpush.msra.mxu0 %v3457
      %3814 = vmatpush.msra.mxu0 %v3455
      %3815 = vmatpush.msra.mxu0 %v3453
      %3816 = vmatpush.msra.mxu0 %v3451
      %3817 = vmatpush.msra.mxu0 %v3449
      %3818 = vmatpush.msra.mxu0 %v3447
      %3819 = vmatmul.f32.gmra.mxu0 %v2986
      %v3820 = vpop.f32.mrf.mxu0
      %v3821 = vadd.f32 %v3801, %v3820
      %3822 = vdwg.mxu0
      %3823 = vmatpush.msra.mxu0 %v3509
      %3824 = vmatpush.msra.mxu0 %v3507
      %3825 = vmatpush.msra.mxu0 %v3505
      %3826 = vmatpush.msra.mxu0 %v3503
      %3827 = vmatpush.msra.mxu0 %v3501
      %3828 = vmatpush.msra.mxu0 %v3499
      %3829 = vmatpush.msra.mxu0 %v3497
      %3830 = vmatpush.msra.mxu0 %v3495
      %3831 = vmatpush.msra.mxu0 %v3493
      %3832 = vmatpush.msra.mxu0 %v3491
      %3833 = vmatpush.msra.mxu0 %v3489
      %3834 = vmatpush.msra.mxu0 %v3487
      %3835 = vmatpush.msra.mxu0 %v3485
      %3836 = vmatpush.msra.mxu0 %v3483
      %3837 = vmatpush.msra.mxu0 %v3481
      %3838 = vmatpush.msra.mxu0 %v3479
      %3839 = vmatmul.f32.gmra.mxu0 %v2993
      %v3840 = vpop.f32.mrf.mxu0
      %v3841 = vadd.f32 %v3821, %v3840
      %3842 = vdwg.mxu0
      %3843 = vmatpush.msra.mxu0 %v3541
      %3844 = vmatpush.msra.mxu0 %v3539
      %3845 = vmatpush.msra.mxu0 %v3537
      %3846 = vmatpush.msra.mxu0 %v3535
      %3847 = vmatpush.msra.mxu0 %v3533
      %3848 = vmatpush.msra.mxu0 %v3531
      %3849 = vmatpush.msra.mxu0 %v3529
      %3850 = vmatpush.msra.mxu0 %v3527
      %3851 = vmatpush.msra.mxu0 %v3525
      %3852 = vmatpush.msra.mxu0 %v3523
      %3853 = vmatpush.msra.mxu0 %v3521
      %3854 = vmatpush.msra.mxu0 %v3519
      %3855 = vmatpush.msra.mxu0 %v3517
      %3856 = vmatpush.msra.mxu0 %v3515
      %3857 = vmatpush.msra.mxu0 %v3513
      %3858 = vmatpush.msra.mxu0 %v3511
      %3859 = vmatmul.f32.gmra.mxu0 %v3000
      %v3860 = vpop.f32.mrf.mxu0
      %v3861 = vadd.f32 %v3841, %v3860
      %3862 = vdwg.mxu0
      %3863 = vmatpush.msra.mxu0 %v3062
      %3864 = vmatpush.msra.mxu0 %v3060
      %3865 = vmatpush.msra.mxu0 %v3058
      %3866 = vmatpush.msra.mxu0 %v3056
      %3867 = vmatpush.msra.mxu0 %v3054
      %3868 = vmatpush.msra.mxu0 %v3052
      %3869 = vmatpush.msra.mxu0 %v3050
      %3870 = vmatpush.msra.mxu0 %v3048
      %3871 = vmatpush.msra.mxu0 %v3046
      %3872 = vmatpush.msra.mxu0 %v3044
      %3873 = vmatpush.msra.mxu0 %v3042
      %3874 = vmatpush.msra.mxu0 %v3040
      %3875 = vmatpush.msra.mxu0 %v3038
      %3876 = vmatpush.msra.mxu0 %v3036
      %3877 = vmatpush.msra.mxu0 %v3034
      %3878 = vmatpush.msra.mxu0 %v3032
      %3879 = vmatmul.f32.gmra.mxu0 %v2895
      %v3880 = vpop.f32.mrf.mxu0
      %v3881 = vadd.f32 0.0, %v3880
      %3882 = vdwg.mxu0
      %3883 = vmatpush.msra.mxu0 %v3094
      %3884 = vmatpush.msra.mxu0 %v3092
      %3885 = vmatpush.msra.mxu0 %v3090
      %3886 = vmatpush.msra.mxu0 %v3088
      %3887 = vmatpush.msra.mxu0 %v3086
      %3888 = vmatpush.msra.mxu0 %v3084
      %3889 = vmatpush.msra.mxu0 %v3082
      %3890 = vmatpush.msra.mxu0 %v3080
      %3891 = vmatpush.msra.mxu0 %v3078
      %3892 = vmatpush.msra.mxu0 %v3076
      %3893 = vmatpush.msra.mxu0 %v3074
      %3894 = vmatpush.msra.mxu0 %v3072
      %3895 = vmatpush.msra.mxu0 %v3070
      %3896 = vmatpush.msra.mxu0 %v3068
      %3897 = vmatpush.msra.mxu0 %v3066
      %3898 = vmatpush.msra.mxu0 %v3064
      %3899 = vmatmul.f32.gmra.mxu0 %v2902
      %v3900 = vpop.f32.mrf.mxu0
      %v3901 = vadd.f32 %v3881, %v3900
      %3902 = vdwg.mxu0
      %3903 = vmatpush.msra.mxu0 %v3126
      %3904 = vmatpush.msra.mxu0 %v3124
      %3905 = vmatpush.msra.mxu0 %v3122
      %3906 = vmatpush.msra.mxu0 %v3120
      %3907 = vmatpush.msra.mxu0 %v3118
      %3908 = vmatpush.msra.mxu0 %v3116
      %3909 = vmatpush.msra.mxu0 %v3114
      %3910 = vmatpush.msra.mxu0 %v3112
      %3911 = vmatpush.msra.mxu0 %v3110
      %3912 = vmatpush.msra.mxu0 %v3108
      %3913 = vmatpush.msra.mxu0 %v3106
      %3914 = vmatpush.msra.mxu0 %v3104
      %3915 = vmatpush.msra.mxu0 %v3102
      %3916 = vmatpush.msra.mxu0 %v3100
      %3917 = vmatpush.msra.mxu0 %v3098
      %3918 = vmatpush.msra.mxu0 %v3096
      %3919 = vmatmul.f32.gmra.mxu0 %v2909
      %v3920 = vpop.f32.mrf.mxu0
      %v3921 = vadd.f32 %v3901, %v3920
      %3922 = vdwg.mxu0
      %3923 = vmatpush.msra.mxu0 %v3158
      %3924 = vmatpush.msra.mxu0 %v3156
      %3925 = vmatpush.msra.mxu0 %v3154
      %3926 = vmatpush.msra.mxu0 %v3152
      %3927 = vmatpush.msra.mxu0 %v3150
      %3928 = vmatpush.msra.mxu0 %v3148
      %3929 = vmatpush.msra.mxu0 %v3146
      %3930 = vmatpush.msra.mxu0 %v3144
      %3931 = vmatpush.msra.mxu0 %v3142
      %3932 = vmatpush.msra.mxu0 %v3140
      %3933 = vmatpush.msra.mxu0 %v3138
      %3934 = vmatpush.msra.mxu0 %v3136
      %3935 = vmatpush.msra.mxu0 %v3134
      %3936 = vmatpush.msra.mxu0 %v3132
      %3937 = vmatpush.msra.mxu0 %v3130
      %3938 = vmatpush.msra.mxu0 %v3128
      %3939 = vmatmul.f32.gmra.mxu0 %v2916
      %v3940 = vpop.f32.mrf.mxu0
      %v3941 = vadd.f32 %v3921, %v3940
      %3942 = vdwg.mxu0
      %3943 = vmatpush.msra.mxu0 %v3190
      %3944 = vmatpush.msra.mxu0 %v3188
      %3945 = vmatpush.msra.mxu0 %v3186
      %3946 = vmatpush.msra.mxu0 %v3184
      %3947 = vmatpush.msra.mxu0 %v3182
      %3948 = vmatpush.msra.mxu0 %v3180
      %3949 = vmatpush.msra.mxu0 %v3178
      %3950 = vmatpush.msra.mxu0 %v3176
      %3951 = vmatpush.msra.mxu0 %v3174
      %3952 = vmatpush.msra.mxu0 %v3172
      %3953 = vmatpush.msra.mxu0 %v3170
      %3954 = vmatpush.msra.mxu0 %v3168
      %3955 = vmatpush.msra.mxu0 %v3166
      %3956 = vmatpush.msra.mxu0 %v3164
      %3957 = vmatpush.msra.mxu0 %v3162
      %3958 = vmatpush.msra.mxu0 %v3160
      %3959 = vmatmul.f32.gmra.mxu0 %v2923
      %v3960 = vpop.f32.mrf.mxu0
      %v3961 = vadd.f32 %v3941, %v3960
      %3962 = vdwg.mxu0
      %3963 = vmatpush.msra.mxu0 %v3222
      %3964 = vmatpush.msra.mxu0 %v3220
      %3965 = vmatpush.msra.mxu0 %v3218
      %3966 = vmatpush.msra.mxu0 %v3216
      %3967 = vmatpush.msra.mxu0 %v3214
      %3968 = vmatpush.msra.mxu0 %v3212
      %3969 = vmatpush.msra.mxu0 %v3210
      %3970 = vmatpush.msra.mxu0 %v3208
      %3971 = vmatpush.msra.mxu0 %v3206
      %3972 = vmatpush.msra.mxu0 %v3204
      %3973 = vmatpush.msra.mxu0 %v3202
      %3974 = vmatpush.msra.mxu0 %v3200
      %3975 = vmatpush.msra.mxu0 %v3198
      %3976 = vmatpush.msra.mxu0 %v3196
      %3977 = vmatpush.msra.mxu0 %v3194
      %3978 = vmatpush.msra.mxu0 %v3192
      %3979 = vmatmul.f32.gmra.mxu0 %v2930
      %v3980 = vpop.f32.mrf.mxu0
      %v3981 = vadd.f32 %v3961, %v3980
      %3982 = vdwg.mxu0
      %3983 = vmatpush.msra.mxu0 %v3254
      %3984 = vmatpush.msra.mxu0 %v3252
      %3985 = vmatpush.msra.mxu0 %v3250
      %3986 = vmatpush.msra.mxu0 %v3248
      %3987 = vmatpush.msra.mxu0 %v3246
      %3988 = vmatpush.msra.mxu0 %v3244
      %3989 = vmatpush.msra.mxu0 %v3242
      %3990 = vmatpush.msra.mxu0 %v3240
      %3991 = vmatpush.msra.mxu0 %v3238
      %3992 = vmatpush.msra.mxu0 %v3236
      %3993 = vmatpush.msra.mxu0 %v3234
      %3994 = vmatpush.msra.mxu0 %v3232
      %3995 = vmatpush.msra.mxu0 %v3230
      %3996 = vmatpush.msra.mxu0 %v3228
      %3997 = vmatpush.msra.mxu0 %v3226
      %3998 = vmatpush.msra.mxu0 %v3224
      %3999 = vmatmul.f32.gmra.mxu0 %v2937
      %v4000 = vpop.f32.mrf.mxu0
      %v4001 = vadd.f32 %v3981, %v4000
      %4002 = vdwg.mxu0
      %4003 = vmatpush.msra.mxu0 %v3286
      %4004 = vmatpush.msra.mxu0 %v3284
      %4005 = vmatpush.msra.mxu0 %v3282
      %4006 = vmatpush.msra.mxu0 %v3280
      %4007 = vmatpush.msra.mxu0 %v3278
      %4008 = vmatpush.msra.mxu0 %v3276
      %4009 = vmatpush.msra.mxu0 %v3274
      %4010 = vmatpush.msra.mxu0 %v3272
      %4011 = vmatpush.msra.mxu0 %v3270
      %4012 = vmatpush.msra.mxu0 %v3268
      %4013 = vmatpush.msra.mxu0 %v3266
      %4014 = vmatpush.msra.mxu0 %v3264
      %4015 = vmatpush.msra.mxu0 %v3262
      %4016 = vmatpush.msra.mxu0 %v3260
      %4017 = vmatpush.msra.mxu0 %v3258
      %4018 = vmatpush.msra.mxu0 %v3256
      %4019 = vmatmul.f32.gmra.mxu0 %v2944
      %v4020 = vpop.f32.mrf.mxu0
      %v4021 = vadd.f32 %v4001, %v4020
      %4022 = vdwg.mxu0
      %4023 = vmatpush.msra.mxu0 %v3318
      %4024 = vmatpush.msra.mxu0 %v3316
      %4025 = vmatpush.msra.mxu0 %v3314
      %4026 = vmatpush.msra.mxu0 %v3312
      %4027 = vmatpush.msra.mxu0 %v3310
      %4028 = vmatpush.msra.mxu0 %v3308
      %4029 = vmatpush.msra.mxu0 %v3306
      %4030 = vmatpush.msra.mxu0 %v3304
      %4031 = vmatpush.msra.mxu0 %v3302
      %4032 = vmatpush.msra.mxu0 %v3300
      %4033 = vmatpush.msra.mxu0 %v3298
      %4034 = vmatpush.msra.mxu0 %v3296
      %4035 = vmatpush.msra.mxu0 %v3294
      %4036 = vmatpush.msra.mxu0 %v3292
      %4037 = vmatpush.msra.mxu0 %v3290
      %4038 = vmatpush.msra.mxu0 %v3288
      %4039 = vmatmul.f32.gmra.mxu0 %v2951
      %v4040 = vpop.f32.mrf.mxu0
      %v4041 = vadd.f32 %v4021, %v4040
      %4042 = vdwg.mxu0
      %4043 = vmatpush.msra.mxu0 %v3350
      %4044 = vmatpush.msra.mxu0 %v3348
      %4045 = vmatpush.msra.mxu0 %v3346
      %4046 = vmatpush.msra.mxu0 %v3344
      %4047 = vmatpush.msra.mxu0 %v3342
      %4048 = vmatpush.msra.mxu0 %v3340
      %4049 = vmatpush.msra.mxu0 %v3338
      %4050 = vmatpush.msra.mxu0 %v3336
      %4051 = vmatpush.msra.mxu0 %v3334
      %4052 = vmatpush.msra.mxu0 %v3332
      %4053 = vmatpush.msra.mxu0 %v3330
      %4054 = vmatpush.msra.mxu0 %v3328
      %4055 = vmatpush.msra.mxu0 %v3326
      %4056 = vmatpush.msra.mxu0 %v3324
      %4057 = vmatpush.msra.mxu0 %v3322
      %4058 = vmatpush.msra.mxu0 %v3320
      %4059 = vmatmul.f32.gmra.mxu0 %v2958
      %v4060 = vpop.f32.mrf.mxu0
      %v4061 = vadd.f32 %v4041, %v4060
      %4062 = vdwg.mxu0
      %4063 = vmatpush.msra.mxu0 %v3382
      %4064 = vmatpush.msra.mxu0 %v3380
      %4065 = vmatpush.msra.mxu0 %v3378
      %4066 = vmatpush.msra.mxu0 %v3376
      %4067 = vmatpush.msra.mxu0 %v3374
      %4068 = vmatpush.msra.mxu0 %v3372
      %4069 = vmatpush.msra.mxu0 %v3370
      %4070 = vmatpush.msra.mxu0 %v3368
      %4071 = vmatpush.msra.mxu0 %v3366
      %4072 = vmatpush.msra.mxu0 %v3364
      %4073 = vmatpush.msra.mxu0 %v3362
      %4074 = vmatpush.msra.mxu0 %v3360
      %4075 = vmatpush.msra.mxu0 %v3358
      %4076 = vmatpush.msra.mxu0 %v3356
      %4077 = vmatpush.msra.mxu0 %v3354
      %4078 = vmatpush.msra.mxu0 %v3352
      %4079 = vmatmul.f32.gmra.mxu0 %v2965
      %v4080 = vpop.f32.mrf.mxu0
      %v4081 = vadd.f32 %v4061, %v4080
      %4082 = vdwg.mxu0
      %4083 = vmatpush.msra.mxu0 %v3414
      %4084 = vmatpush.msra.mxu0 %v3412
      %4085 = vmatpush.msra.mxu0 %v3410
      %4086 = vmatpush.msra.mxu0 %v3408
      %4087 = vmatpush.msra.mxu0 %v3406
      %4088 = vmatpush.msra.mxu0 %v3404
      %4089 = vmatpush.msra.mxu0 %v3402
      %4090 = vmatpush.msra.mxu0 %v3400
      %4091 = vmatpush.msra.mxu0 %v3398
      %4092 = vmatpush.msra.mxu0 %v3396
      %4093 = vmatpush.msra.mxu0 %v3394
      %4094 = vmatpush.msra.mxu0 %v3392
      %4095 = vmatpush.msra.mxu0 %v3390
      %4096 = vmatpush.msra.mxu0 %v3388
      %4097 = vmatpush.msra.mxu0 %v3386
      %4098 = vmatpush.msra.mxu0 %v3384
      %4099 = vmatmul.f32.gmra.mxu0 %v2972
      %v4100 = vpop.f32.mrf.mxu0
      %v4101 = vadd.f32 %v4081, %v4100
      %4102 = vdwg.mxu0
      %4103 = vmatpush.msra.mxu0 %v3446
      %4104 = vmatpush.msra.mxu0 %v3444
      %4105 = vmatpush.msra.mxu0 %v3442
      %4106 = vmatpush.msra.mxu0 %v3440
      %4107 = vmatpush.msra.mxu0 %v3438
      %4108 = vmatpush.msra.mxu0 %v3436
      %4109 = vmatpush.msra.mxu0 %v3434
      %4110 = vmatpush.msra.mxu0 %v3432
      %4111 = vmatpush.msra.mxu0 %v3430
      %4112 = vmatpush.msra.mxu0 %v3428
      %4113 = vmatpush.msra.mxu0 %v3426
      %4114 = vmatpush.msra.mxu0 %v3424
      %4115 = vmatpush.msra.mxu0 %v3422
      %4116 = vmatpush.msra.mxu0 %v3420
      %4117 = vmatpush.msra.mxu0 %v3418
      %4118 = vmatpush.msra.mxu0 %v3416
      %4119 = vmatmul.f32.gmra.mxu0 %v2979
      %v4120 = vpop.f32.mrf.mxu0
      %v4121 = vadd.f32 %v4101, %v4120
      %4122 = vdwg.mxu0
      %4123 = vmatpush.msra.mxu0 %v3478
      %4124 = vmatpush.msra.mxu0 %v3476
      %4125 = vmatpush.msra.mxu0 %v3474
      %4126 = vmatpush.msra.mxu0 %v3472
      %4127 = vmatpush.msra.mxu0 %v3470
      %4128 = vmatpush.msra.mxu0 %v3468
      %4129 = vmatpush.msra.mxu0 %v3466
      %4130 = vmatpush.msra.mxu0 %v3464
      %4131 = vmatpush.msra.mxu0 %v3462
      %4132 = vmatpush.msra.mxu0 %v3460
      %4133 = vmatpush.msra.mxu0 %v3458
      %4134 = vmatpush.msra.mxu0 %v3456
      %4135 = vmatpush.msra.mxu0 %v3454
      %4136 = vmatpush.msra.mxu0 %v3452
      %4137 = vmatpush.msra.mxu0 %v3450
      %4138 = vmatpush.msra.mxu0 %v3448
      %4139 = vmatmul.f32.gmra.mxu0 %v2986
      %v4140 = vpop.f32.mrf.mxu0
      %v4141 = vadd.f32 %v4121, %v4140
      %4142 = vdwg.mxu0
      %4143 = vmatpush.msra.mxu0 %v3510
      %4144 = vmatpush.msra.mxu0 %v3508
      %4145 = vmatpush.msra.mxu0 %v3506
      %4146 = vmatpush.msra.mxu0 %v3504
      %4147 = vmatpush.msra.mxu0 %v3502
      %4148 = vmatpush.msra.mxu0 %v3500
      %4149 = vmatpush.msra.mxu0 %v3498
      %4150 = vmatpush.msra.mxu0 %v3496
      %4151 = vmatpush.msra.mxu0 %v3494
      %4152 = vmatpush.msra.mxu0 %v3492
      %4153 = vmatpush.msra.mxu0 %v3490
      %4154 = vmatpush.msra.mxu0 %v3488
      %4155 = vmatpush.msra.mxu0 %v3486
      %4156 = vmatpush.msra.mxu0 %v3484
      %4157 = vmatpush.msra.mxu0 %v3482
      %4158 = vmatpush.msra.mxu0 %v3480
      %4159 = vmatmul.f32.gmra.mxu0 %v2993
      %v4160 = vpop.f32.mrf.mxu0
      %v4161 = vadd.f32 %v4141, %v4160
      %4162 = vdwg.mxu0
      %4163 = vmatpush.msra.mxu0 %v3542
      %4164 = vmatpush.msra.mxu0 %v3540
      %4165 = vmatpush.msra.mxu0 %v3538
      %4166 = vmatpush.msra.mxu0 %v3536
      %4167 = vmatpush.msra.mxu0 %v3534
      %4168 = vmatpush.msra.mxu0 %v3532
      %4169 = vmatpush.msra.mxu0 %v3530
      %4170 = vmatpush.msra.mxu0 %v3528
      %4171 = vmatpush.msra.mxu0 %v3526
      %4172 = vmatpush.msra.mxu0 %v3524
      %4173 = vmatpush.msra.mxu0 %v3522
      %4174 = vmatpush.msra.mxu0 %v3520
      %4175 = vmatpush.msra.mxu0 %v3518
      %4176 = vmatpush.msra.mxu0 %v3516
      %4177 = vmatpush.msra.mxu0 %v3514
      %4178 = vmatpush.msra.mxu0 %v3512
      %4179 = vmatmul.f32.gmra.mxu0 %v3000
      %v4180 = vpop.f32.mrf.mxu0
      %v4181 = vadd.f32 %v4161, %v4180
      %4182 = vdwg.mxu0
      %v4183 = vld [vmem:[%s6] sm:$0xff]
      %v4184 = vld [vmem:[%s6 + $0x8] sm:$0xff]
      %v4185 = vld [vmem:[%s6 + $0x10] sm:$0xff]
      %v4186 = vld [vmem:[%s6 + $0x18] sm:$0xff]
      %v4187 = vld [vmem:[%s6 + $0x20] sm:$0xff]
      %v4188 = vld [vmem:[%s6 + $0x28] sm:$0xff]
      %v4189 = vld [vmem:[%s6 + $0x30] sm:$0xff]
      %v4190 = vld [vmem:[%s6 + $0x38] sm:$0xff]
      %v4191 = vld [vmem:[%s6 + $0x40] sm:$0xff]
      %v4192 = vld [vmem:[%s6 + $0x48] sm:$0xff]
      %v4193 = vld [vmem:[%s6 + $0x50] sm:$0xff]
      %v4194 = vld [vmem:[%s6 + $0x58] sm:$0xff]
      %v4195 = vld [vmem:[%s6 + $0x60] sm:$0xff]
      %v4196 = vld [vmem:[%s6 + $0x68] sm:$0xff]
      %v4197 = vld [vmem:[%s6 + $0x70] sm:$0xff]
      %v4198 = vld [vmem:[%s6 + $0x78] sm:$0xff]
      %v4199 = vld [vmem:[%s6 + $0x80] sm:$0xff]
      %v4200 = vld [vmem:[%s6 + $0x88] sm:$0xff]
      %v4201 = vld [vmem:[%s6 + $0x90] sm:$0xff]
      %v4202 = vld [vmem:[%s6 + $0x98] sm:$0xff]
      %v4203 = vld [vmem:[%s6 + $0xa0] sm:$0xff]
      %v4204 = vld [vmem:[%s6 + $0xa8] sm:$0xff]
      %v4205 = vld [vmem:[%s6 + $0xb0] sm:$0xff]
      %v4206 = vld [vmem:[%s6 + $0xb8] sm:$0xff]
      %v4207 = vld [vmem:[%s6 + $0xc0] sm:$0xff]
      %v4208 = vld [vmem:[%s6 + $0xc8] sm:$0xff]
      %v4209 = vld [vmem:[%s6 + $0xd0] sm:$0xff]
      %v4210 = vld [vmem:[%s6 + $0xd8] sm:$0xff]
      %v4211 = vld [vmem:[%s6 + $0xe0] sm:$0xff]
      %v4212 = vld [vmem:[%s6 + $0xe8] sm:$0xff]
      %v4213 = vld [vmem:[%s6 + $0xf0] sm:$0xff]
      %v4214 = vld [vmem:[%s6 + $0xf8] sm:$0xff]
      %4215 = vmatpush.msra.mxu0 %v4213
      %4216 = vmatpush.msra.mxu0 %v4211
      %4217 = vmatpush.msra.mxu0 %v4209
      %4218 = vmatpush.msra.mxu0 %v4207
      %4219 = vmatpush.msra.mxu0 %v4205
      %4220 = vmatpush.msra.mxu0 %v4203
      %4221 = vmatpush.msra.mxu0 %v4201
      %4222 = vmatpush.msra.mxu0 %v4199
      %4223 = vmatpush.msra.mxu0 %v4197
      %4224 = vmatpush.msra.mxu0 %v4195
      %4225 = vmatpush.msra.mxu0 %v4193
      %4226 = vmatpush.msra.mxu0 %v4191
      %4227 = vmatpush.msra.mxu0 %v4189
      %4228 = vmatpush.msra.mxu0 %v4187
      %4229 = vmatpush.msra.mxu0 %v4185
      %4230 = vmatpush.msra.mxu0 %v4183
      %4231 = vmatmul.f32.gmra.mxu0 %v3029
      %v4232 = vpop.f32.mrf.mxu0
      %v4233 = vadd.f32 0.0, %v4232
      %4234 = vmatmul.f32.gmra.mxu0 %v3030
      %v4235 = vpop.f32.mrf.mxu0
      %v4236 = vadd.f32 0.0, %v4235
      %4237 = vdwg.mxu0
      %4238 = vmatpush.msra.mxu0 %v4214
      %4239 = vmatpush.msra.mxu0 %v4212
      %4240 = vmatpush.msra.mxu0 %v4210
      %4241 = vmatpush.msra.mxu0 %v4208
      %4242 = vmatpush.msra.mxu0 %v4206
      %4243 = vmatpush.msra.mxu0 %v4204
      %4244 = vmatpush.msra.mxu0 %v4202
      %4245 = vmatpush.msra.mxu0 %v4200
      %4246 = vmatpush.msra.mxu0 %v4198
      %4247 = vmatpush.msra.mxu0 %v4196
      %4248 = vmatpush.msra.mxu0 %v4194
      %4249 = vmatpush.msra.mxu0 %v4192
      %4250 = vmatpush.msra.mxu0 %v4190
      %4251 = vmatpush.msra.mxu0 %v4188
      %4252 = vmatpush.msra.mxu0 %v4186
      %4253 = vmatpush.msra.mxu0 %v4184
      %4254 = vmatmul.f32.gmra.mxu0 %v3029
      %v4255 = vpop.f32.mrf.mxu0
      %v4256 = vadd.f32 0.0, %v4255
      %4257 = vmatmul.f32.gmra.mxu0 %v3030
      %v4258 = vpop.f32.mrf.mxu0
      %v4259 = vadd.f32 0.0, %v4258
      %4260 = vdwg.mxu0
      %v4261 = vperm.slane %v3861, 0
      %v4262 = vperm.slane %v4181, 0
      %v4263 = vadd.f32 %v4261, %v4233
      %v4264 = vadd.f32 %v4262, %v4256
      %v4265 = vadd.f32 %v4261, %v4236
      %v4266 = vadd.f32 %v4262, %v4259
      %4267 = vmatpush.msra.mxu0 0.0
      %4268 = vmatpush.msra.mxu0 0.0
      %4269 = vmatpush.msra.mxu0 0.0
      %4270 = vmatpush.msra.mxu0 0.0
      %4271 = vmatpush.msra.mxu0 0.0
      %4272 = vmatpush.msra.mxu0 0.0
      %4273 = vmatpush.msra.mxu0 0.0
      %4274 = vmatpush.msra.mxu0 0.0
      %4275 = vmatpush.msra.mxu0 0.0
      %4276 = vmatpush.msra.mxu0 0.0
      %4277 = vmatpush.msra.mxu0 0.0
      %4278 = vmatpush.msra.mxu0 0.0
      %4279 = vmatpush.msra.mxu0 0.0
      %4280 = vmatpush.msra.mxu0 0.0
      %4281 = vmatpush.msra.mxu0 %v4265
      %4282 = vmatpush.msra.mxu0 %v4263
      %4283 = vmatmul.f32.gmra.mxu0 %v439
      %v4284 = vpop.f32.mrf.mxu0
      %v4285 = vadd.f32 0.0, %v4284
      %4286 = vmatmul.f32.gmra.mxu0 %v442
      %v4287 = vpop.f32.mrf.mxu0
      %v4288 = vadd.f32 0.0, %v4287
      %4289 = vdwg.mxu0
      %4292 = vrot.lane.b32.xlu0 %v4285, 64
      %v4293 = vpop.permute.xlu0 %4292
      %4294 = vrot.lane.b32.xlu0 %v4288, 64
      %v4295 = vpop.permute.xlu0 %4294
      %v4298 = vadd.f32 %v4263, %v4293
      %v4299 = vadd.f32 %v4265, %v4295
      %4300 = vmatpush.msra.mxu0 0.0
      %4301 = vmatpush.msra.mxu0 0.0
      %4302 = vmatpush.msra.mxu0 0.0
      %4303 = vmatpush.msra.mxu0 0.0
      %4304 = vmatpush.msra.mxu0 0.0
      %4305 = vmatpush.msra.mxu0 0.0
      %4306 = vmatpush.msra.mxu0 0.0
      %4307 = vmatpush.msra.mxu0 0.0
      %4308 = vmatpush.msra.mxu0 0.0
      %4309 = vmatpush.msra.mxu0 0.0
      %4310 = vmatpush.msra.mxu0 0.0
      %4311 = vmatpush.msra.mxu0 0.0
      %4312 = vmatpush.msra.mxu0 0.0
      %4313 = vmatpush.msra.mxu0 0.0
      %4314 = vmatpush.msra.mxu0 %v4266
      %4315 = vmatpush.msra.mxu0 %v4264
      %4316 = vmatmul.f32.gmra.mxu0 %v468
      %v4317 = vpop.f32.mrf.mxu0
      %v4318 = vadd.f32 0.0, %v4317
      %4319 = vmatmul.f32.gmra.mxu0 %v471
      %v4320 = vpop.f32.mrf.mxu0
      %v4321 = vadd.f32 0.0, %v4320
      %4322 = vdwg.mxu0
      %4325 = vrot.lane.b32.xlu0 %v4318, 64
      %v4326 = vpop.permute.xlu0 %4325
      %4327 = vrot.lane.b32.xlu0 %v4321, 64
      %v4328 = vpop.permute.xlu0 %4327
      %v4331 = vadd.f32 %v4298, %v4326
      %v4332 = vadd.f32 %v4299, %v4328
      %v4333 = vld [vmem:[%s7] sm:$0x1]
      %v4335 = vperm.slane %v4333, 0
      %4336 = vrot.lane.b32.xlu0 %v4335, 64
      %v4337 = vpop.permute.xlu0 %4336
      %v4339 = vadd.f32 %v4331, %v4337
      %v4340 = vadd.f32 %v4332, %v4337
      %v4341 = vld [vmem:[%s8] sm:$0xff]
      %v4342 = vld [vmem:[%s8 + $0x8] sm:$0xff]
      %v4343 = vld [vmem:[%s8 + $0x10] sm:$0xff]
      %v4344 = vld [vmem:[%s8 + $0x18] sm:$0xff]
      %v4345 = vld [vmem:[%s8 + $0x20] sm:$0xff]
      %v4346 = vld [vmem:[%s8 + $0x28] sm:$0xff]
      %v4347 = vld [vmem:[%s8 + $0x30] sm:$0xff]
      %v4348 = vld [vmem:[%s8 + $0x38] sm:$0xff]
      %v4349 = vld [vmem:[%s9] sm:$0x1]
      %v4351 = vperm.slane %v4349, 0
      %v4353 = vsel %vm504, %v435, 0
      %v4355 = vsel %vm504, %v436, 0
      %4357 = vmatpush.msra.mxu0 0.0
      %4358 = vmatpush.msra.mxu0 0.0
      %4359 = vmatpush.msra.mxu0 0.0
      %4360 = vmatpush.msra.mxu0 0.0
      %4361 = vmatpush.msra.mxu0 0.0
      %4362 = vmatpush.msra.mxu0 0.0
      %4363 = vmatpush.msra.mxu0 0.0
      %4364 = vmatpush.msra.mxu0 0.0
      %4365 = vmatpush.msra.mxu0 %v4348
      %4366 = vmatpush.msra.mxu0 %v4347
      %4367 = vmatpush.msra.mxu0 %v4346
      %4368 = vmatpush.msra.mxu0 %v4345
      %4369 = vmatpush.msra.mxu0 %v4344
      %4370 = vmatpush.msra.mxu0 %v4343
      %4371 = vmatpush.msra.mxu0 %v4342
      %4372 = vmatpush.msra.mxu0 %v4341
      %4373 = vmatmul.f32.gmra.mxu0 %v4353
      %v4374 = vpop.f32.mrf.mxu0
      %v4375 = vadd.f32 %v4351, %v4374
      %4376 = vmatmul.f32.gmra.mxu0 %v4355
      %v4377 = vpop.f32.mrf.mxu0
      %v4378 = vadd.f32 %v4351, %v4377
      %4379 = vdwg.mxu0
      %4382 = vrot.lane.b32.xlu0 %v4375, 64
      %v4383 = vpop.permute.xlu0 %4382
      %4384 = vrot.lane.b32.xlu0 %v4378, 64
      %v4385 = vpop.permute.xlu0 %4384
      %v4388 = vadd.f32 %v4339, %v4383
      %v4389 = vadd.f32 %v4340, %v4385
      %v4390 = vmax.f32 %v4388, 0.0
      %v4391 = vmax.f32 %v4389, 0.0
      %4394 = vrot.lane.b32.xlu0 %v4390, 64
      %v4395 = vpop.permute.xlu0 %4394
      %4396 = vrot.lane.b32.xlu0 %v4391, 64
      %v4397 = vpop.permute.xlu0 %4396
      %4400 = vmatpush.msra.mxu0 0.0
      %4401 = vmatpush.msra.mxu0 0.0
      %4402 = vmatpush.msra.mxu0 0.0
      %4403 = vmatpush.msra.mxu0 0.0
      %4404 = vmatpush.msra.mxu0 0.0
      %4405 = vmatpush.msra.mxu0 0.0
      %4406 = vmatpush.msra.mxu0 0.0
      %4407 = vmatpush.msra.mxu0 0.0
      %4408 = vmatpush.msra.mxu0 0.0
      %4409 = vmatpush.msra.mxu0 0.0
      %4410 = vmatpush.msra.mxu0 0.0
      %4411 = vmatpush.msra.mxu0 0.0
      %4412 = vmatpush.msra.mxu0 0.0
      %4413 = vmatpush.msra.mxu0 0.0
      %4414 = vmatpush.msra.mxu0 %v4397
      %4415 = vmatpush.msra.mxu0 %v4395
      %4416 = vmatmul.f32.gmra.mxu0 %v439
      %v4417 = vpop.f32.mrf.mxu0
      %v4418 = vadd.f32 0.0, %v4417
      %4419 = vmatmul.f32.gmra.mxu0 %v442
      %v4420 = vpop.f32.mrf.mxu0
      %v4421 = vadd.f32 0.0, %v4420
      %4422 = vdwg.mxu0
      %4423 = vmatpush.msra.mxu0 0.0
      %4424 = vmatpush.msra.mxu0 0.0
      %4425 = vmatpush.msra.mxu0 0.0
      %4426 = vmatpush.msra.mxu0 0.0
      %4427 = vmatpush.msra.mxu0 0.0
      %4428 = vmatpush.msra.mxu0 0.0
      %4429 = vmatpush.msra.mxu0 0.0
      %4430 = vmatpush.msra.mxu0 0.0
      %4431 = vmatpush.msra.mxu0 0.0
      %4432 = vmatpush.msra.mxu0 0.0
      %4433 = vmatpush.msra.mxu0 0.0
      %4434 = vmatpush.msra.mxu0 0.0
      %4435 = vmatpush.msra.mxu0 0.0
      %4436 = vmatpush.msra.mxu0 0.0
      %4437 = vmatpush.msra.mxu0 %v4397
      %4438 = vmatpush.msra.mxu0 %v4395
      %4439 = vmatmul.f32.gmra.mxu0 %v468
      %v4440 = vpop.f32.mrf.mxu0
      %v4441 = vadd.f32 0.0, %v4440
      %4442 = vmatmul.f32.gmra.mxu0 %v471
      %v4443 = vpop.f32.mrf.mxu0
      %v4444 = vadd.f32 0.0, %v4443
      %4445 = vdwg.mxu0
      %v4446 = vsel %vm504, %v4418, %v4390
      %v4447 = vsel %vm504, %v4421, %v4391
      %v4448 = vld [vmem:[%s10] sm:$0xff]
      %v4449 = vld [vmem:[%s10 + $0x8] sm:$0xff]
      %v4450 = vld [vmem:[%s10 + $0x10] sm:$0xff]
      %v4451 = vld [vmem:[%s10 + $0x18] sm:$0xff]
      %v4452 = vld [vmem:[%s10 + $0x20] sm:$0xff]
      %v4453 = vld [vmem:[%s10 + $0x28] sm:$0xff]
      %v4454 = vld [vmem:[%s10 + $0x30] sm:$0xff]
      %v4455 = vld [vmem:[%s10 + $0x38] sm:$0xff]
      %v4456 = vld [vmem:[%s10 + $0x40] sm:$0xff]
      %v4457 = vld [vmem:[%s10 + $0x48] sm:$0xff]
      %v4458 = vld [vmem:[%s10 + $0x50] sm:$0xff]
      %v4459 = vld [vmem:[%s10 + $0x58] sm:$0xff]
      %v4460 = vld [vmem:[%s10 + $0x60] sm:$0xff]
      %v4461 = vld [vmem:[%s10 + $0x68] sm:$0xff]
      %v4462 = vld [vmem:[%s10 + $0x70] sm:$0xff]
      %v4463 = vld [vmem:[%s10 + $0x78] sm:$0xff]
      %v4464 = vld [vmem:[%s10 + $0x80] sm:$0xff]
      %v4465 = vld [vmem:[%s10 + $0x88] sm:$0xff]
      %v4466 = vld [vmem:[%s10 + $0x90] sm:$0xff]
      %v4467 = vld [vmem:[%s10 + $0x98] sm:$0xff]
      %v4468 = vld [vmem:[%s10 + $0xa0] sm:$0xff]
      %v4469 = vld [vmem:[%s10 + $0xa8] sm:$0xff]
      %v4470 = vld [vmem:[%s10 + $0xb0] sm:$0xff]
      %v4471 = vld [vmem:[%s10 + $0xb8] sm:$0xff]
      %v4472 = vld [vmem:[%s11] sm:$0x1]
      %v4474 = vperm.slane %v4472, 0
      %v4477 = vsel %vm504, %v4441, 0
      %v4480 = vsel %vm504, %v4444, 0
      %4482 = vmatpush.msra.mxu0 %v4463
      %4483 = vmatpush.msra.mxu0 %v4462
      %4484 = vmatpush.msra.mxu0 %v4461
      %4485 = vmatpush.msra.mxu0 %v4460
      %4486 = vmatpush.msra.mxu0 %v4459
      %4487 = vmatpush.msra.mxu0 %v4458
      %4488 = vmatpush.msra.mxu0 %v4457
      %4489 = vmatpush.msra.mxu0 %v4456
      %4490 = vmatpush.msra.mxu0 %v4455
      %4491 = vmatpush.msra.mxu0 %v4454
      %4492 = vmatpush.msra.mxu0 %v4453
      %4493 = vmatpush.msra.mxu0 %v4452
      %4494 = vmatpush.msra.mxu0 %v4451
      %4495 = vmatpush.msra.mxu0 %v4450
      %4496 = vmatpush.msra.mxu0 %v4449
      %4497 = vmatpush.msra.mxu0 %v4448
      %4498 = vmatmul.f32.gmra.mxu0 %v4446
      %v4499 = vpop.f32.mrf.mxu0
      %v4500 = vadd.f32 %v4474, %v4499
      %4501 = vmatmul.f32.gmra.mxu0 %v4447
      %v4502 = vpop.f32.mrf.mxu0
      %v4503 = vadd.f32 %v4474, %v4502
      %4504 = vdwg.mxu0
      %4505 = vmatpush.msra.mxu0 0.0
      %4506 = vmatpush.msra.mxu0 0.0
      %4507 = vmatpush.msra.mxu0 0.0
      %4508 = vmatpush.msra.mxu0 0.0
      %4509 = vmatpush.msra.mxu0 0.0
      %4510 = vmatpush.msra.mxu0 0.0
      %4511 = vmatpush.msra.mxu0 0.0
      %4512 = vmatpush.msra.mxu0 0.0
      %4513 = vmatpush.msra.mxu0 %v4471
      %4514 = vmatpush.msra.mxu0 %v4470
      %4515 = vmatpush.msra.mxu0 %v4469
      %4516 = vmatpush.msra.mxu0 %v4468
      %4517 = vmatpush.msra.mxu0 %v4467
      %4518 = vmatpush.msra.mxu0 %v4466
      %4519 = vmatpush.msra.mxu0 %v4465
      %4520 = vmatpush.msra.mxu0 %v4464
      %4521 = vmatmul.f32.gmra.mxu0 %v4477
      %v4522 = vpop.f32.mrf.mxu0
      %v4523 = vadd.f32 %v4500, %v4522
      %4524 = vmatmul.f32.gmra.mxu0 %v4480
      %v4525 = vpop.f32.mrf.mxu0
      %v4526 = vadd.f32 %v4503, %v4525
      %4527 = vdwg.mxu0
      %v4528 = vmax.f32 %v4523, 0.0
      %v4529 = vmax.f32 %v4526, 0.0
      %4530 = vst.msk [vmem:[%s413] sm:$0xff] %vm504, %v4528
      %4531 = vst.msk [vmem:[%s413 + $0x8] sm:$0xff] %vm504, %v4529
      %p4532 = scmp.lt.s32.totalorder %s23, 1
      %s4533 = scalar_select %p4532, %s23, 1
      %s4534 = smul.addr %s4533, 2
      %s4535 = smul.addr %s4534, 8
      %s4536 = scalar_lea.vmem %s12, %s4535
      // Predicated region
      $region69: #{pool_cross_forward.1} parent=67 // pred_check
        %p4537 = pneg %p298
      $region70: #{pool_cross_forward.1} parent=67 // pred_check_branch
        %4539 = sbr.rel (%p4537) target = $region72
      $region71: #{pool_cross_forward.1} parent=67 // pred_region
        _
      $region72: #{pool_cross_forward.1} parent=67 // pred_fallthru
        _
    $region68: #{pool_cross_forward.1} parent=5 // pred_fallthru
      _
    %p4540 = scmp.le.s32.totalorder 2, %s18
    // Predicated region
    $region73: #{pool_cross_forward.1} parent=5 // pred_check
      %p4541 = pneg %p4540
    $region74: #{pool_cross_forward.1} parent=5 // pred_check_branch
      %4543 = sbr.rel (%p4541) target = $region76
    $region75: #{pool_cross_forward.1} parent=5 // pred_region
      %s4544 = ssub.s32 %s18, 2
      // Predicated region
      $region77: #{pool_cross_forward.1} parent=75 // pred_check
        %p4545 = pneg %p304
      $region78: #{pool_cross_forward.1} parent=75 // pred_check_branch
        %4547 = sbr.rel (%p4545) target = $region80
      $region79: #{pool_cross_forward.1} parent=75 // pred_region
        %p4548 = scmp.lt.s32.totalorder %s24, 1
        %s4549 = scalar_select %p4548, %s24, 1
        %s4550 = smul.addr %s4549, 2
        %s4551 = smul.addr %s4550, 8
        %s4552 = scalar_lea.vmem %s12, %s4551
      $region80: #{pool_cross_forward.1} parent=75 // pred_fallthru
        _
    $region76: #{pool_cross_forward.1} parent=5 // pred_fallthru
      _
  $region6: #{pool_cross_forward.1} parent=0 // loop_footer
    %s22 = sadd.s32 1, %s18
  $region7: #{pool_cross_forward.1} parent=0 // loop_footer_branch
    %17 = sbr.rel target = $region3
  $region8: #{pool_cross_forward.1} parent=0 // loop_exit
    _

</llo_original>
